<compile_context>
chip_gen: v6e
topology: v6e:2x2x1
jax: 0.10.0
libtpu: 0.0.40
codegen_flags: <defaults>
</compile_context>

<pallas_src>
import functools

import jax
import jax.numpy as jnp
from jax.experimental import pallas as pl
from jax.experimental.pallas import tpu as pltpu

MAX_STD = 0.5
MIN_STD = 0.001

# Rows of the packed (N_VEC, H) bias / LayerNorm-parameter slab.
VEC_NAMES = [
    "embed_b", "embed_g", "embed_bb",
    "rb1_b1", "rb1_g1", "rb1_bb1", "rb1_b2", "rb1_g2", "rb1_bb2",
    "side_g1", "side_bb1",
    "rb2_b1", "rb2_g1", "rb2_bb1", "rb2_b2", "rb2_g2", "rb2_bb2",
    "side_g2", "side_bb2",
    "bk_b1",
]
VEC_ROW = {n: i for i, n in enumerate(VEC_NAMES)}


# ---------------------------------------------------------------------------
# Shared math (used inside the Pallas kernel and by the pure-JAX reference)
# ---------------------------------------------------------------------------

def _mm(x, w):
    # Cast the activation to the weight dtype (bf16) right at the MXU; f32 accumulation.
    return jnp.dot(x.astype(w.dtype), w, preferred_element_type=jnp.float32)


def _layernorm(x, g, b, eps=1e-5):
    # Two-pass (centered) variance: numerically safer than mean(x*x) - m*m.
    m = jnp.mean(x, axis=-1, keepdims=True)
    xc = x - m
    v = jnp.mean(xc * xc, axis=-1, keepdims=True)
    return xc * jax.lax.rsqrt(v + eps) * g + b


def _resblock(x, P, prefix):
    # process_net: Linear -> LN -> ReLU -> Linear -> LN -> ReLU ; skip = Identity
    h = _mm(x, P[prefix + "_w1"]) + P[prefix + "_b1"]
    h = _layernorm(h, P[prefix + "_g1"], P[prefix + "_bb1"])
    h = jnp.maximum(h, 0.0)
    h = _mm(h, P[prefix + "_w2"]) + P[prefix + "_b2"]
    h = _layernorm(h, P[prefix + "_g2"], P[prefix + "_bb2"])
    h = jnp.maximum(h, 0.0)
    return h + x


def _unpack(vecs, lstm_b, bk_b2, embed_w, hxh, lstm_wih, lstm_whh, bk_w1_h, bk_w2):
    """Parameter dict.  Bias / LN rows stay (1, N) (implicit broadcasting at use).

    `vecs` / `hxh` may be VMEM Refs (kernel) or arrays (reference) — only static
    slicing / leading-axis indexing is used, which works for both.
    """
    P = {n: vecs[i:i + 1, :] for n, i in VEC_ROW.items()}
    P.update(
        embed_w=embed_w,
        rb1_w1=hxh[0], rb1_w2=hxh[1], rb2_w1=hxh[2], rb2_w2=hxh[3], bk_w1_s=hxh[4],
        lstm_wih=lstm_wih, lstm_whh=lstm_whh,
        bk_w1_h=bk_w1_h, bk_w2=bk_w2,
        lstm_b=lstm_b, bk_b2=bk_b2,
    )
    return P


def _feedforward(xa, P):
    """All non-recurrent compute, batched over (time*batch) rows.

    Returns pre_gates (M, 4R) = x-part of the LSTM gates (bias included) and
    pre_z (M, H) = side-net part of the backbone hidden layer (bias included).
    """
    e = jnp.maximum(_mm(xa, P["embed_w"]) + P["embed_b"], 0.0)
    e = _layernorm(e, P["embed_g"], P["embed_bb"])

    s = _resblock(e, P, "rb1")
    s = _layernorm(s, P["side_g1"], P["side_bb1"])
    s = _resblock(s, P, "rb2")
    s = _layernorm(s, P["side_g2"], P["side_bb2"])

    pre_gates = _mm(e, P["lstm_wih"]) + P["lstm_b"]
    pre_z = _mm(s, P["bk_w1_s"]) + P["bk_b1"]
    return pre_gates, pre_z


def _lstm_step(g_pre, h, c, whh, R):
    """One LSTM step.  Gate columns are repacked host-side to (i, f, o, g), so one
    sigmoid covers the contiguous first 3R lanes and one tanh the last R."""
    gates = g_pre + _mm(h, whh)                          # (bb, 4R), f32
    sig = jax.nn.sigmoid(gates[:, :3 * R])
    g_g = jnp.tanh(gates[:, 3 * R:])
    i_g, f_g, o_g = sig[:, :R], sig[:, R:2 * R], sig[:, 2 * R:3 * R]
    c_new = f_g * c + i_g * g_g
    h_new = o_g * jnp.tanh(c_new)
    return h_new, c_new


def _head(pre_z, h_all, P, out_dim):
    """Backbone second half + DistributionWrapper('normal', conditioned_std)."""
    z = pre_z + _mm(h_all, P["bk_w1_h"])
    z = jnp.where(z > 0, z, 0.1 * z)                     # LeakyReLU(0.1)
    logits = _mm(z, P["bk_w2"]) + P["bk_b2"]
    # mu = tanh(logits[:, :D]); std = (tanh(logits[:, D:]) + 1)/2*(MAX-MIN)+MIN.
    # tanh applies to both halves, so compute once and select per lane (no slicing).
    th = jnp.tanh(logits)
    std = (th + 1.0) * (0.5 * (MAX_STD - MIN_STD)) + MIN_STD
    col = jax.lax.broadcasted_iota(jnp.int32, logits.shape, 1)
    return jnp.where(col < out_dim, th, std)


# ---------------------------------------------------------------------------
# Pallas kernel
# ---------------------------------------------------------------------------

def _kernel(x_ref, vec_ref, lstm_b_ref, bk_b2_ref, embed_w_ref, hxh_ref,
            lstm_wih_ref, lstm_whh_ref, bk_w1h_ref, bk_w2_ref,
            out_ref, h_scr, c_scr, pg_scr, hall_scr, pz_scr, o_scr,
            *, rnn_hidden, out_dim, t_chunk):
    tb = pl.program_id(1)        # time-chunk index (inner, sequential axis)

    @pl.when(tb == 0)
    def _():                     # reset the recurrent state at the start of each batch block
        h_scr[...] = jnp.zeros_like(h_scr)
        c_scr[...] = jnp.zeros_like(c_scr)

    bb = h_scr.shape[0]
    R = rnn_hidden
    H = pz_scr.shape[-1]
    F = x_ref.shape[-1]
    M = t_chunk * bb
    two_d = 2 * out_dim

    # Hoisted once per grid step: parameter loads ((1, N) rows stay un-broadcast).
    P = _unpack(vec_ref, lstm_b_ref[...], bk_b2_ref[...], embed_w_ref[...],
                hxh_ref, lstm_wih_ref[...], lstm_whh_ref[...],
                bk_w1h_ref[...], bk_w2_ref[...])

    # --- chunk-level (non-recurrent) feed-forward: large-M MXU matmuls ---------
    xa = x_ref[...].reshape(M, F)                 # leading-dim merge only (free)
    pre_gates, pre_z = _feedforward(xa, P)
    pg_scr[...] = pre_gates.reshape(t_chunk, bb, 4 * R)
    pz_scr[...] = pre_z.reshape(t_chunk, bb, H)

    # --- recurrence: only (bb,R)x(R,4R) matmul + gate elementwise per step -----
    whh = P["lstm_whh"]

    def body(i, carry):
        h, c = carry
        h, c = _lstm_step(pg_scr[i], h, c, whh, R)
        hall_scr[i] = h
        return h, c

    unroll = True if t_chunk <= 16 else 8
    h_fin, c_fin = jax.lax.fori_loop(0, t_chunk, body,
                                     (h_scr[...], c_scr[...]), unroll=unroll)
    h_scr[...] = h_fin
    c_scr[...] = c_fin

    # --- chunk-level head, then lane-dense store --------------------------------
    out = _head(pz_scr[...].reshape(M, H), hall_scr[...].reshape(M, R), P, out_dim)
    o_scr[...] = out.reshape(t_chunk, bb, two_d)  # leading-dim split only (free)
    # Fold batch into the lane axis (bb*2D-wide rows) so the HBM writeback is
    # lane-dense (unmasked stores / large DMA bursts); wrapper un-folds.
    for b in range(bb):
        out_ref[:, b * two_d:(b + 1) * two_d] = o_scr[:, b, :]


def _auto_t_chunk(T, bb, F, R, H, out_dim, x_itemsize, budget_bytes):
    """Largest divisor of T (multiple of 8, or T itself) whose per-chunk VMEM
    footprint (double-buffered x/out blocks + pre_gates/h_all/pre_z scratch)
    fits the budget."""
    per_t = bb * (2 * F * x_itemsize + 2 * 2 * out_dim * 4 + (4 * R + R + H) * 4)
    cap = max(1, budget_bytes // max(per_t, 1))
    candidates = [c for c in range(1, T + 1)
                  if T % c == 0 and (c % 8 == 0 or c == T)]
    fitting = [c for c in candidates if c <= cap]
    return max(fitting) if fitting else min(candidates)


def recurrent_res_transition_forward(x, packed, *, rnn_hidden, out_dim,
                                     t_chunk=None, num_b_blocks=1,
                                     vmem_budget_bytes=24 << 20,
                                     param_buffer_count=None):
    """Forward pass.  Returns (mu, std), each (T, B, out_dim).

    num_b_blocks: keep 1 on v5e / v6e (single TensorCore — a 'parallel' batch axis is
      just a serial loop there); on v7x use 2 only when B/2 >= 128 rows.  Each batch
      block must be a multiple of 8 rows (or the full batch).
    vmem_budget_bytes: chunk-scratch budget used by the t_chunk auto-selection.
      24 MiB fits v7x's 64 MiB VMEM with headroom; v5e/v6e (128 MiB) can go ~2x.
    param_buffer_count: set to 1 on v7x at production H to single-buffer the
      constant-index parameter blocks (halves their VMEM footprint).
    """
    T, B, F = x.shape
    D = out_dim
    R = rnn_hidden
    H = packed["hxh"].shape[-1]
    two_d = 2 * D

    assert B % num_b_blocks == 0, "B must be divisible by num_b_blocks"
    bb = B // num_b_blocks
    assert bb == B or bb % 8 == 0, "batch block must be a multiple of 8 (or the full batch)"
    if num_b_blocks > 1:
        assert (bb * two_d) % 128 == 0, "folded output block must be lane-aligned"

    # bf16 x: halves the input DMA and removes per-row casts (weights already bf16).
    x = x.astype(packed["embed_w"].dtype)

    if t_chunk is None:
        t_chunk = _auto_t_chunk(T, bb, F, R, H, D, x.dtype.itemsize, vmem_budget_bytes)
    assert T % t_chunk == 0, "T must be divisible by t_chunk"
    assert t_chunk % 8 == 0 or t_chunk == T, "t_chunk must be a multiple of 8 or == T"
    nt = T // t_chunk

    ordered = [packed["vecs"], packed["lstm_b"], packed["bk_b2"], packed["embed_w"],
               packed["hxh"], packed["lstm_wih"], packed["lstm_whh"],
               packed["bk_w1_h"], packed["bk_w2"]]

    def const_map(ndim):
        return lambda b, t: (0,) * ndim

    param_kwargs = {}
    if param_buffer_count is not None:
        # Constant-index parameter blocks do not need double buffering (v7x 64 MiB VMEM).
        param_kwargs = dict(pipeline_mode=pl.Buffered(param_buffer_count))

    in_specs = [pl.BlockSpec((t_chunk, bb, F), lambda b, t: (t, b, 0))]
    for arr in ordered:
        in_specs.append(pl.BlockSpec(arr.shape, const_map(arr.ndim), **param_kwargs))

    # Lane-dense output: batch folded into the lane axis; un-folded in the wrapper.
    out_specs = pl.BlockSpec((t_chunk, bb * two_d), lambda b, t: (t, b))
    out_shape = jax.ShapeDtypeStruct((T, B * two_d), jnp.float32)

    # Explicit scoped-VMEM limit (v5e default is only 16 MiB); capped at 64 MiB (v7x).
    pbuf = param_buffer_count if param_buffer_count else 2
    param_bytes = sum(int(a.size) * a.dtype.itemsize for a in ordered)
    x_blk = t_chunk * bb * F * x.dtype.itemsize
    out_blk = t_chunk * bb * two_d * 4
    scratch_bytes = (2 * bb * R + t_chunk * bb * (4 * R + R + H + two_d)) * 4
    need = pbuf * param_bytes + 2 * (x_blk + out_blk) + scratch_bytes
    vmem_limit = int(min(max(2 * need, 32 << 20), 64 << 20))

    kernel = functools.partial(_kernel, rnn_hidden=R, out_dim=D, t_chunk=t_chunk)
    out = pl.pallas_call(
        kernel,
        out_shape=out_shape,
        grid_spec=pltpu.PrefetchScalarGridSpec(
            num_scalar_prefetch=0,
            grid=(num_b_blocks, nt),
            in_specs=in_specs,
            out_specs=out_specs,
            scratch_shapes=[
                pltpu.VMEM((bb, R), jnp.float32),                # h carry (across chunks)
                pltpu.VMEM((bb, R), jnp.float32),                # c carry
                pltpu.VMEM((t_chunk, bb, 4 * R), jnp.float32),   # pre-gates (x part)
                pltpu.VMEM((t_chunk, bb, R), jnp.float32),       # all h outputs of the chunk
                pltpu.VMEM((t_chunk, bb, H), jnp.float32),       # side-net backbone pre-act
                pltpu.VMEM((t_chunk, bb, two_d), jnp.float32),   # per-chunk output staging
            ],
        ),
        compiler_params=pltpu.CompilerParams(
            # batch blocks are independent (megacore-parallel); time is a recurrence.
            dimension_semantics=("parallel", "arbitrary"),
            vmem_limit_bytes=vmem_limit),
    )(x, *ordered)

    out = out.reshape(T, B, two_d)
    return out[..., :D], out[..., D:]


# ---------------------------------------------------------------------------
# Parameter construction / packing + pure-JAX reference
# ---------------------------------------------------------------------------

def init_params(key, in_features, hidden, rnn_hidden, out_features):
    keys = jax.random.split(key, 11)

    def lin(k, fan_in, fan_out):
        bound = 1.0 / float(fan_in) ** 0.5
        kw, kb = jax.random.split(k)
        w = jax.random.uniform(kw, (fan_in, fan_out), jnp.float32, -bound, bound)
        b = jax.random.uniform(kb, (1, fan_out), jnp.float32, -bound, bound)
        return w, b

    H, R = hidden, rnn_hidden
    p = {}
    p["embed_w"], p["embed_b"] = lin(keys[0], in_features, H)
    p["embed_g"], p["embed_bb"] = jnp.ones((1, H)), jnp.zeros((1, H))

    p["rb1_w1"], p["rb1_b1"] = lin(keys[1], H, H)
    p["rb1_g1"], p["rb1_bb1"] = jnp.ones((1, H)), jnp.zeros((1, H))
    p["rb1_w2"], p["rb1_b2"] = lin(keys[2], H, H)
    p["rb1_g2"], p["rb1_bb2"] = jnp.ones((1, H)), jnp.zeros((1, H))
    p["side_g1"], p["side_bb1"] = jnp.ones((1, H)), jnp.zeros((1, H))

    p["rb2_w1"], p["rb2_b1"] = lin(keys[3], H, H)
    p["rb2_g1"], p["rb2_bb1"] = jnp.ones((1, H)), jnp.zeros((1, H))
    p["rb2_w2"], p["rb2_b2"] = lin(keys[4], H, H)
    p["rb2_g2"], p["rb2_bb2"] = jnp.ones((1, H)), jnp.zeros((1, H))
    p["side_g2"], p["side_bb2"] = jnp.ones((1, H)), jnp.zeros((1, H))

    bound = 1.0 / float(R) ** 0.5
    p["lstm_wih"] = jax.random.uniform(keys[5], (H, 4 * R), jnp.float32, -bound, bound)
    p["lstm_whh"] = jax.random.uniform(keys[6], (R, 4 * R), jnp.float32, -bound, bound)
    p["lstm_bih"] = jax.random.uniform(keys[7], (1, 4 * R), jnp.float32, -bound, bound)
    p["lstm_bhh"] = jax.random.uniform(keys[8], (1, 4 * R), jnp.float32, -bound, bound)

    p["bk_w1"], p["bk_b1"] = lin(keys[9], H + R, H)
    p["bk_w2"], p["bk_b2"] = lin(keys[10], H, out_features)
    return p


def _reorder_gate_cols(w):
    """torch LSTM gate order (i, f, g, o) -> (i, f, o, g)."""
    R = w.shape[-1] // 4
    return jnp.concatenate([w[..., :2 * R], w[..., 3 * R:], w[..., 2 * R:3 * R]], axis=-1)


def pack_params(p, *, param_dtype=jnp.bfloat16):
    """Host-side packing / fusion of the torch-style parameter dict."""
    H = p["rb1_w1"].shape[0]
    vecs = jnp.concatenate([p[n] for n in VEC_NAMES], axis=0).astype(jnp.float32)
    lstm_b = _reorder_gate_cols(p["lstm_bih"] + p["lstm_bhh"]).astype(jnp.float32)
    bk_w1_s = p["bk_w1"][:H]                                         # side-output half
    bk_w1_h = p["bk_w1"][H:]                                         # rnn-output half
    hxh = jnp.stack([p["rb1_w1"], p["rb1_w2"], p["rb2_w1"], p["rb2_w2"], bk_w1_s],
                    axis=0).astype(param_dtype)
    return dict(
        vecs=vecs,
        lstm_b=lstm_b,
        bk_b2=p["bk_b2"].astype(jnp.float32),
        embed_w=p["embed_w"].astype(param_dtype),
        hxh=hxh,
        lstm_wih=_reorder_gate_cols(p["lstm_wih"]).astype(param_dtype),
        lstm_whh=_reorder_gate_cols(p["lstm_whh"]).astype(param_dtype),
        bk_w1_h=bk_w1_h.astype(param_dtype),
        bk_w2=p["bk_w2"].astype(param_dtype),
    )


def reference_forward(x, packed, *, rnn_hidden, out_dim):
    """Pure-JAX reference of the same math (Python time loop, same bf16 weights)."""
    T, B, F = x.shape
    R = rnn_hidden
    P = _unpack(packed["vecs"], packed["lstm_b"], packed["bk_b2"], packed["embed_w"],
                packed["hxh"], packed["lstm_wih"], packed["lstm_whh"],
                packed["bk_w1_h"], packed["bk_w2"])
    xa = x.astype(packed["embed_w"].dtype).reshape(T * B, F)
    pre_gates, pre_z = _feedforward(xa, P)
    pre_gates = pre_gates.reshape(T, B, 4 * R)
    h = jnp.zeros((B, R), jnp.float32)
    c = jnp.zeros((B, R), jnp.float32)
    hs = []
    for t in range(T):
        h, c = _lstm_step(pre_gates[t], h, c, P["lstm_whh"], R)
        hs.append(h)
    h_all = jnp.stack(hs, axis=0).reshape(T * B, R)
    out = _head(pre_z, h_all, P, out_dim).reshape(T, B, 2 * out_dim)
    return out[..., :out_dim], out[..., out_dim:]


if __name__ == "__main__":
    # Small shapes consistent with the module:
    #   x: (seq=8, batch=8, in_features=16); hidden_features=32, rnn_hidden_features=32,
    #   hidden_layers=1; dist_config = one 'normal' component with dim=8 -> out_features=16.
    T, B, F = 8, 8, 16
    H, R = 32, 32
    DIM = 8
    OUT = 2 * DIM

    key = jax.random.PRNGKey(0)
    kx, kp = jax.random.split(key)
    x = jax.random.normal(kx, (T, B, F), jnp.float32)
    params = init_params(kp, F, H, R, OUT)
    packed = pack_params(params)

    mu, std = recurrent_res_transition_forward(x, packed, rnn_hidden=R, out_dim=DIM)
    mu = jax.block_until_ready(mu)
    std = jax.block_until_ready(std)

    mu_ref, std_ref = reference_forward(x, packed, rnn_hidden=R, out_dim=DIM)
    mu_ref = jax.block_until_ready(mu_ref)
    std_ref = jax.block_until_ready(std_ref)

    assert mu.shape == (T, B, DIM) and std.shape == (T, B, DIM)
    assert bool(jnp.all(jnp.isfinite(mu))) and bool(jnp.all(jnp.isfinite(std)))
    assert bool(jnp.allclose(mu, mu_ref, atol=5e-3, rtol=5e-3))
    assert bool(jnp.allclose(std, std_ref, atol=5e-3, rtol=5e-3))

    print("KERNEL_OK")
</pallas_src>

<mosaic_0001>
module attributes {stable_mosaic.version = 11 : i64} {
  func.func @_kernel(%arg0: i32, %arg1: i32, %arg2: memref<8x8x16xbf16, #tpu.memory_space<vmem>>, %arg3: memref<20x32xf32, #tpu.memory_space<vmem>>, %arg4: memref<1x128xf32, #tpu.memory_space<vmem>>, %arg5: memref<1x16xf32, #tpu.memory_space<vmem>>, %arg6: memref<16x32xbf16, #tpu.memory_space<vmem>>, %arg7: memref<5x32x32xbf16, #tpu.memory_space<vmem>>, %arg8: memref<32x128xbf16, #tpu.memory_space<vmem>>, %arg9: memref<32x128xbf16, #tpu.memory_space<vmem>>, %arg10: memref<32x32xbf16, #tpu.memory_space<vmem>>, %arg11: memref<32x16xbf16, #tpu.memory_space<vmem>>, %arg12: memref<8x128xf32, #tpu.memory_space<vmem>>, %arg13: memref<8x32xf32, #tpu.memory_space<vmem>>, %arg14: memref<8x32xf32, #tpu.memory_space<vmem>>, %arg15: memref<8x8x128xf32, #tpu.memory_space<vmem>>, %arg16: memref<8x8x32xf32, #tpu.memory_space<vmem>>, %arg17: memref<8x8x32xf32, #tpu.memory_space<vmem>>, %arg18: memref<8x8x16xf32, #tpu.memory_space<vmem>>) attributes {dimension_semantics = [#tpu.dimension_semantics<parallel>, #tpu.dimension_semantics<arbitrary>], iteration_bounds = array<i64: 1, 1>, scalar_prefetch = 0 : i64, scratch_operands = 6 : i64, tpu.core_type = #tpu.core_type<tc>, window_params = [{transform_indices = @transform_0, window_bounds = array<i64: 8, 8, 16>}, {pipeline_mode = #tpu.pipeline_mode<synchronous>, transform_indices = @transform_1, window_bounds = array<i64: 20, 32>}, {pipeline_mode = #tpu.pipeline_mode<synchronous>, transform_indices = @transform_2, window_bounds = array<i64: 1, 128>}, {pipeline_mode = #tpu.pipeline_mode<synchronous>, transform_indices = @transform_3, window_bounds = array<i64: 1, 16>}, {pipeline_mode = #tpu.pipeline_mode<synchronous>, transform_indices = @transform_4, window_bounds = array<i64: 16, 32>}, {pipeline_mode = #tpu.pipeline_mode<synchronous>, transform_indices = @transform_5, window_bounds = array<i64: 5, 32, 32>}, {pipeline_mode = #tpu.pipeline_mode<synchronous>, transform_indices = @transform_6, window_bounds = array<i64: 32, 128>}, {pipeline_mode = #tpu.pipeline_mode<synchronous>, transform_indices = @transform_7, window_bounds = array<i64: 32, 128>}, {pipeline_mode = #tpu.pipeline_mode<synchronous>, transform_indices = @transform_8, window_bounds = array<i64: 32, 32>}, {pipeline_mode = #tpu.pipeline_mode<synchronous>, transform_indices = @transform_9, window_bounds = array<i64: 32, 16>}, {transform_indices = @transform_10, window_bounds = array<i64: 8, 128>}]} {
    %c0_i32 = arith.constant 0 : i32
    %0 = arith.cmpi eq, %arg1, %c0_i32 : i32
    %1 = arith.extui %0 : i1 to i32
    %c0_i32_0 = arith.constant 0 : i32
    %2 = arith.cmpi ne, %1, %c0_i32_0 : i32
    scf.if %2 {
      %cst_213 = arith.constant 0.000000e+00 : f32
      %490 = vector.broadcast %cst_213 : f32 to vector<8x32xf32>
      %c0_214 = arith.constant 0 : index
      %c0_215 = arith.constant 0 : index
      %491 = vector.load %arg13[%c0_214, %c0_215] : memref<8x32xf32, #tpu.memory_space<vmem>>, vector<8x32xf32>
      tpu.vector_store %arg13[%c0_214, %c0_215], %490 {strides = array<i32>} : memref<8x32xf32, #tpu.memory_space<vmem>>, vector<8x32xf32>,
      %cst_216 = arith.constant 0.000000e+00 : f32
      %492 = vector.broadcast %cst_216 : f32 to vector<8x32xf32>
      %c0_217 = arith.constant 0 : index
      %c0_218 = arith.constant 0 : index
      %493 = vector.load %arg14[%c0_217, %c0_218] : memref<8x32xf32, #tpu.memory_space<vmem>>, vector<8x32xf32>
      tpu.vector_store %arg14[%c0_217, %c0_218], %492 {strides = array<i32>} : memref<8x32xf32, #tpu.memory_space<vmem>>, vector<8x32xf32>,
    } else {
    }
    %c0 = arith.constant 0 : index
    %c0_1 = arith.constant 0 : index
    %3 = vector.load %arg4[%c0, %c0_1] : memref<1x128xf32, #tpu.memory_space<vmem>>, vector<1x128xf32>
    %c0_2 = arith.constant 0 : index
    %c0_3 = arith.constant 0 : index
    %4 = vector.load %arg5[%c0_2, %c0_3] : memref<1x16xf32, #tpu.memory_space<vmem>>, vector<1x16xf32>
    %c0_4 = arith.constant 0 : index
    %c0_5 = arith.constant 0 : index
    %5 = vector.load %arg6[%c0_4, %c0_5] : memref<16x32xbf16, #tpu.memory_space<vmem>>, vector<16x32xbf16>
    %c0_6 = arith.constant 0 : index
    %c0_7 = arith.constant 0 : index
    %6 = vector.load %arg8[%c0_6, %c0_7] : memref<32x128xbf16, #tpu.memory_space<vmem>>, vector<32x128xbf16>
    %c0_8 = arith.constant 0 : index
    %c0_9 = arith.constant 0 : index
    %7 = vector.load %arg9[%c0_8, %c0_9] : memref<32x128xbf16, #tpu.memory_space<vmem>>, vector<32x128xbf16>
    %c0_10 = arith.constant 0 : index
    %c0_11 = arith.constant 0 : index
    %8 = vector.load %arg10[%c0_10, %c0_11] : memref<32x32xbf16, #tpu.memory_space<vmem>>, vector<32x32xbf16>
    %c0_12 = arith.constant 0 : index
    %c0_13 = arith.constant 0 : index
    %9 = vector.load %arg11[%c0_12, %c0_13] : memref<32x16xbf16, #tpu.memory_space<vmem>>, vector<32x16xbf16>
    %c0_14 = arith.constant 0 : index
    %c0_15 = arith.constant 0 : index
    %10 = vector.load %arg3[%c0_14, %c0_15] : memref<20x32xf32, #tpu.memory_space<vmem>>, vector<1x32xf32>
    %c1 = arith.constant 1 : index
    %c0_16 = arith.constant 0 : index
    %11 = vector.load %arg3[%c1, %c0_16] : memref<20x32xf32, #tpu.memory_space<vmem>>, vector<1x32xf32>
    %c2 = arith.constant 2 : index
    %c0_17 = arith.constant 0 : index
    %12 = vector.load %arg3[%c2, %c0_17] : memref<20x32xf32, #tpu.memory_space<vmem>>, vector<1x32xf32>
    %c3 = arith.constant 3 : index
    %c0_18 = arith.constant 0 : index
    %13 = vector.load %arg3[%c3, %c0_18] : memref<20x32xf32, #tpu.memory_space<vmem>>, vector<1x32xf32>
    %c4 = arith.constant 4 : index
    %c0_19 = arith.constant 0 : index
    %14 = vector.load %arg3[%c4, %c0_19] : memref<20x32xf32, #tpu.memory_space<vmem>>, vector<1x32xf32>
    %c5 = arith.constant 5 : index
    %c0_20 = arith.constant 0 : index
    %15 = vector.load %arg3[%c5, %c0_20] : memref<20x32xf32, #tpu.memory_space<vmem>>, vector<1x32xf32>
    %c6 = arith.constant 6 : index
    %c0_21 = arith.constant 0 : index
    %16 = vector.load %arg3[%c6, %c0_21] : memref<20x32xf32, #tpu.memory_space<vmem>>, vector<1x32xf32>
    %c7 = arith.constant 7 : index
    %c0_22 = arith.constant 0 : index
    %17 = vector.load %arg3[%c7, %c0_22] : memref<20x32xf32, #tpu.memory_space<vmem>>, vector<1x32xf32>
    %c8 = arith.constant 8 : index
    %c0_23 = arith.constant 0 : index
    %18 = vector.load %arg3[%c8, %c0_23] : memref<20x32xf32, #tpu.memory_space<vmem>>, vector<1x32xf32>
    %c9 = arith.constant 9 : index
    %c0_24 = arith.constant 0 : index
    %19 = vector.load %arg3[%c9, %c0_24] : memref<20x32xf32, #tpu.memory_space<vmem>>, vector<1x32xf32>
    %c10 = arith.constant 10 : index
    %c0_25 = arith.constant 0 : index
    %20 = vector.load %arg3[%c10, %c0_25] : memref<20x32xf32, #tpu.memory_space<vmem>>, vector<1x32xf32>
    %c11 = arith.constant 11 : index
    %c0_26 = arith.constant 0 : index
    %21 = vector.load %arg3[%c11, %c0_26] : memref<20x32xf32, #tpu.memory_space<vmem>>, vector<1x32xf32>
    %c12 = arith.constant 12 : index
    %c0_27 = arith.constant 0 : index
    %22 = vector.load %arg3[%c12, %c0_27] : memref<20x32xf32, #tpu.memory_space<vmem>>, vector<1x32xf32>
    %c13 = arith.constant 13 : index
    %c0_28 = arith.constant 0 : index
    %23 = vector.load %arg3[%c13, %c0_28] : memref<20x32xf32, #tpu.memory_space<vmem>>, vector<1x32xf32>
    %c14 = arith.constant 14 : index
    %c0_29 = arith.constant 0 : index
    %24 = vector.load %arg3[%c14, %c0_29] : memref<20x32xf32, #tpu.memory_space<vmem>>, vector<1x32xf32>
    %c15 = arith.constant 15 : index
    %c0_30 = arith.constant 0 : index
    %25 = vector.load %arg3[%c15, %c0_30] : memref<20x32xf32, #tpu.memory_space<vmem>>, vector<1x32xf32>
    %c16 = arith.constant 16 : index
    %c0_31 = arith.constant 0 : index
    %26 = vector.load %arg3[%c16, %c0_31] : memref<20x32xf32, #tpu.memory_space<vmem>>, vector<1x32xf32>
    %c17 = arith.constant 17 : index
    %c0_32 = arith.constant 0 : index
    %27 = vector.load %arg3[%c17, %c0_32] : memref<20x32xf32, #tpu.memory_space<vmem>>, vector<1x32xf32>
    %c18 = arith.constant 18 : index
    %c0_33 = arith.constant 0 : index
    %28 = vector.load %arg3[%c18, %c0_33] : memref<20x32xf32, #tpu.memory_space<vmem>>, vector<1x32xf32>
    %c19 = arith.constant 19 : index
    %c0_34 = arith.constant 0 : index
    %29 = vector.load %arg3[%c19, %c0_34] : memref<20x32xf32, #tpu.memory_space<vmem>>, vector<1x32xf32>
    %c0_35 = arith.constant 0 : index
    %c0_36 = arith.constant 0 : index
    %c0_37 = arith.constant 0 : index
    %30 = vector.load %arg7[%c0_35, %c0_36, %c0_37] : memref<5x32x32xbf16, #tpu.memory_space<vmem>>, vector<1x32x32xbf16>
    %31 = vector.shape_cast %30 : vector<1x32x32xbf16> to vector<32x32xbf16>
    %c1_38 = arith.constant 1 : index
    %c0_39 = arith.constant 0 : index
    %c0_40 = arith.constant 0 : index
    %32 = vector.load %arg7[%c1_38, %c0_39, %c0_40] : memref<5x32x32xbf16, #tpu.memory_space<vmem>>, vector<1x32x32xbf16>
    %33 = vector.shape_cast %32 : vector<1x32x32xbf16> to vector<32x32xbf16>
    %c2_41 = arith.constant 2 : index
    %c0_42 = arith.constant 0 : index
    %c0_43 = arith.constant 0 : index
    %34 = vector.load %arg7[%c2_41, %c0_42, %c0_43] : memref<5x32x32xbf16, #tpu.memory_space<vmem>>, vector<1x32x32xbf16>
    %35 = vector.shape_cast %34 : vector<1x32x32xbf16> to vector<32x32xbf16>
    %c3_44 = arith.constant 3 : index
    %c0_45 = arith.constant 0 : index
    %c0_46 = arith.constant 0 : index
    %36 = vector.load %arg7[%c3_44, %c0_45, %c0_46] : memref<5x32x32xbf16, #tpu.memory_space<vmem>>, vector<1x32x32xbf16>
    %37 = vector.shape_cast %36 : vector<1x32x32xbf16> to vector<32x32xbf16>
    %c4_47 = arith.constant 4 : index
    %c0_48 = arith.constant 0 : index
    %c0_49 = arith.constant 0 : index
    %38 = vector.load %arg7[%c4_47, %c0_48, %c0_49] : memref<5x32x32xbf16, #tpu.memory_space<vmem>>, vector<1x32x32xbf16>
    %39 = vector.shape_cast %38 : vector<1x32x32xbf16> to vector<32x32xbf16>
    %c0_50 = arith.constant 0 : index
    %c0_51 = arith.constant 0 : index
    %c0_52 = arith.constant 0 : index
    %40 = vector.load %arg2[%c0_50, %c0_51, %c0_52] : memref<8x8x16xbf16, #tpu.memory_space<vmem>>, vector<8x8x16xbf16>
    %41 = vector.shape_cast %40 : vector<8x8x16xbf16> to vector<64x16xbf16>
    %cst = arith.constant dense<0.000000e+00> : vector<64x32xf32>
    %42 = tpu.matmul %41, %5, %cst {dimension_numbers = #tpu.dot_dimension_numbers<[1], [0], [0], [1], [0, 0, 1, 1], [], []>} : vector<64x16xbf16>, vector<16x32xbf16>, vector<64x32xf32> -> vector<64x32xf32>
    %43 = vector.broadcast %10 : vector<1x32xf32> to vector<64x32xf32>
    %44 = arith.addf %42, %43 : vector<64x32xf32>
    %cst_53 = arith.constant 0.000000e+00 : f32
    %45 = vector.broadcast %cst_53 : f32 to vector<64x32xf32>
    %46 = arith.maximumf %44, %45 : vector<64x32xf32>
    %cst_54 = arith.constant dense<0.000000e+00> : vector<64xf32>
    %47 = vector.multi_reduction <add>, %46, %cst_54 [1] : vector<64x32xf32> to vector<64xf32>
    %48 = vector.shape_cast %47 : vector<64xf32> to vector<64x1xf32>
    %cst_55 = arith.constant 3.200000e+01 : f32
    %49 = vector.broadcast %cst_55 : f32 to vector<64x1xf32>
    %50 = arith.divf %48, %49 : vector<64x1xf32>
    %51 = vector.broadcast %50 : vector<64x1xf32> to vector<64x32xf32>
    %52 = arith.subf %46, %51 : vector<64x32xf32>
    %53 = arith.mulf %52, %52 : vector<64x32xf32>
    %cst_56 = arith.constant dense<0.000000e+00> : vector<64xf32>
    %54 = vector.multi_reduction <add>, %53, %cst_56 [1] : vector<64x32xf32> to vector<64xf32>
    %55 = vector.shape_cast %54 : vector<64xf32> to vector<64x1xf32>
    %cst_57 = arith.constant 3.200000e+01 : f32
    %56 = vector.broadcast %cst_57 : f32 to vector<64x1xf32>
    %57 = arith.divf %55, %56 : vector<64x1xf32>
    %cst_58 = arith.constant 9.99999974E-6 : f32
    %58 = vector.broadcast %cst_58 : f32 to vector<64x1xf32>
    %59 = arith.addf %57, %58 : vector<64x1xf32>
    %60 = math.rsqrt %59 : vector<64x1xf32>
    %61 = vector.broadcast %60 : vector<64x1xf32> to vector<64x32xf32>
    %62 = arith.mulf %52, %61 : vector<64x32xf32>
    %63 = vector.broadcast %11 : vector<1x32xf32> to vector<64x32xf32>
    %64 = arith.mulf %62, %63 : vector<64x32xf32>
    %65 = vector.broadcast %12 : vector<1x32xf32> to vector<64x32xf32>
    %66 = arith.addf %64, %65 : vector<64x32xf32>
    %67 = arith.truncf %66 : vector<64x32xf32> to vector<64x32xbf16>
    %cst_59 = arith.constant dense<0.000000e+00> : vector<64x32xf32>
    %68 = tpu.matmul %67, %31, %cst_59 {dimension_numbers = #tpu.dot_dimension_numbers<[1], [0], [0], [1], [0, 0, 1, 1], [], []>} : vector<64x32xbf16>, vector<32x32xbf16>, vector<64x32xf32> -> vector<64x32xf32>
    %69 = vector.broadcast %13 : vector<1x32xf32> to vector<64x32xf32>
    %70 = arith.addf %68, %69 : vector<64x32xf32>
    %cst_60 = arith.constant dense<0.000000e+00> : vector<64xf32>
    %71 = vector.multi_reduction <add>, %70, %cst_60 [1] : vector<64x32xf32> to vector<64xf32>
    %72 = vector.shape_cast %71 : vector<64xf32> to vector<64x1xf32>
    %cst_61 = arith.constant 3.200000e+01 : f32
    %73 = vector.broadcast %cst_61 : f32 to vector<64x1xf32>
    %74 = arith.divf %72, %73 : vector<64x1xf32>
    %75 = vector.broadcast %74 : vector<64x1xf32> to vector<64x32xf32>
    %76 = arith.subf %70, %75 : vector<64x32xf32>
    %77 = arith.mulf %76, %76 : vector<64x32xf32>
    %cst_62 = arith.constant dense<0.000000e+00> : vector<64xf32>
    %78 = vector.multi_reduction <add>, %77, %cst_62 [1] : vector<64x32xf32> to vector<64xf32>
    %79 = vector.shape_cast %78 : vector<64xf32> to vector<64x1xf32>
    %cst_63 = arith.constant 3.200000e+01 : f32
    %80 = vector.broadcast %cst_63 : f32 to vector<64x1xf32>
    %81 = arith.divf %79, %80 : vector<64x1xf32>
    %cst_64 = arith.constant 9.99999974E-6 : f32
    %82 = vector.broadcast %cst_64 : f32 to vector<64x1xf32>
    %83 = arith.addf %81, %82 : vector<64x1xf32>
    %84 = math.rsqrt %83 : vector<64x1xf32>
    %85 = vector.broadcast %84 : vector<64x1xf32> to vector<64x32xf32>
    %86 = arith.mulf %76, %85 : vector<64x32xf32>
    %87 = vector.broadcast %14 : vector<1x32xf32> to vector<64x32xf32>
    %88 = arith.mulf %86, %87 : vector<64x32xf32>
    %89 = vector.broadcast %15 : vector<1x32xf32> to vector<64x32xf32>
    %90 = arith.addf %88, %89 : vector<64x32xf32>
    %cst_65 = arith.constant 0.000000e+00 : f32
    %91 = vector.broadcast %cst_65 : f32 to vector<64x32xf32>
    %92 = arith.maximumf %90, %91 : vector<64x32xf32>
    %93 = arith.truncf %92 : vector<64x32xf32> to vector<64x32xbf16>
    %cst_66 = arith.constant dense<0.000000e+00> : vector<64x32xf32>
    %94 = tpu.matmul %93, %33, %cst_66 {dimension_numbers = #tpu.dot_dimension_numbers<[1], [0], [0], [1], [0, 0, 1, 1], [], []>} : vector<64x32xbf16>, vector<32x32xbf16>, vector<64x32xf32> -> vector<64x32xf32>
    %95 = vector.broadcast %16 : vector<1x32xf32> to vector<64x32xf32>
    %96 = arith.addf %94, %95 : vector<64x32xf32>
    %cst_67 = arith.constant dense<0.000000e+00> : vector<64xf32>
    %97 = vector.multi_reduction <add>, %96, %cst_67 [1] : vector<64x32xf32> to vector<64xf32>
    %98 = vector.shape_cast %97 : vector<64xf32> to vector<64x1xf32>
    %cst_68 = arith.constant 3.200000e+01 : f32
    %99 = vector.broadcast %cst_68 : f32 to vector<64x1xf32>
    %100 = arith.divf %98, %99 : vector<64x1xf32>
    %101 = vector.broadcast %100 : vector<64x1xf32> to vector<64x32xf32>
    %102 = arith.subf %96, %101 : vector<64x32xf32>
    %103 = arith.mulf %102, %102 : vector<64x32xf32>
    %cst_69 = arith.constant dense<0.000000e+00> : vector<64xf32>
    %104 = vector.multi_reduction <add>, %103, %cst_69 [1] : vector<64x32xf32> to vector<64xf32>
    %105 = vector.shape_cast %104 : vector<64xf32> to vector<64x1xf32>
    %cst_70 = arith.constant 3.200000e+01 : f32
    %106 = vector.broadcast %cst_70 : f32 to vector<64x1xf32>
    %107 = arith.divf %105, %106 : vector<64x1xf32>
    %cst_71 = arith.constant 9.99999974E-6 : f32
    %108 = vector.broadcast %cst_71 : f32 to vector<64x1xf32>
    %109 = arith.addf %107, %108 : vector<64x1xf32>
    %110 = math.rsqrt %109 : vector<64x1xf32>
    %111 = vector.broadcast %110 : vector<64x1xf32> to vector<64x32xf32>
    %112 = arith.mulf %102, %111 : vector<64x32xf32>
    %113 = vector.broadcast %17 : vector<1x32xf32> to vector<64x32xf32>
    %114 = arith.mulf %112, %113 : vector<64x32xf32>
    %115 = vector.broadcast %18 : vector<1x32xf32> to vector<64x32xf32>
    %116 = arith.addf %114, %115 : vector<64x32xf32>
    %cst_72 = arith.constant 0.000000e+00 : f32
    %117 = vector.broadcast %cst_72 : f32 to vector<64x32xf32>
    %118 = arith.maximumf %116, %117 : vector<64x32xf32>
    %119 = arith.addf %118, %66 : vector<64x32xf32>
    %cst_73 = arith.constant dense<0.000000e+00> : vector<64xf32>
    %120 = vector.multi_reduction <add>, %119, %cst_73 [1] : vector<64x32xf32> to vector<64xf32>
    %121 = vector.shape_cast %120 : vector<64xf32> to vector<64x1xf32>
    %cst_74 = arith.constant 3.200000e+01 : f32
    %122 = vector.broadcast %cst_74 : f32 to vector<64x1xf32>
    %123 = arith.divf %121, %122 : vector<64x1xf32>
    %124 = vector.broadcast %123 : vector<64x1xf32> to vector<64x32xf32>
    %125 = arith.subf %119, %124 : vector<64x32xf32>
    %126 = arith.mulf %125, %125 : vector<64x32xf32>
    %cst_75 = arith.constant dense<0.000000e+00> : vector<64xf32>
    %127 = vector.multi_reduction <add>, %126, %cst_75 [1] : vector<64x32xf32> to vector<64xf32>
    %128 = vector.shape_cast %127 : vector<64xf32> to vector<64x1xf32>
    %cst_76 = arith.constant 3.200000e+01 : f32
    %129 = vector.broadcast %cst_76 : f32 to vector<64x1xf32>
    %130 = arith.divf %128, %129 : vector<64x1xf32>
    %cst_77 = arith.constant 9.99999974E-6 : f32
    %131 = vector.broadcast %cst_77 : f32 to vector<64x1xf32>
    %132 = arith.addf %130, %131 : vector<64x1xf32>
    %133 = math.rsqrt %132 : vector<64x1xf32>
    %134 = vector.broadcast %133 : vector<64x1xf32> to vector<64x32xf32>
    %135 = arith.mulf %125, %134 : vector<64x32xf32>
    %136 = vector.broadcast %19 : vector<1x32xf32> to vector<64x32xf32>
    %137 = arith.mulf %135, %136 : vector<64x32xf32>
    %138 = vector.broadcast %20 : vector<1x32xf32> to vector<64x32xf32>
    %139 = arith.addf %137, %138 : vector<64x32xf32>
    %140 = arith.truncf %139 : vector<64x32xf32> to vector<64x32xbf16>
    %cst_78 = arith.constant dense<0.000000e+00> : vector<64x32xf32>
    %141 = tpu.matmul %140, %35, %cst_78 {dimension_numbers = #tpu.dot_dimension_numbers<[1], [0], [0], [1], [0, 0, 1, 1], [], []>} : vector<64x32xbf16>, vector<32x32xbf16>, vector<64x32xf32> -> vector<64x32xf32>
    %142 = vector.broadcast %21 : vector<1x32xf32> to vector<64x32xf32>
    %143 = arith.addf %141, %142 : vector<64x32xf32>
    %cst_79 = arith.constant dense<0.000000e+00> : vector<64xf32>
    %144 = vector.multi_reduction <add>, %143, %cst_79 [1] : vector<64x32xf32> to vector<64xf32>
    %145 = vector.shape_cast %144 : vector<64xf32> to vector<64x1xf32>
    %cst_80 = arith.constant 3.200000e+01 : f32
    %146 = vector.broadcast %cst_80 : f32 to vector<64x1xf32>
    %147 = arith.divf %145, %146 : vector<64x1xf32>
    %148 = vector.broadcast %147 : vector<64x1xf32> to vector<64x32xf32>
    %149 = arith.subf %143, %148 : vector<64x32xf32>
    %150 = arith.mulf %149, %149 : vector<64x32xf32>
    %cst_81 = arith.constant dense<0.000000e+00> : vector<64xf32>
    %151 = vector.multi_reduction <add>, %150, %cst_81 [1] : vector<64x32xf32> to vector<64xf32>
    %152 = vector.shape_cast %151 : vector<64xf32> to vector<64x1xf32>
    %cst_82 = arith.constant 3.200000e+01 : f32
    %153 = vector.broadcast %cst_82 : f32 to vector<64x1xf32>
    %154 = arith.divf %152, %153 : vector<64x1xf32>
    %cst_83 = arith.constant 9.99999974E-6 : f32
    %155 = vector.broadcast %cst_83 : f32 to vector<64x1xf32>
    %156 = arith.addf %154, %155 : vector<64x1xf32>
    %157 = math.rsqrt %156 : vector<64x1xf32>
    %158 = vector.broadcast %157 : vector<64x1xf32> to vector<64x32xf32>
    %159 = arith.mulf %149, %158 : vector<64x32xf32>
    %160 = vector.broadcast %22 : vector<1x32xf32> to vector<64x32xf32>
    %161 = arith.mulf %159, %160 : vector<64x32xf32>
    %162 = vector.broadcast %23 : vector<1x32xf32> to vector<64x32xf32>
    %163 = arith.addf %161, %162 : vector<64x32xf32>
    %cst_84 = arith.constant 0.000000e+00 : f32
    %164 = vector.broadcast %cst_84 : f32 to vector<64x32xf32>
    %165 = arith.maximumf %163, %164 : vector<64x32xf32>
    %166 = arith.truncf %165 : vector<64x32xf32> to vector<64x32xbf16>
    %cst_85 = arith.constant dense<0.000000e+00> : vector<64x32xf32>
    %167 = tpu.matmul %166, %37, %cst_85 {dimension_numbers = #tpu.dot_dimension_numbers<[1], [0], [0], [1], [0, 0, 1, 1], [], []>} : vector<64x32xbf16>, vector<32x32xbf16>, vector<64x32xf32> -> vector<64x32xf32>
    %168 = vector.broadcast %24 : vector<1x32xf32> to vector<64x32xf32>
    %169 = arith.addf %167, %168 : vector<64x32xf32>
    %cst_86 = arith.constant dense<0.000000e+00> : vector<64xf32>
    %170 = vector.multi_reduction <add>, %169, %cst_86 [1] : vector<64x32xf32> to vector<64xf32>
    %171 = vector.shape_cast %170 : vector<64xf32> to vector<64x1xf32>
    %cst_87 = arith.constant 3.200000e+01 : f32
    %172 = vector.broadcast %cst_87 : f32 to vector<64x1xf32>
    %173 = arith.divf %171, %172 : vector<64x1xf32>
    %174 = vector.broadcast %173 : vector<64x1xf32> to vector<64x32xf32>
    %175 = arith.subf %169, %174 : vector<64x32xf32>
    %176 = arith.mulf %175, %175 : vector<64x32xf32>
    %cst_88 = arith.constant dense<0.000000e+00> : vector<64xf32>
    %177 = vector.multi_reduction <add>, %176, %cst_88 [1] : vector<64x32xf32> to vector<64xf32>
    %178 = vector.shape_cast %177 : vector<64xf32> to vector<64x1xf32>
    %cst_89 = arith.constant 3.200000e+01 : f32
    %179 = vector.broadcast %cst_89 : f32 to vector<64x1xf32>
    %180 = arith.divf %178, %179 : vector<64x1xf32>
    %cst_90 = arith.constant 9.99999974E-6 : f32
    %181 = vector.broadcast %cst_90 : f32 to vector<64x1xf32>
    %182 = arith.addf %180, %181 : vector<64x1xf32>
    %183 = math.rsqrt %182 : vector<64x1xf32>
    %184 = vector.broadcast %183 : vector<64x1xf32> to vector<64x32xf32>
    %185 = arith.mulf %175, %184 : vector<64x32xf32>
    %186 = vector.broadcast %25 : vector<1x32xf32> to vector<64x32xf32>
    %187 = arith.mulf %185, %186 : vector<64x32xf32>
    %188 = vector.broadcast %26 : vector<1x32xf32> to vector<64x32xf32>
    %189 = arith.addf %187, %188 : vector<64x32xf32>
    %cst_91 = arith.constant 0.000000e+00 : f32
    %190 = vector.broadcast %cst_91 : f32 to vector<64x32xf32>
    %191 = arith.maximumf %189, %190 : vector<64x32xf32>
    %192 = arith.addf %191, %139 : vector<64x32xf32>
    %cst_92 = arith.constant dense<0.000000e+00> : vector<64xf32>
    %193 = vector.multi_reduction <add>, %192, %cst_92 [1] : vector<64x32xf32> to vector<64xf32>
    %194 = vector.shape_cast %193 : vector<64xf32> to vector<64x1xf32>
    %cst_93 = arith.constant 3.200000e+01 : f32
    %195 = vector.broadcast %cst_93 : f32 to vector<64x1xf32>
    %196 = arith.divf %194, %195 : vector<64x1xf32>
    %197 = vector.broadcast %196 : vector<64x1xf32> to vector<64x32xf32>
    %198 = arith.subf %192, %197 : vector<64x32xf32>
    %199 = arith.mulf %198, %198 : vector<64x32xf32>
    %cst_94 = arith.constant dense<0.000000e+00> : vector<64xf32>
    %200 = vector.multi_reduction <add>, %199, %cst_94 [1] : vector<64x32xf32> to vector<64xf32>
    %201 = vector.shape_cast %200 : vector<64xf32> to vector<64x1xf32>
    %cst_95 = arith.constant 3.200000e+01 : f32
    %202 = vector.broadcast %cst_95 : f32 to vector<64x1xf32>
    %203 = arith.divf %201, %202 : vector<64x1xf32>
    %cst_96 = arith.constant 9.99999974E-6 : f32
    %204 = vector.broadcast %cst_96 : f32 to vector<64x1xf32>
    %205 = arith.addf %203, %204 : vector<64x1xf32>
    %206 = math.rsqrt %205 : vector<64x1xf32>
    %207 = vector.broadcast %206 : vector<64x1xf32> to vector<64x32xf32>
    %208 = arith.mulf %198, %207 : vector<64x32xf32>
    %209 = vector.broadcast %27 : vector<1x32xf32> to vector<64x32xf32>
    %210 = arith.mulf %208, %209 : vector<64x32xf32>
    %211 = vector.broadcast %28 : vector<1x32xf32> to vector<64x32xf32>
    %212 = arith.addf %210, %211 : vector<64x32xf32>
    %213 = arith.truncf %66 : vector<64x32xf32> to vector<64x32xbf16>
    %cst_97 = arith.constant dense<0.000000e+00> : vector<64x128xf32>
    %214 = tpu.matmul %213, %6, %cst_97 {dimension_numbers = #tpu.dot_dimension_numbers<[1], [0], [0], [1], [0, 0, 1, 1], [], []>} : vector<64x32xbf16>, vector<32x128xbf16>, vector<64x128xf32> -> vector<64x128xf32>
    %215 = vector.broadcast %3 : vector<1x128xf32> to vector<64x128xf32>
    %216 = arith.addf %214, %215 : vector<64x128xf32>
    %217 = arith.truncf %212 : vector<64x32xf32> to vector<64x32xbf16>
    %cst_98 = arith.constant dense<0.000000e+00> : vector<64x32xf32>
    %218 = tpu.matmul %217, %39, %cst_98 {dimension_numbers = #tpu.dot_dimension_numbers<[1], [0], [0], [1], [0, 0, 1, 1], [], []>} : vector<64x32xbf16>, vector<32x32xbf16>, vector<64x32xf32> -> vector<64x32xf32>
    %219 = vector.broadcast %29 : vector<1x32xf32> to vector<64x32xf32>
    %220 = arith.addf %218, %219 : vector<64x32xf32>
    %221 = vector.shape_cast %216 : vector<64x128xf32> to vector<8x8x128xf32>
    %c0_99 = arith.constant 0 : index
    %c0_100 = arith.constant 0 : index
    %c0_101 = arith.constant 0 : index
    %222 = vector.load %arg15[%c0_99, %c0_100, %c0_101] : memref<8x8x128xf32, #tpu.memory_space<vmem>>, vector<8x8x128xf32>
    tpu.vector_store %arg15[%c0_99, %c0_100, %c0_101], %221 {strides = array<i32>} : memref<8x8x128xf32, #tpu.memory_space<vmem>>, vector<8x8x128xf32>,
    %223 = vector.shape_cast %220 : vector<64x32xf32> to vector<8x8x32xf32>
    %c0_102 = arith.constant 0 : index
    %c0_103 = arith.constant 0 : index
    %c0_104 = arith.constant 0 : index
    %224 = vector.load %arg17[%c0_102, %c0_103, %c0_104] : memref<8x8x32xf32, #tpu.memory_space<vmem>>, vector<8x8x32xf32>
    tpu.vector_store %arg17[%c0_102, %c0_103, %c0_104], %223 {strides = array<i32>} : memref<8x8x32xf32, #tpu.memory_space<vmem>>, vector<8x8x32xf32>,
    %c0_105 = arith.constant 0 : index
    %c0_106 = arith.constant 0 : index
    %225 = vector.load %arg13[%c0_105, %c0_106] : memref<8x32xf32, #tpu.memory_space<vmem>>, vector<8x32xf32>
    %c0_107 = arith.constant 0 : index
    %c0_108 = arith.constant 0 : index
    %226 = vector.load %arg14[%c0_107, %c0_108] : memref<8x32xf32, #tpu.memory_space<vmem>>, vector<8x32xf32>
    %c0_i32_109 = arith.constant 0 : i32
    %227 = arith.index_cast %c0_i32_109 : i32 to index
    %c0_110 = arith.constant 0 : index
    %c0_111 = arith.constant 0 : index
    %228 = vector.load %arg15[%227, %c0_110, %c0_111] : memref<8x8x128xf32, #tpu.memory_space<vmem>>, vector<1x8x128xf32>
    %229 = vector.shape_cast %228 : vector<1x8x128xf32> to vector<8x128xf32>
    %230 = arith.truncf %225 : vector<8x32xf32> to vector<8x32xbf16>
    %cst_112 = arith.constant dense<0.000000e+00> : vector<8x128xf32>
    %231 = tpu.matmul %230, %7, %cst_112 {dimension_numbers = #tpu.dot_dimension_numbers<[1], [0], [0], [1], [0, 0, 1, 1], [], []>} : vector<8x32xbf16>, vector<32x128xbf16>, vector<8x128xf32> -> vector<8x128xf32>
    %232 = arith.addf %229, %231 : vector<8x128xf32>
    %233 = vector.extract_strided_slice %232 {offsets = [0, 0], sizes = [8, 96], strides = [1, 1]} : vector<8x128xf32> to vector<8x96xf32>
    %234 = arith.negf %233 : vector<8x96xf32>
    %235 = math.exp %234 : vector<8x96xf32>
    %cst_113 = arith.constant 1.000000e+00 : f32
    %236 = vector.broadcast %cst_113 : f32 to vector<8x96xf32>
    %237 = arith.addf %236, %235 : vector<8x96xf32>
    %238 = arith.divf %236, %237 : vector<8x96xf32>
    %239 = vector.extract_strided_slice %232 {offsets = [0, 96], sizes = [8, 32], strides = [1, 1]} : vector<8x128xf32> to vector<8x32xf32>
    %240 = math.tanh %239 : vector<8x32xf32>
    %241 = vector.extract_strided_slice %238 {offsets = [0, 0], sizes = [8, 32], strides = [1, 1]} : vector<8x96xf32> to vector<8x32xf32>
    %242 = vector.extract_strided_slice %238 {offsets = [0, 32], sizes = [8, 32], strides = [1, 1]} : vector<8x96xf32> to vector<8x32xf32>
    %243 = vector.extract_strided_slice %238 {offsets = [0, 64], sizes = [8, 32], strides = [1, 1]} : vector<8x96xf32> to vector<8x32xf32>
    %244 = arith.mulf %242, %226 : vector<8x32xf32>
    %245 = arith.mulf %241, %240 : vector<8x32xf32>
    %246 = arith.addf %244, %245 : vector<8x32xf32>
    %247 = math.tanh %246 : vector<8x32xf32>
    %248 = arith.mulf %243, %247 : vector<8x32xf32>
    %249 = arith.index_cast %c0_i32_109 : i32 to index
    %c0_114 = arith.constant 0 : index
    %c0_115 = arith.constant 0 : index
    %250 = vector.load %arg16[%249, %c0_114, %c0_115] : memref<8x8x32xf32, #tpu.memory_space<vmem>>, vector<1x8x32xf32>
    %251 = vector.shape_cast %250 : vector<1x8x32xf32> to vector<8x32xf32>
    %252 = vector.shape_cast %248 : vector<8x32xf32> to vector<1x8x32xf32>
    tpu.vector_store %arg16[%249, %c0_114, %c0_115], %252 {strides = array<i32>} : memref<8x8x32xf32, #tpu.memory_space<vmem>>, vector<1x8x32xf32>,
    %c1_i32 = arith.constant 1 : i32
    %253 = arith.index_cast %c1_i32 : i32 to index
    %c0_116 = arith.constant 0 : index
    %c0_117 = arith.constant 0 : index
    %254 = vector.load %arg15[%253, %c0_116, %c0_117] : memref<8x8x128xf32, #tpu.memory_space<vmem>>, vector<1x8x128xf32>
    %255 = vector.shape_cast %254 : vector<1x8x128xf32> to vector<8x128xf32>
    %256 = arith.truncf %248 : vector<8x32xf32> to vector<8x32xbf16>
    %cst_118 = arith.constant dense<0.000000e+00> : vector<8x128xf32>
    %257 = tpu.matmul %256, %7, %cst_118 {dimension_numbers = #tpu.dot_dimension_numbers<[1], [0], [0], [1], [0, 0, 1, 1], [], []>} : vector<8x32xbf16>, vector<32x128xbf16>, vector<8x128xf32> -> vector<8x128xf32>
    %258 = arith.addf %255, %257 : vector<8x128xf32>
    %259 = vector.extract_strided_slice %258 {offsets = [0, 0], sizes = [8, 96], strides = [1, 1]} : vector<8x128xf32> to vector<8x96xf32>
    %260 = arith.negf %259 : vector<8x96xf32>
    %261 = math.exp %260 : vector<8x96xf32>
    %cst_119 = arith.constant 1.000000e+00 : f32
    %262 = vector.broadcast %cst_119 : f32 to vector<8x96xf32>
    %263 = arith.addf %262, %261 : vector<8x96xf32>
    %264 = arith.divf %262, %263 : vector<8x96xf32>
    %265 = vector.extract_strided_slice %258 {offsets = [0, 96], sizes = [8, 32], strides = [1, 1]} : vector<8x128xf32> to vector<8x32xf32>
    %266 = math.tanh %265 : vector<8x32xf32>
    %267 = vector.extract_strided_slice %264 {offsets = [0, 0], sizes = [8, 32], strides = [1, 1]} : vector<8x96xf32> to vector<8x32xf32>
    %268 = vector.extract_strided_slice %264 {offsets = [0, 32], sizes = [8, 32], strides = [1, 1]} : vector<8x96xf32> to vector<8x32xf32>
    %269 = vector.extract_strided_slice %264 {offsets = [0, 64], sizes = [8, 32], strides = [1, 1]} : vector<8x96xf32> to vector<8x32xf32>
    %270 = arith.mulf %268, %246 : vector<8x32xf32>
    %271 = arith.mulf %267, %266 : vector<8x32xf32>
    %272 = arith.addf %270, %271 : vector<8x32xf32>
    %273 = math.tanh %272 : vector<8x32xf32>
    %274 = arith.mulf %269, %273 : vector<8x32xf32>
    %275 = arith.index_cast %c1_i32 : i32 to index
    %c0_120 = arith.constant 0 : index
    %c0_121 = arith.constant 0 : index
    %276 = vector.load %arg16[%275, %c0_120, %c0_121] : memref<8x8x32xf32, #tpu.memory_space<vmem>>, vector<1x8x32xf32>
    %277 = vector.shape_cast %276 : vector<1x8x32xf32> to vector<8x32xf32>
    %278 = vector.shape_cast %274 : vector<8x32xf32> to vector<1x8x32xf32>
    tpu.vector_store %arg16[%275, %c0_120, %c0_121], %278 {strides = array<i32>} : memref<8x8x32xf32, #tpu.memory_space<vmem>>, vector<1x8x32xf32>,
    %c2_i32 = arith.constant 2 : i32
    %279 = arith.index_cast %c2_i32 : i32 to index
    %c0_122 = arith.constant 0 : index
    %c0_123 = arith.constant 0 : index
    %280 = vector.load %arg15[%279, %c0_122, %c0_123] : memref<8x8x128xf32, #tpu.memory_space<vmem>>, vector<1x8x128xf32>
    %281 = vector.shape_cast %280 : vector<1x8x128xf32> to vector<8x128xf32>
    %282 = arith.truncf %274 : vector<8x32xf32> to vector<8x32xbf16>
    %cst_124 = arith.constant dense<0.000000e+00> : vector<8x128xf32>
    %283 = tpu.matmul %282, %7, %cst_124 {dimension_numbers = #tpu.dot_dimension_numbers<[1], [0], [0], [1], [0, 0, 1, 1], [], []>} : vector<8x32xbf16>, vector<32x128xbf16>, vector<8x128xf32> -> vector<8x128xf32>
    %284 = arith.addf %281, %283 : vector<8x128xf32>
    %285 = vector.extract_strided_slice %284 {offsets = [0, 0], sizes = [8, 96], strides = [1, 1]} : vector<8x128xf32> to vector<8x96xf32>
    %286 = arith.negf %285 : vector<8x96xf32>
    %287 = math.exp %286 : vector<8x96xf32>
    %cst_125 = arith.constant 1.000000e+00 : f32
    %288 = vector.broadcast %cst_125 : f32 to vector<8x96xf32>
    %289 = arith.addf %288, %287 : vector<8x96xf32>
    %290 = arith.divf %288, %289 : vector<8x96xf32>
    %291 = vector.extract_strided_slice %284 {offsets = [0, 96], sizes = [8, 32], strides = [1, 1]} : vector<8x128xf32> to vector<8x32xf32>
    %292 = math.tanh %291 : vector<8x32xf32>
    %293 = vector.extract_strided_slice %290 {offsets = [0, 0], sizes = [8, 32], strides = [1, 1]} : vector<8x96xf32> to vector<8x32xf32>
    %294 = vector.extract_strided_slice %290 {offsets = [0, 32], sizes = [8, 32], strides = [1, 1]} : vector<8x96xf32> to vector<8x32xf32>
    %295 = vector.extract_strided_slice %290 {offsets = [0, 64], sizes = [8, 32], strides = [1, 1]} : vector<8x96xf32> to vector<8x32xf32>
    %296 = arith.mulf %294, %272 : vector<8x32xf32>
    %297 = arith.mulf %293, %292 : vector<8x32xf32>
    %298 = arith.addf %296, %297 : vector<8x32xf32>
    %299 = math.tanh %298 : vector<8x32xf32>
    %300 = arith.mulf %295, %299 : vector<8x32xf32>
    %301 = arith.index_cast %c2_i32 : i32 to index
    %c0_126 = arith.constant 0 : index
    %c0_127 = arith.constant 0 : index
    %302 = vector.load %arg16[%301, %c0_126, %c0_127] : memref<8x8x32xf32, #tpu.memory_space<vmem>>, vector<1x8x32xf32>
    %303 = vector.shape_cast %302 : vector<1x8x32xf32> to vector<8x32xf32>
    %304 = vector.shape_cast %300 : vector<8x32xf32> to vector<1x8x32xf32>
    tpu.vector_store %arg16[%301, %c0_126, %c0_127], %304 {strides = array<i32>} : memref<8x8x32xf32, #tpu.memory_space<vmem>>, vector<1x8x32xf32>,
    %c3_i32 = arith.constant 3 : i32
    %305 = arith.index_cast %c3_i32 : i32 to index
    %c0_128 = arith.constant 0 : index
    %c0_129 = arith.constant 0 : index
    %306 = vector.load %arg15[%305, %c0_128, %c0_129] : memref<8x8x128xf32, #tpu.memory_space<vmem>>, vector<1x8x128xf32>
    %307 = vector.shape_cast %306 : vector<1x8x128xf32> to vector<8x128xf32>
    %308 = arith.truncf %300 : vector<8x32xf32> to vector<8x32xbf16>
    %cst_130 = arith.constant dense<0.000000e+00> : vector<8x128xf32>
    %309 = tpu.matmul %308, %7, %cst_130 {dimension_numbers = #tpu.dot_dimension_numbers<[1], [0], [0], [1], [0, 0, 1, 1], [], []>} : vector<8x32xbf16>, vector<32x128xbf16>, vector<8x128xf32> -> vector<8x128xf32>
    %310 = arith.addf %307, %309 : vector<8x128xf32>
    %311 = vector.extract_strided_slice %310 {offsets = [0, 0], sizes = [8, 96], strides = [1, 1]} : vector<8x128xf32> to vector<8x96xf32>
    %312 = arith.negf %311 : vector<8x96xf32>
    %313 = math.exp %312 : vector<8x96xf32>
    %cst_131 = arith.constant 1.000000e+00 : f32
    %314 = vector.broadcast %cst_131 : f32 to vector<8x96xf32>
    %315 = arith.addf %314, %313 : vector<8x96xf32>
    %316 = arith.divf %314, %315 : vector<8x96xf32>
    %317 = vector.extract_strided_slice %310 {offsets = [0, 96], sizes = [8, 32], strides = [1, 1]} : vector<8x128xf32> to vector<8x32xf32>
    %318 = math.tanh %317 : vector<8x32xf32>
    %319 = vector.extract_strided_slice %316 {offsets = [0, 0], sizes = [8, 32], strides = [1, 1]} : vector<8x96xf32> to vector<8x32xf32>
    %320 = vector.extract_strided_slice %316 {offsets = [0, 32], sizes = [8, 32], strides = [1, 1]} : vector<8x96xf32> to vector<8x32xf32>
    %321 = vector.extract_strided_slice %316 {offsets = [0, 64], sizes = [8, 32], strides = [1, 1]} : vector<8x96xf32> to vector<8x32xf32>
    %322 = arith.mulf %320, %298 : vector<8x32xf32>
    %323 = arith.mulf %319, %318 : vector<8x32xf32>
    %324 = arith.addf %322, %323 : vector<8x32xf32>
    %325 = math.tanh %324 : vector<8x32xf32>
    %326 = arith.mulf %321, %325 : vector<8x32xf32>
    %327 = arith.index_cast %c3_i32 : i32 to index
    %c0_132 = arith.constant 0 : index
    %c0_133 = arith.constant 0 : index
    %328 = vector.load %arg16[%327, %c0_132, %c0_133] : memref<8x8x32xf32, #tpu.memory_space<vmem>>, vector<1x8x32xf32>
    %329 = vector.shape_cast %328 : vector<1x8x32xf32> to vector<8x32xf32>
    %330 = vector.shape_cast %326 : vector<8x32xf32> to vector<1x8x32xf32>
    tpu.vector_store %arg16[%327, %c0_132, %c0_133], %330 {strides = array<i32>} : memref<8x8x32xf32, #tpu.memory_space<vmem>>, vector<1x8x32xf32>,
    %c4_i32 = arith.constant 4 : i32
    %331 = arith.index_cast %c4_i32 : i32 to index
    %c0_134 = arith.constant 0 : index
    %c0_135 = arith.constant 0 : index
    %332 = vector.load %arg15[%331, %c0_134, %c0_135] : memref<8x8x128xf32, #tpu.memory_space<vmem>>, vector<1x8x128xf32>
    %333 = vector.shape_cast %332 : vector<1x8x128xf32> to vector<8x128xf32>
    %334 = arith.truncf %326 : vector<8x32xf32> to vector<8x32xbf16>
    %cst_136 = arith.constant dense<0.000000e+00> : vector<8x128xf32>
    %335 = tpu.matmul %334, %7, %cst_136 {dimension_numbers = #tpu.dot_dimension_numbers<[1], [0], [0], [1], [0, 0, 1, 1], [], []>} : vector<8x32xbf16>, vector<32x128xbf16>, vector<8x128xf32> -> vector<8x128xf32>
    %336 = arith.addf %333, %335 : vector<8x128xf32>
    %337 = vector.extract_strided_slice %336 {offsets = [0, 0], sizes = [8, 96], strides = [1, 1]} : vector<8x128xf32> to vector<8x96xf32>
    %338 = arith.negf %337 : vector<8x96xf32>
    %339 = math.exp %338 : vector<8x96xf32>
    %cst_137 = arith.constant 1.000000e+00 : f32
    %340 = vector.broadcast %cst_137 : f32 to vector<8x96xf32>
    %341 = arith.addf %340, %339 : vector<8x96xf32>
    %342 = arith.divf %340, %341 : vector<8x96xf32>
    %343 = vector.extract_strided_slice %336 {offsets = [0, 96], sizes = [8, 32], strides = [1, 1]} : vector<8x128xf32> to vector<8x32xf32>
    %344 = math.tanh %343 : vector<8x32xf32>
    %345 = vector.extract_strided_slice %342 {offsets = [0, 0], sizes = [8, 32], strides = [1, 1]} : vector<8x96xf32> to vector<8x32xf32>
    %346 = vector.extract_strided_slice %342 {offsets = [0, 32], sizes = [8, 32], strides = [1, 1]} : vector<8x96xf32> to vector<8x32xf32>
    %347 = vector.extract_strided_slice %342 {offsets = [0, 64], sizes = [8, 32], strides = [1, 1]} : vector<8x96xf32> to vector<8x32xf32>
    %348 = arith.mulf %346, %324 : vector<8x32xf32>
    %349 = arith.mulf %345, %344 : vector<8x32xf32>
    %350 = arith.addf %348, %349 : vector<8x32xf32>
    %351 = math.tanh %350 : vector<8x32xf32>
    %352 = arith.mulf %347, %351 : vector<8x32xf32>
    %353 = arith.index_cast %c4_i32 : i32 to index
    %c0_138 = arith.constant 0 : index
    %c0_139 = arith.constant 0 : index
    %354 = vector.load %arg16[%353, %c0_138, %c0_139] : memref<8x8x32xf32, #tpu.memory_space<vmem>>, vector<1x8x32xf32>
    %355 = vector.shape_cast %354 : vector<1x8x32xf32> to vector<8x32xf32>
    %356 = vector.shape_cast %352 : vector<8x32xf32> to vector<1x8x32xf32>
    tpu.vector_store %arg16[%353, %c0_138, %c0_139], %356 {strides = array<i32>} : memref<8x8x32xf32, #tpu.memory_space<vmem>>, vector<1x8x32xf32>,
    %c5_i32 = arith.constant 5 : i32
    %357 = arith.index_cast %c5_i32 : i32 to index
    %c0_140 = arith.constant 0 : index
    %c0_141 = arith.constant 0 : index
    %358 = vector.load %arg15[%357, %c0_140, %c0_141] : memref<8x8x128xf32, #tpu.memory_space<vmem>>, vector<1x8x128xf32>
    %359 = vector.shape_cast %358 : vector<1x8x128xf32> to vector<8x128xf32>
    %360 = arith.truncf %352 : vector<8x32xf32> to vector<8x32xbf16>
    %cst_142 = arith.constant dense<0.000000e+00> : vector<8x128xf32>
    %361 = tpu.matmul %360, %7, %cst_142 {dimension_numbers = #tpu.dot_dimension_numbers<[1], [0], [0], [1], [0, 0, 1, 1], [], []>} : vector<8x32xbf16>, vector<32x128xbf16>, vector<8x128xf32> -> vector<8x128xf32>
    %362 = arith.addf %359, %361 : vector<8x128xf32>
    %363 = vector.extract_strided_slice %362 {offsets = [0, 0], sizes = [8, 96], strides = [1, 1]} : vector<8x128xf32> to vector<8x96xf32>
    %364 = arith.negf %363 : vector<8x96xf32>
    %365 = math.exp %364 : vector<8x96xf32>
    %cst_143 = arith.constant 1.000000e+00 : f32
    %366 = vector.broadcast %cst_143 : f32 to vector<8x96xf32>
    %367 = arith.addf %366, %365 : vector<8x96xf32>
    %368 = arith.divf %366, %367 : vector<8x96xf32>
    %369 = vector.extract_strided_slice %362 {offsets = [0, 96], sizes = [8, 32], strides = [1, 1]} : vector<8x128xf32> to vector<8x32xf32>
    %370 = math.tanh %369 : vector<8x32xf32>
    %371 = vector.extract_strided_slice %368 {offsets = [0, 0], sizes = [8, 32], strides = [1, 1]} : vector<8x96xf32> to vector<8x32xf32>
    %372 = vector.extract_strided_slice %368 {offsets = [0, 32], sizes = [8, 32], strides = [1, 1]} : vector<8x96xf32> to vector<8x32xf32>
    %373 = vector.extract_strided_slice %368 {offsets = [0, 64], sizes = [8, 32], strides = [1, 1]} : vector<8x96xf32> to vector<8x32xf32>
    %374 = arith.mulf %372, %350 : vector<8x32xf32>
    %375 = arith.mulf %371, %370 : vector<8x32xf32>
    %376 = arith.addf %374, %375 : vector<8x32xf32>
    %377 = math.tanh %376 : vector<8x32xf32>
    %378 = arith.mulf %373, %377 : vector<8x32xf32>
    %379 = arith.index_cast %c5_i32 : i32 to index
    %c0_144 = arith.constant 0 : index
    %c0_145 = arith.constant 0 : index
    %380 = vector.load %arg16[%379, %c0_144, %c0_145] : memref<8x8x32xf32, #tpu.memory_space<vmem>>, vector<1x8x32xf32>
    %381 = vector.shape_cast %380 : vector<1x8x32xf32> to vector<8x32xf32>
    %382 = vector.shape_cast %378 : vector<8x32xf32> to vector<1x8x32xf32>
    tpu.vector_store %arg16[%379, %c0_144, %c0_145], %382 {strides = array<i32>} : memref<8x8x32xf32, #tpu.memory_space<vmem>>, vector<1x8x32xf32>,
    %c6_i32 = arith.constant 6 : i32
    %383 = arith.index_cast %c6_i32 : i32 to index
    %c0_146 = arith.constant 0 : index
    %c0_147 = arith.constant 0 : index
    %384 = vector.load %arg15[%383, %c0_146, %c0_147] : memref<8x8x128xf32, #tpu.memory_space<vmem>>, vector<1x8x128xf32>
    %385 = vector.shape_cast %384 : vector<1x8x128xf32> to vector<8x128xf32>
    %386 = arith.truncf %378 : vector<8x32xf32> to vector<8x32xbf16>
    %cst_148 = arith.constant dense<0.000000e+00> : vector<8x128xf32>
    %387 = tpu.matmul %386, %7, %cst_148 {dimension_numbers = #tpu.dot_dimension_numbers<[1], [0], [0], [1], [0, 0, 1, 1], [], []>} : vector<8x32xbf16>, vector<32x128xbf16>, vector<8x128xf32> -> vector<8x128xf32>
    %388 = arith.addf %385, %387 : vector<8x128xf32>
    %389 = vector.extract_strided_slice %388 {offsets = [0, 0], sizes = [8, 96], strides = [1, 1]} : vector<8x128xf32> to vector<8x96xf32>
    %390 = arith.negf %389 : vector<8x96xf32>
    %391 = math.exp %390 : vector<8x96xf32>
    %cst_149 = arith.constant 1.000000e+00 : f32
    %392 = vector.broadcast %cst_149 : f32 to vector<8x96xf32>
    %393 = arith.addf %392, %391 : vector<8x96xf32>
    %394 = arith.divf %392, %393 : vector<8x96xf32>
    %395 = vector.extract_strided_slice %388 {offsets = [0, 96], sizes = [8, 32], strides = [1, 1]} : vector<8x128xf32> to vector<8x32xf32>
    %396 = math.tanh %395 : vector<8x32xf32>
    %397 = vector.extract_strided_slice %394 {offsets = [0, 0], sizes = [8, 32], strides = [1, 1]} : vector<8x96xf32> to vector<8x32xf32>
    %398 = vector.extract_strided_slice %394 {offsets = [0, 32], sizes = [8, 32], strides = [1, 1]} : vector<8x96xf32> to vector<8x32xf32>
    %399 = vector.extract_strided_slice %394 {offsets = [0, 64], sizes = [8, 32], strides = [1, 1]} : vector<8x96xf32> to vector<8x32xf32>
    %400 = arith.mulf %398, %376 : vector<8x32xf32>
    %401 = arith.mulf %397, %396 : vector<8x32xf32>
    %402 = arith.addf %400, %401 : vector<8x32xf32>
    %403 = math.tanh %402 : vector<8x32xf32>
    %404 = arith.mulf %399, %403 : vector<8x32xf32>
    %405 = arith.index_cast %c6_i32 : i32 to index
    %c0_150 = arith.constant 0 : index
    %c0_151 = arith.constant 0 : index
    %406 = vector.load %arg16[%405, %c0_150, %c0_151] : memref<8x8x32xf32, #tpu.memory_space<vmem>>, vector<1x8x32xf32>
    %407 = vector.shape_cast %406 : vector<1x8x32xf32> to vector<8x32xf32>
    %408 = vector.shape_cast %404 : vector<8x32xf32> to vector<1x8x32xf32>
    tpu.vector_store %arg16[%405, %c0_150, %c0_151], %408 {strides = array<i32>} : memref<8x8x32xf32, #tpu.memory_space<vmem>>, vector<1x8x32xf32>,
    %c7_i32 = arith.constant 7 : i32
    %409 = arith.index_cast %c7_i32 : i32 to index
    %c0_152 = arith.constant 0 : index
    %c0_153 = arith.constant 0 : index
    %410 = vector.load %arg15[%409, %c0_152, %c0_153] : memref<8x8x128xf32, #tpu.memory_space<vmem>>, vector<1x8x128xf32>
    %411 = vector.shape_cast %410 : vector<1x8x128xf32> to vector<8x128xf32>
    %412 = arith.truncf %404 : vector<8x32xf32> to vector<8x32xbf16>
    %cst_154 = arith.constant dense<0.000000e+00> : vector<8x128xf32>
    %413 = tpu.matmul %412, %7, %cst_154 {dimension_numbers = #tpu.dot_dimension_numbers<[1], [0], [0], [1], [0, 0, 1, 1], [], []>} : vector<8x32xbf16>, vector<32x128xbf16>, vector<8x128xf32> -> vector<8x128xf32>
    %414 = arith.addf %411, %413 : vector<8x128xf32>
    %415 = vector.extract_strided_slice %414 {offsets = [0, 0], sizes = [8, 96], strides = [1, 1]} : vector<8x128xf32> to vector<8x96xf32>
    %416 = arith.negf %415 : vector<8x96xf32>
    %417 = math.exp %416 : vector<8x96xf32>
    %cst_155 = arith.constant 1.000000e+00 : f32
    %418 = vector.broadcast %cst_155 : f32 to vector<8x96xf32>
    %419 = arith.addf %418, %417 : vector<8x96xf32>
    %420 = arith.divf %418, %419 : vector<8x96xf32>
    %421 = vector.extract_strided_slice %414 {offsets = [0, 96], sizes = [8, 32], strides = [1, 1]} : vector<8x128xf32> to vector<8x32xf32>
    %422 = math.tanh %421 : vector<8x32xf32>
    %423 = vector.extract_strided_slice %420 {offsets = [0, 0], sizes = [8, 32], strides = [1, 1]} : vector<8x96xf32> to vector<8x32xf32>
    %424 = vector.extract_strided_slice %420 {offsets = [0, 32], sizes = [8, 32], strides = [1, 1]} : vector<8x96xf32> to vector<8x32xf32>
    %425 = vector.extract_strided_slice %420 {offsets = [0, 64], sizes = [8, 32], strides = [1, 1]} : vector<8x96xf32> to vector<8x32xf32>
    %426 = arith.mulf %424, %402 : vector<8x32xf32>
    %427 = arith.mulf %423, %422 : vector<8x32xf32>
    %428 = arith.addf %426, %427 : vector<8x32xf32>
    %429 = math.tanh %428 : vector<8x32xf32>
    %430 = arith.mulf %425, %429 : vector<8x32xf32>
    %431 = arith.index_cast %c7_i32 : i32 to index
    %c0_156 = arith.constant 0 : index
    %c0_157 = arith.constant 0 : index
    %432 = vector.load %arg16[%431, %c0_156, %c0_157] : memref<8x8x32xf32, #tpu.memory_space<vmem>>, vector<1x8x32xf32>
    %433 = vector.shape_cast %432 : vector<1x8x32xf32> to vector<8x32xf32>
    %434 = vector.shape_cast %430 : vector<8x32xf32> to vector<1x8x32xf32>
    tpu.vector_store %arg16[%431, %c0_156, %c0_157], %434 {strides = array<i32>} : memref<8x8x32xf32, #tpu.memory_space<vmem>>, vector<1x8x32xf32>,
    %c8_i32 = arith.constant 8 : i32
    %c0_158 = arith.constant 0 : index
    %c0_159 = arith.constant 0 : index
    %435 = vector.load %arg13[%c0_158, %c0_159] : memref<8x32xf32, #tpu.memory_space<vmem>>, vector<8x32xf32>
    tpu.vector_store %arg13[%c0_158, %c0_159], %430 {strides = array<i32>} : memref<8x32xf32, #tpu.memory_space<vmem>>, vector<8x32xf32>,
    %c0_160 = arith.constant 0 : index
    %c0_161 = arith.constant 0 : index
    %436 = vector.load %arg14[%c0_160, %c0_161] : memref<8x32xf32, #tpu.memory_space<vmem>>, vector<8x32xf32>
    tpu.vector_store %arg14[%c0_160, %c0_161], %428 {strides = array<i32>} : memref<8x32xf32, #tpu.memory_space<vmem>>, vector<8x32xf32>,
    %c0_162 = arith.constant 0 : index
    %c0_163 = arith.constant 0 : index
    %c0_164 = arith.constant 0 : index
    %437 = vector.load %arg17[%c0_162, %c0_163, %c0_164] : memref<8x8x32xf32, #tpu.memory_space<vmem>>, vector<8x8x32xf32>
    %438 = vector.shape_cast %437 : vector<8x8x32xf32> to vector<64x32xf32>
    %c0_165 = arith.constant 0 : index
    %c0_166 = arith.constant 0 : index
    %c0_167 = arith.constant 0 : index
    %439 = vector.load %arg16[%c0_165, %c0_166, %c0_167] : memref<8x8x32xf32, #tpu.memory_space<vmem>>, vector<8x8x32xf32>
    %440 = vector.shape_cast %439 : vector<8x8x32xf32> to vector<64x32xf32>
    %441 = arith.truncf %440 : vector<64x32xf32> to vector<64x32xbf16>
    %cst_168 = arith.constant dense<0.000000e+00> : vector<64x32xf32>
    %442 = tpu.matmul %441, %8, %cst_168 {dimension_numbers = #tpu.dot_dimension_numbers<[1], [0], [0], [1], [0, 0, 1, 1], [], []>} : vector<64x32xbf16>, vector<32x32xbf16>, vector<64x32xf32> -> vector<64x32xf32>
    %443 = arith.addf %438, %442 : vector<64x32xf32>
    %cst_169 = arith.constant 0.000000e+00 : f32
    %444 = vector.broadcast %cst_169 : f32 to vector<64x32xf32>
    %445 = arith.cmpf ogt, %443, %444 : vector<64x32xf32>
    %cst_170 = arith.constant 1.000000e-01 : f32
    %446 = vector.broadcast %cst_170 : f32 to vector<64x32xf32>
    %447 = arith.mulf %446, %443 : vector<64x32xf32>
    %448 = arith.select %445, %443, %447 : vector<64x32xi1>, vector<64x32xf32>
    %449 = arith.truncf %448 : vector<64x32xf32> to vector<64x32xbf16>
    %cst_171 = arith.constant dense<0.000000e+00> : vector<64x16xf32>
    %450 = tpu.matmul %449, %9, %cst_171 {dimension_numbers = #tpu.dot_dimension_numbers<[1], [0], [0], [1], [0, 0, 1, 1], [], []>} : vector<64x32xbf16>, vector<32x16xbf16>, vector<64x16xf32> -> vector<64x16xf32>
    %451 = vector.broadcast %4 : vector<1x16xf32> to vector<64x16xf32>
    %452 = arith.addf %450, %451 : vector<64x16xf32>
    %453 = math.tanh %452 : vector<64x16xf32>
    %cst_172 = arith.constant 1.000000e+00 : f32
    %454 = vector.broadcast %cst_172 : f32 to vector<64x16xf32>
    %455 = arith.addf %453, %454 : vector<64x16xf32>
    %cst_173 = arith.constant 2.495000e-01 : f32
    %456 = vector.broadcast %cst_173 : f32 to vector<64x16xf32>
    %457 = arith.mulf %455, %456 : vector<64x16xf32>
    %cst_174 = arith.constant 1.000000e-03 : f32
    %458 = vector.broadcast %cst_174 : f32 to vector<64x16xf32>
    %459 = arith.addf %457, %458 : vector<64x16xf32>
    %460 = tpu.iota {dimensions = array<i32: 1>} : vector<64x16xi32>
    %c8_i32_175 = arith.constant 8 : i32
    %461 = vector.broadcast %c8_i32_175 : i32 to vector<64x16xi32>
    %462 = arith.cmpi slt, %460, %461 : vector<64x16xi32>
    %463 = arith.select %462, %453, %459 : vector<64x16xi1>, vector<64x16xf32>
    %464 = vector.shape_cast %463 : vector<64x16xf32> to vector<8x8x16xf32>
    %c0_176 = arith.constant 0 : index
    %c0_177 = arith.constant 0 : index
    %c0_178 = arith.constant 0 : index
    %465 = vector.load %arg18[%c0_176, %c0_177, %c0_178] : memref<8x8x16xf32, #tpu.memory_space<vmem>>, vector<8x8x16xf32>
    tpu.vector_store %arg18[%c0_176, %c0_177, %c0_178], %464 {strides = array<i32>} : memref<8x8x16xf32, #tpu.memory_space<vmem>>, vector<8x8x16xf32>,
    %c0_179 = arith.constant 0 : index
    %c0_180 = arith.constant 0 : index
    %c0_181 = arith.constant 0 : index
    %466 = vector.load %arg18[%c0_179, %c0_180, %c0_181] : memref<8x8x16xf32, #tpu.memory_space<vmem>>, vector<8x1x16xf32>
    %467 = vector.shape_cast %466 : vector<8x1x16xf32> to vector<8x16xf32>
    %c0_182 = arith.constant 0 : index
    %c0_183 = arith.constant 0 : index
    %468 = vector.load %arg12[%c0_182, %c0_183] : memref<8x128xf32, #tpu.memory_space<vmem>>, vector<8x16xf32>
    tpu.vector_store %arg12[%c0_182, %c0_183], %467 {strides = array<i32>} : memref<8x128xf32, #tpu.memory_space<vmem>>, vector<8x16xf32>,
    %c0_184 = arith.constant 0 : index
    %c1_185 = arith.constant 1 : index
    %c0_186 = arith.constant 0 : index
    %469 = vector.load %arg18[%c0_184, %c1_185, %c0_186] : memref<8x8x16xf32, #tpu.memory_space<vmem>>, vector<8x1x16xf32>
    %470 = vector.shape_cast %469 : vector<8x1x16xf32> to vector<8x16xf32>
    %c0_187 = arith.constant 0 : index
    %c16_188 = arith.constant 16 : index
    %471 = vector.load %arg12[%c0_187, %c16_188] : memref<8x128xf32, #tpu.memory_space<vmem>>, vector<8x16xf32>
    tpu.vector_store %arg12[%c0_187, %c16_188], %470 {strides = array<i32>} : memref<8x128xf32, #tpu.memory_space<vmem>>, vector<8x16xf32>,
    %c0_189 = arith.constant 0 : index
    %c2_190 = arith.constant 2 : index
    %c0_191 = arith.constant 0 : index
    %472 = vector.load %arg18[%c0_189, %c2_190, %c0_191] : memref<8x8x16xf32, #tpu.memory_space<vmem>>, vector<8x1x16xf32>
    %473 = vector.shape_cast %472 : vector<8x1x16xf32> to vector<8x16xf32>
    %c0_192 = arith.constant 0 : index
    %c32 = arith.constant 32 : index
    %474 = vector.load %arg12[%c0_192, %c32] : memref<8x128xf32, #tpu.memory_space<vmem>>, vector<8x16xf32>
    tpu.vector_store %arg12[%c0_192, %c32], %473 {strides = array<i32>} : memref<8x128xf32, #tpu.memory_space<vmem>>, vector<8x16xf32>,
    %c0_193 = arith.constant 0 : index
    %c3_194 = arith.constant 3 : index
    %c0_195 = arith.constant 0 : index
    %475 = vector.load %arg18[%c0_193, %c3_194, %c0_195] : memref<8x8x16xf32, #tpu.memory_space<vmem>>, vector<8x1x16xf32>
    %476 = vector.shape_cast %475 : vector<8x1x16xf32> to vector<8x16xf32>
    %c0_196 = arith.constant 0 : index
    %c48 = arith.constant 48 : index
    %477 = vector.load %arg12[%c0_196, %c48] : memref<8x128xf32, #tpu.memory_space<vmem>>, vector<8x16xf32>
    tpu.vector_store %arg12[%c0_196, %c48], %476 {strides = array<i32>} : memref<8x128xf32, #tpu.memory_space<vmem>>, vector<8x16xf32>,
    %c0_197 = arith.constant 0 : index
    %c4_198 = arith.constant 4 : index
    %c0_199 = arith.constant 0 : index
    %478 = vector.load %arg18[%c0_197, %c4_198, %c0_199] : memref<8x8x16xf32, #tpu.memory_space<vmem>>, vector<8x1x16xf32>
    %479 = vector.shape_cast %478 : vector<8x1x16xf32> to vector<8x16xf32>
    %c0_200 = arith.constant 0 : index
    %c64 = arith.constant 64 : index
    %480 = vector.load %arg12[%c0_200, %c64] : memref<8x128xf32, #tpu.memory_space<vmem>>, vector<8x16xf32>
    tpu.vector_store %arg12[%c0_200, %c64], %479 {strides = array<i32>} : memref<8x128xf32, #tpu.memory_space<vmem>>, vector<8x16xf32>,
    %c0_201 = arith.constant 0 : index
    %c5_202 = arith.constant 5 : index
    %c0_203 = arith.constant 0 : index
    %481 = vector.load %arg18[%c0_201, %c5_202, %c0_203] : memref<8x8x16xf32, #tpu.memory_space<vmem>>, vector<8x1x16xf32>
    %482 = vector.shape_cast %481 : vector<8x1x16xf32> to vector<8x16xf32>
    %c0_204 = arith.constant 0 : index
    %c80 = arith.constant 80 : index
    %483 = vector.load %arg12[%c0_204, %c80] : memref<8x128xf32, #tpu.memory_space<vmem>>, vector<8x16xf32>
    tpu.vector_store %arg12[%c0_204, %c80], %482 {strides = array<i32>} : memref<8x128xf32, #tpu.memory_space<vmem>>, vector<8x16xf32>,
    %c0_205 = arith.constant 0 : index
    %c6_206 = arith.constant 6 : index
    %c0_207 = arith.constant 0 : index
    %484 = vector.load %arg18[%c0_205, %c6_206, %c0_207] : memref<8x8x16xf32, #tpu.memory_space<vmem>>, vector<8x1x16xf32>
    %485 = vector.shape_cast %484 : vector<8x1x16xf32> to vector<8x16xf32>
    %c0_208 = arith.constant 0 : index
    %c96 = arith.constant 96 : index
    %486 = vector.load %arg12[%c0_208, %c96] : memref<8x128xf32, #tpu.memory_space<vmem>>, vector<8x16xf32>
    tpu.vector_store %arg12[%c0_208, %c96], %485 {strides = array<i32>} : memref<8x128xf32, #tpu.memory_space<vmem>>, vector<8x16xf32>,
    %c0_209 = arith.constant 0 : index
    %c7_210 = arith.constant 7 : index
    %c0_211 = arith.constant 0 : index
    %487 = vector.load %arg18[%c0_209, %c7_210, %c0_211] : memref<8x8x16xf32, #tpu.memory_space<vmem>>, vector<8x1x16xf32>
    %488 = vector.shape_cast %487 : vector<8x1x16xf32> to vector<8x16xf32>
    %c0_212 = arith.constant 0 : index
    %c112 = arith.constant 112 : index
    %489 = vector.load %arg12[%c0_212, %c112] : memref<8x128xf32, #tpu.memory_space<vmem>>, vector<8x16xf32>
    tpu.vector_store %arg12[%c0_212, %c112], %488 {strides = array<i32>} : memref<8x128xf32, #tpu.memory_space<vmem>>, vector<8x16xf32>,
    return
  }
  func.func @transform_0(%arg0: i32, %arg1: i32) -> (i32, i32, i32) {
    %c0_i32 = arith.constant 0 : i32
    %c0_i32_0 = arith.constant 0 : i32
    return %arg1, %arg0, %c0_i32 : i32, i32, i32
  }
  func.func @transform_1(%arg0: i32, %arg1: i32) -> (i32, i32) {
    %c0_i32 = arith.constant 0 : i32
    %c0_i32_0 = arith.constant 0 : i32
    %c0_i32_1 = arith.constant 0 : i32
    return %c0_i32, %c0_i32_0 : i32, i32
  }
  func.func @transform_2(%arg0: i32, %arg1: i32) -> (i32, i32) {
    %c0_i32 = arith.constant 0 : i32
    %c0_i32_0 = arith.constant 0 : i32
    %c0_i32_1 = arith.constant 0 : i32
    return %c0_i32, %c0_i32_0 : i32, i32
  }
  func.func @transform_3(%arg0: i32, %arg1: i32) -> (i32, i32) {
    %c0_i32 = arith.constant 0 : i32
    %c0_i32_0 = arith.constant 0 : i32
    %c0_i32_1 = arith.constant 0 : i32
    return %c0_i32, %c0_i32_0 : i32, i32
  }
  func.func @transform_4(%arg0: i32, %arg1: i32) -> (i32, i32) {
    %c0_i32 = arith.constant 0 : i32
    %c0_i32_0 = arith.constant 0 : i32
    %c0_i32_1 = arith.constant 0 : i32
    return %c0_i32, %c0_i32_0 : i32, i32
  }
  func.func @transform_5(%arg0: i32, %arg1: i32) -> (i32, i32, i32) {
    %c0_i32 = arith.constant 0 : i32
    %c0_i32_0 = arith.constant 0 : i32
    %c0_i32_1 = arith.constant 0 : i32
    %c0_i32_2 = arith.constant 0 : i32
    return %c0_i32, %c0_i32_0, %c0_i32_1 : i32, i32, i32
  }
  func.func @transform_6(%arg0: i32, %arg1: i32) -> (i32, i32) {
    %c0_i32 = arith.constant 0 : i32
    %c0_i32_0 = arith.constant 0 : i32
    %c0_i32_1 = arith.constant 0 : i32
    return %c0_i32, %c0_i32_0 : i32, i32
  }
  func.func @transform_7(%arg0: i32, %arg1: i32) -> (i32, i32) {
    %c0_i32 = arith.constant 0 : i32
    %c0_i32_0 = arith.constant 0 : i32
    %c0_i32_1 = arith.constant 0 : i32
    return %c0_i32, %c0_i32_0 : i32, i32
  }
  func.func @transform_8(%arg0: i32, %arg1: i32) -> (i32, i32) {
    %c0_i32 = arith.constant 0 : i32
    %c0_i32_0 = arith.constant 0 : i32
    %c0_i32_1 = arith.constant 0 : i32
    return %c0_i32, %c0_i32_0 : i32, i32
  }
  func.func @transform_9(%arg0: i32, %arg1: i32) -> (i32, i32) {
    %c0_i32 = arith.constant 0 : i32
    %c0_i32_0 = arith.constant 0 : i32
    %c0_i32_1 = arith.constant 0 : i32
    return %c0_i32, %c0_i32_0 : i32, i32
  }
  func.func @transform_10(%arg0: i32, %arg1: i32) -> (i32, i32) {
    %c0_i32 = arith.constant 0 : i32
    return %arg1, %arg0 : i32, i32
  }
}

</mosaic_0001>

<llo_original>
// kernel: tpu_custom_call.1
$region0: #{tpu_custom_call.1}
  #allocation0 [shape = 'u32[]', space=smem, size = 0x4, offset = 0x4, fixed_abs, tag = 'smem constant byte address 0x4 - core index']
  #allocation1 [shape = 'u32[144,128]{1,0:T(1,128)}', space=vmem, size = 0x12000, scoped, tag = 'internal scratch']
  #allocation2 [shape = 'f32[8,32]{1,0:T(8,128)}', space=vmem, size = 0x1000, scoped, tag = 'scratch operand']
  #allocation3 [shape = 'f32[8,32]{1,0:T(8,128)}', space=vmem, size = 0x1000, scoped, tag = 'scratch operand']
  #allocation4 [shape = 'f32[8,8,128]{2,1,0:T(8,128)}', space=vmem, size = 0x8000, scoped, tag = 'scratch operand']
  #allocation5 [shape = 'f32[8,8,32]{2,1,0:T(8,128)}', space=vmem, size = 0x8000, scoped, tag = 'scratch operand']
  #allocation6 [shape = 'f32[8,8,32]{2,1,0:T(8,128)}', space=vmem, size = 0x8000, scoped, tag = 'scratch operand']
  #allocation7 [shape = 'f32[8,8,16]{2,1,0:T(8,128)}', space=vmem, size = 0x8000, scoped, tag = 'scratch operand']
  %s0 = inlined_call_operand.hbm [shape: bf16[8,8,16], index: 0, kind: input, shape index: {}]
  %s1 = inlined_call_operand.vmem [shape: f32[20,32], index: 1, kind: input, shape index: {}]
  %s2 = inlined_call_operand.vmem [shape: f32[1,128], index: 2, kind: input, shape index: {}]
  %s3 = inlined_call_operand.vmem [shape: f32[1,16], index: 3, kind: input, shape index: {}]
  %s4 = inlined_call_operand.hbm [shape: bf16[16,32], index: 4, kind: input, shape index: {}]
  %s5 = inlined_call_operand.hbm [shape: bf16[5,32,32], index: 5, kind: input, shape index: {}]
  %s6 = inlined_call_operand.hbm [shape: bf16[32,128], index: 6, kind: input, shape index: {}]
  %s7 = inlined_call_operand.hbm [shape: bf16[32,128], index: 7, kind: input, shape index: {}]
  %s8 = inlined_call_operand.hbm [shape: bf16[32,32], index: 8, kind: input, shape index: {}]
  %s9 = inlined_call_operand.vmem [shape: bf16[32,16], index: 9, kind: input, shape index: {}]
  %s10 = inlined_call_operand.hbm [shape: f32[8,128], index: 10, kind: output, shape index: {}]
  %s11 = sld [smem:[#allocation0]]
  $region78: #{tpu_custom_call.1} parent=0
    _
  %s13 = ssub.s32 1, %s11
  %s14 = scalar_select 0, %s13, %s11
  $region1: #{tpu_custom_call.1} parent=0
    #allocation8 [shape = 'u8[16384]{0}', space=vmem, size = 0x4000, scoped, tag = 'input window, operand 0, single buffered']
    #allocation9 [shape = 's32[1]{0}', space=sflag, size = 0x4, scoped, tag = 'scoped memory for tpu_custom_call.1']
    #allocation10 [shape = 's32[1]{0}', space=sflag, size = 0x4, scoped, tag = 'scoped memory for tpu_custom_call.1']
    #allocation11 [shape = 'u8[4096]{0}', space=vmem, size = 0x1000, scoped, tag = 'input window, operand 4, single buffered']
    #allocation12 [shape = 's32[1]{0}', space=sflag, size = 0x4, scoped, tag = 'scoped memory for tpu_custom_call.1']
    #allocation13 [shape = 'u8[40960]{0}', space=vmem, size = 0xa000, scoped, tag = 'input window, operand 5, single buffered']
    #allocation14 [shape = 'u8[8192]{0}', space=vmem, size = 0x2000, scoped, tag = 'input window, operand 6, single buffered']
    #allocation15 [shape = 's32[1]{0}', space=sflag, size = 0x4, scoped, tag = 'scoped memory for tpu_custom_call.1']
    #allocation16 [shape = 'u8[8192]{0}', space=vmem, size = 0x2000, scoped, tag = 'input window, operand 7, single buffered']
    #allocation17 [shape = 'u8[8192]{0}', space=vmem, size = 0x2000, scoped, tag = 'input window, operand 8, single buffered']
    #allocation18 [shape = 's32[1]{0}', space=sflag, size = 0x4, scoped, tag = 'scoped memory for tpu_custom_call.1']
    #allocation19 [shape = 'u8[4096]{0}', space=vmem, size = 0x1000, scoped, tag = 'output window, operand 0, single buffered']
    %15 = vsyncpa [#allocation9], 0
    %16 = vsyncpa [#allocation12], 0
    %17 = vsyncpa [#allocation15], 0
    %18 = vsyncpa [#allocation18], 0
    %19 = vsyncpa [#allocation10], 0
    // Predicated region
    $region2: #{tpu_custom_call.1} parent=1 // pred_check
      _
    $region3: #{tpu_custom_call.1} parent=1 // pred_check_branch
      %21 = sbr.rel (0) target = $region5
    $region4: #{tpu_custom_call.1} parent=1 // pred_region
      %s23 = ssub.s32 512, 512
      %24 = vsyncadd [#allocation9], %s23
      %s25 = sshll.u32 [#allocation8], 4
      %s26 = int_to_ptr.vmem [resolvable:$true] %s25
      %31 = dma.hbm_to_vmem [thread:$0]  %s0, 512, %s26, [#allocation9], 64, 64, 4
    $region5: #{tpu_custom_call.1} parent=1 // pred_fallthru
      _
    // Predicated region
    $region6: #{tpu_custom_call.1} parent=1 // pred_check
      _
    $region7: #{tpu_custom_call.1} parent=1 // pred_check_branch
      %33 = sbr.rel (0) target = $region9
    $region8: #{tpu_custom_call.1} parent=1 // pred_region
      _
    $region9: #{tpu_custom_call.1} parent=1 // pred_fallthru
      _
    // Predicated region
    $region10: #{tpu_custom_call.1} parent=1 // pred_check
      _
    $region11: #{tpu_custom_call.1} parent=1 // pred_check_branch
      %35 = sbr.rel (0) target = $region13
    $region12: #{tpu_custom_call.1} parent=1 // pred_region
      _
    $region13: #{tpu_custom_call.1} parent=1 // pred_fallthru
      _
    // Predicated region
    $region14: #{tpu_custom_call.1} parent=1 // pred_check
      _
    $region15: #{tpu_custom_call.1} parent=1 // pred_check_branch
      %37 = sbr.rel (0) target = $region17
    $region16: #{tpu_custom_call.1} parent=1 // pred_region
      _
    $region17: #{tpu_custom_call.1} parent=1 // pred_fallthru
      _
    // Predicated region
    $region18: #{tpu_custom_call.1} parent=1 // pred_check
      _
    $region19: #{tpu_custom_call.1} parent=1 // pred_check_branch
      %39 = sbr.rel (0) target = $region21
    $region20: #{tpu_custom_call.1} parent=1 // pred_region
      %s41 = ssub.s32 128, 128
      %42 = vsyncadd [#allocation12], %s41
      %s43 = sshll.u32 [#allocation11], 4
      %s44 = int_to_ptr.vmem [resolvable:$true] %s43
      %49 = dma.hbm_to_vmem [thread:$0]  %s4, 128, %s44, [#allocation12], 64, 64, 4
    $region21: #{tpu_custom_call.1} parent=1 // pred_fallthru
      _
    // Predicated region
    $region22: #{tpu_custom_call.1} parent=1 // pred_check
      _
    $region23: #{tpu_custom_call.1} parent=1 // pred_check_branch
      %51 = sbr.rel (0) target = $region25
    $region24: #{tpu_custom_call.1} parent=1 // pred_region
      %s53 = ssub.s32 1280, 1280
      %54 = vsyncadd [#allocation12], %s53
      %s55 = sshll.u32 [#allocation13], 4
      %s56 = int_to_ptr.vmem [resolvable:$true] %s55
      %61 = dma.hbm_to_vmem [thread:$0]  %s5, 1280, %s56, [#allocation12], 64, 64, 4
    $region25: #{tpu_custom_call.1} parent=1 // pred_fallthru
      _
    // Predicated region
    $region26: #{tpu_custom_call.1} parent=1 // pred_check
      _
    $region27: #{tpu_custom_call.1} parent=1 // pred_check_branch
      %63 = sbr.rel (0) target = $region29
    $region28: #{tpu_custom_call.1} parent=1 // pred_region
      %s65 = ssub.s32 256, 256
      %66 = vsyncadd [#allocation15], %s65
      %s67 = sshll.u32 [#allocation14], 4
      %s68 = int_to_ptr.vmem [resolvable:$true] %s67
      %73 = dma.hbm_to_vmem [thread:$0]  %s6, 256, %s68, [#allocation15], 64, 64, 4
    $region29: #{tpu_custom_call.1} parent=1 // pred_fallthru
      _
    // Predicated region
    $region30: #{tpu_custom_call.1} parent=1 // pred_check
      _
    $region31: #{tpu_custom_call.1} parent=1 // pred_check_branch
      %75 = sbr.rel (0) target = $region33
    $region32: #{tpu_custom_call.1} parent=1 // pred_region
      %s77 = ssub.s32 256, 256
      %78 = vsyncadd [#allocation15], %s77
      %s79 = sshll.u32 [#allocation16], 4
      %s80 = int_to_ptr.vmem [resolvable:$true] %s79
      %85 = dma.hbm_to_vmem [thread:$0]  %s7, 256, %s80, [#allocation15], 64, 64, 4
    $region33: #{tpu_custom_call.1} parent=1 // pred_fallthru
      _
    // Predicated region
    $region34: #{tpu_custom_call.1} parent=1 // pred_check
      _
    $region35: #{tpu_custom_call.1} parent=1 // pred_check_branch
      %87 = sbr.rel (0) target = $region37
    $region36: #{tpu_custom_call.1} parent=1 // pred_region
      %s89 = ssub.s32 256, 256
      %90 = vsyncadd [#allocation18], %s89
      %s91 = sshll.u32 [#allocation17], 4
      %s92 = int_to_ptr.vmem [resolvable:$true] %s91
      %97 = dma.hbm_to_vmem [thread:$0]  %s8, 256, %s92, [#allocation18], 64, 64, 4
    $region37: #{tpu_custom_call.1} parent=1 // pred_fallthru
      _
    // Predicated region
    $region38: #{tpu_custom_call.1} parent=1 // pred_check
      _
    $region39: #{tpu_custom_call.1} parent=1 // pred_check_branch
      %99 = sbr.rel (0) target = $region41
    $region40: #{tpu_custom_call.1} parent=1 // pred_region
      _
    $region41: #{tpu_custom_call.1} parent=1 // pred_fallthru
      _
    // Predicated region
    $region42: #{tpu_custom_call.1} parent=1 // pred_check
      _
    $region43: #{tpu_custom_call.1} parent=1 // pred_check_branch
      %101 = sbr.rel (0) target = $region45
    $region44: #{tpu_custom_call.1} parent=1 // pred_region
      %102 = dma.done [#allocation9], 512
    $region45: #{tpu_custom_call.1} parent=1 // pred_fallthru
      _
    // Predicated region
    $region46: #{tpu_custom_call.1} parent=1 // pred_check
      _
    $region47: #{tpu_custom_call.1} parent=1 // pred_check_branch
      %104 = sbr.rel (0) target = $region49
    $region48: #{tpu_custom_call.1} parent=1 // pred_region
      %105 = dma.done [#allocation12], 128
    $region49: #{tpu_custom_call.1} parent=1 // pred_fallthru
      _
    // Predicated region
    $region50: #{tpu_custom_call.1} parent=1 // pred_check
      _
    $region51: #{tpu_custom_call.1} parent=1 // pred_check_branch
      %107 = sbr.rel (0) target = $region53
    $region52: #{tpu_custom_call.1} parent=1 // pred_region
      %108 = dma.done [#allocation12], 1280
    $region53: #{tpu_custom_call.1} parent=1 // pred_fallthru
      _
    // Predicated region
    $region54: #{tpu_custom_call.1} parent=1 // pred_check
      _
    $region55: #{tpu_custom_call.1} parent=1 // pred_check_branch
      %110 = sbr.rel (0) target = $region57
    $region56: #{tpu_custom_call.1} parent=1 // pred_region
      %111 = dma.done [#allocation15], 256
    $region57: #{tpu_custom_call.1} parent=1 // pred_fallthru
      _
    // Predicated region
    $region58: #{tpu_custom_call.1} parent=1 // pred_check
      _
    $region59: #{tpu_custom_call.1} parent=1 // pred_check_branch
      %113 = sbr.rel (0) target = $region61
    $region60: #{tpu_custom_call.1} parent=1 // pred_region
      %114 = dma.done [#allocation15], 256
    $region61: #{tpu_custom_call.1} parent=1 // pred_fallthru
      _
    // Predicated region
    $region62: #{tpu_custom_call.1} parent=1 // pred_check
      _
    $region63: #{tpu_custom_call.1} parent=1 // pred_check_branch
      %116 = sbr.rel (0) target = $region65
    $region64: #{tpu_custom_call.1} parent=1 // pred_region
      %117 = dma.done [#allocation18], 256
    $region65: #{tpu_custom_call.1} parent=1 // pred_fallthru
      _
    %p119 = scmp.eq.s32.totalorder 0, 0
    // Predicated region
    $region66: #{tpu_custom_call.1} parent=1 // pred_check
      %p120 = pneg %p119
    $region67: #{tpu_custom_call.1} parent=1 // pred_check_branch
      %122 = sbr.rel (%p120) target = $region69
    $region68: #{tpu_custom_call.1} parent=1 // pred_region
      %vm123 = vcmask 261120
      %124 = vst.msk [vmem:[#allocation2] sm:$0xff] %vm123, 0.0
      %125 = vst.msk [vmem:[#allocation3] sm:$0xff] %vm123, 0.0
    $region69: #{tpu_custom_call.1} parent=1 // pred_fallthru
      _
    %v126 = vld [vmem:[%s2] sm:$0x1]
    %v127 = vld [vmem:[%s3] sm:$0x1]
    %v128 = vld [vmem:[#allocation11] sm:$0xf]
    %v129 = vld [vmem:[#allocation11 + $0x4] sm:$0xf]
    %v130 = vld [vmem:[#allocation14] sm:$0xf]
    %v131 = vld [vmem:[#allocation14 + $0x4] sm:$0xf]
    %v132 = vld [vmem:[#allocation14 + $0x8] sm:$0xf]
    %v133 = vld [vmem:[#allocation14 + $0xc] sm:$0xf]
    %v134 = vld [vmem:[#allocation16] sm:$0xf]
    %v135 = vld [vmem:[#allocation16 + $0x4] sm:$0xf]
    %v136 = vld [vmem:[#allocation16 + $0x8] sm:$0xf]
    %v137 = vld [vmem:[#allocation16 + $0xc] sm:$0xf]
    %v138 = vld [vmem:[#allocation17] sm:$0xf]
    %v139 = vld [vmem:[#allocation17 + $0x4] sm:$0xf]
    %v140 = vld [vmem:[#allocation17 + $0x8] sm:$0xf]
    %v141 = vld [vmem:[#allocation17 + $0xc] sm:$0xf]
    %v142 = vld [vmem:[%s9] sm:$0xf]
    %v143 = vld [vmem:[%s9 + $0x4] sm:$0xf]
    %v144 = vld [vmem:[%s9 + $0x8] sm:$0xf]
    %v145 = vld [vmem:[%s9 + $0xc] sm:$0xf]
    %v146 = vld [vmem:[%s1] sm:$0x1]
    %v147 = vld [vmem:[%s1 + $0x1] sm:$0x1]
    %v148 = vld [vmem:[%s1 + $0x2] sm:$0x1]
    %v149 = vld [vmem:[%s1 + $0x3] sm:$0x1]
    %v150 = vld [vmem:[%s1 + $0x4] sm:$0x1]
    %v151 = vld [vmem:[%s1 + $0x5] sm:$0x1]
    %v152 = vld [vmem:[%s1 + $0x6] sm:$0x1]
    %v153 = vld [vmem:[%s1 + $0x7] sm:$0x1]
    %v154 = vld [vmem:[%s1 + $0x8] sm:$0x1]
    %v155 = vld [vmem:[%s1 + $0x9] sm:$0x1]
    %v156 = vld [vmem:[%s1 + $0xa] sm:$0x1]
    %v157 = vld [vmem:[%s1 + $0xb] sm:$0x1]
    %v158 = vld [vmem:[%s1 + $0xc] sm:$0x1]
    %v159 = vld [vmem:[%s1 + $0xd] sm:$0x1]
    %v160 = vld [vmem:[%s1 + $0xe] sm:$0x1]
    %v161 = vld [vmem:[%s1 + $0xf] sm:$0x1]
    %v162 = vld [vmem:[%s1 + $0x10] sm:$0x1]
    %v163 = vld [vmem:[%s1 + $0x11] sm:$0x1]
    %v164 = vld [vmem:[%s1 + $0x12] sm:$0x1]
    %v165 = vld [vmem:[%s1 + $0x13] sm:$0x1]
    %v166 = vld [vmem:[#allocation13] sm:$0xf]
    %v167 = vld [vmem:[#allocation13 + $0x4] sm:$0xf]
    %v168 = vld [vmem:[#allocation13 + $0x8] sm:$0xf]
    %v169 = vld [vmem:[#allocation13 + $0xc] sm:$0xf]
    %s170 = scalar_lea.vmem [#allocation13], 16
    %v171 = vld [vmem:[%s170] sm:$0xf]
    %v172 = vld [vmem:[%s170 + $0x4] sm:$0xf]
    %v173 = vld [vmem:[%s170 + $0x8] sm:$0xf]
    %v174 = vld [vmem:[%s170 + $0xc] sm:$0xf]
    %s175 = scalar_lea.vmem [#allocation13], 32
    %v176 = vld [vmem:[%s175] sm:$0xf]
    %v177 = vld [vmem:[%s175 + $0x4] sm:$0xf]
    %v178 = vld [vmem:[%s175 + $0x8] sm:$0xf]
    %v179 = vld [vmem:[%s175 + $0xc] sm:$0xf]
    %s180 = scalar_lea.vmem [#allocation13], 48
    %v181 = vld [vmem:[%s180] sm:$0xf]
    %v182 = vld [vmem:[%s180 + $0x4] sm:$0xf]
    %v183 = vld [vmem:[%s180 + $0x8] sm:$0xf]
    %v184 = vld [vmem:[%s180 + $0xc] sm:$0xf]
    %s185 = scalar_lea.vmem [#allocation13], 64
    %v186 = vld [vmem:[%s185] sm:$0xf]
    %v187 = vld [vmem:[%s185 + $0x4] sm:$0xf]
    %v188 = vld [vmem:[%s185 + $0x8] sm:$0xf]
    %v189 = vld [vmem:[%s185 + $0xc] sm:$0xf]
    %v190 = vld [vmem:[#allocation8] sm:$0xf]
    %v191 = vld [vmem:[#allocation8 + $0x4] sm:$0xf]
    %v192 = vld [vmem:[#allocation8 + $0x8] sm:$0xf]
    %v193 = vld [vmem:[#allocation8 + $0xc] sm:$0xf]
    %v194 = vld [vmem:[#allocation8 + $0x10] sm:$0xf]
    %v195 = vld [vmem:[#allocation8 + $0x14] sm:$0xf]
    %v196 = vld [vmem:[#allocation8 + $0x18] sm:$0xf]
    %v197 = vld [vmem:[#allocation8 + $0x1c] sm:$0xf]
    %v198 = vlaneseq
    %v199 = vshrl.u32 %v198, 7
    %v200 = vsub.s32 0, %v199
    %v201 = vrot.slane %v146, %v200
    %v210 = vunpack.c.l.b16 %v190
    %v211 = vunpack.c.l.b16 %v191
    %v212 = vunpack.c.l.b16 %v192
    %v213 = vunpack.c.l.b16 %v193
    %v214 = vunpack.c.l.b16 %v194
    %v215 = vunpack.c.l.b16 %v195
    %v216 = vunpack.c.l.b16 %v196
    %v217 = vunpack.c.l.b16 %v197
    %v218 = vpack.c.b16 %v211, %v210
    %v219 = vpack.c.b16 %v213, %v212
    %v220 = vpack.c.b16 %v215, %v214
    %v221 = vpack.c.b16 %v217, %v216
    %v224 = vunpack.c.l.b16 %v128
    %v225 = vunpack.c.l.b16 %v129
    %v226 = vpack.c.b16 %v225, %v224
    %vm228 = vcmask 130048
    %v230 = vsel %vm228, %v218, 0
    %v233 = vsel %vm228, %v219, 0
    %v236 = vsel %vm228, %v220, 0
    %v239 = vsel %vm228, %v221, 0
    %241 = vmatprep.subr.bf16.mxu0 0
    %242 = vmatpush1.bf16.msra.mxu0 0
    %243 = vmatprep.subr.bf16.mxu0 0
    %244 = vmatpush1.bf16.msra.mxu0 0
    %245 = vmatprep.subr.bf16.mxu0 0
    %246 = vmatpush1.bf16.msra.mxu0 0
    %247 = vmatprep.subr.bf16.mxu0 0
    %248 = vmatpush1.bf16.msra.mxu0 0
    %249 = vmatprep.subr.bf16.mxu0 0
    %250 = vmatpush1.bf16.msra.mxu0 0
    %251 = vmatprep.subr.bf16.mxu0 0
    %252 = vmatpush1.bf16.msra.mxu0 0
    %253 = vmatprep.subr.bf16.mxu0 0
    %254 = vmatpush1.bf16.msra.mxu0 0
    %255 = vmatprep.subr.bf16.mxu0 0
    %256 = vmatpush1.bf16.msra.mxu0 %v226
    %257 = vmatprep.subr.bf16.mxu0 0
    %258 = vmatpush2.bf16.msra.mxu0 0
    %259 = vmatprep.subr.bf16.mxu0 0
    %260 = vmatpush2.bf16.msra.mxu0 0
    %261 = vmatprep.subr.bf16.mxu0 0
    %262 = vmatpush2.bf16.msra.mxu0 0
    %263 = vmatprep.subr.bf16.mxu0 0
    %264 = vmatpush2.bf16.msra.mxu0 0
    %265 = vmatprep.subr.bf16.mxu0 0
    %266 = vmatpush2.bf16.msra.mxu0 0
    %267 = vmatprep.subr.bf16.mxu0 0
    %268 = vmatpush2.bf16.msra.mxu0 0
    %269 = vmatprep.subr.bf16.mxu0 0
    %270 = vmatpush2.bf16.msra.mxu0 0
    %271 = vmatprep.subr.bf16.mxu0 0
    %272 = vmatpush2.bf16.msra.mxu0 0
    %273 = vmatprep.mubr.bf16.mxu0 0
    %274 = vmatmul.mubr.bf16.gmra.mxu0 %v230
    %v275 = vpop.f32.mrf.mxu0
    %v276 = vadd.f32 %v201, %v275
    %v277 = vpop.f32.mrf.mxu0
    %v278 = vpop.f32.mrf.mxu0
    %v279 = vadd.f32 %v201, %v278
    %v280 = vpop.f32.mrf.mxu0
    %281 = vmatprep.mubr.bf16.mxu0 0
    %282 = vmatmul.mubr.bf16.gmra.mxu0 %v233
    %v283 = vpop.f32.mrf.mxu0
    %v284 = vadd.f32 %v201, %v283
    %v285 = vpop.f32.mrf.mxu0
    %v286 = vpop.f32.mrf.mxu0
    %v287 = vadd.f32 %v201, %v286
    %v288 = vpop.f32.mrf.mxu0
    %289 = vmatprep.mubr.bf16.mxu0 0
    %290 = vmatmul.mubr.bf16.gmra.mxu0 %v236
    %v291 = vpop.f32.mrf.mxu0
    %v292 = vadd.f32 %v201, %v291
    %v293 = vpop.f32.mrf.mxu0
    %v294 = vpop.f32.mrf.mxu0
    %v295 = vadd.f32 %v201, %v294
    %v296 = vpop.f32.mrf.mxu0
    %297 = vmatprep.mubr.bf16.mxu0 0
    %298 = vmatmul.mubr.bf16.gmra.mxu0 %v239
    %v299 = vpop.f32.mrf.mxu0
    %v300 = vadd.f32 %v201, %v299
    %v301 = vpop.f32.mrf.mxu0
    %v302 = vpop.f32.mrf.mxu0
    %v303 = vadd.f32 %v201, %v302
    %v304 = vpop.f32.mrf.mxu0
    %305 = vdwg.mxu0
    %v306 = vmax.f32 %v276, 0.0
    %v307 = vmax.f32 %v279, 0.0
    %v308 = vmax.f32 %v284, 0.0
    %v309 = vmax.f32 %v287, 0.0
    %v310 = vmax.f32 %v292, 0.0
    %v311 = vmax.f32 %v295, 0.0
    %v312 = vmax.f32 %v300, 0.0
    %v313 = vmax.f32 %v303, 0.0
    %vm314 = vcmask 261120
    %v315 = vsel %vm314, %v306, 0.0
    %316 = vadd.xlane.f32.xlu0 %v315
    %v317 = vpop.xlane.xlu0 %316
    %v318 = vsel %vm314, %v307, 0.0
    %319 = vadd.xlane.f32.xlu0 %v318
    %v320 = vpop.xlane.xlu0 %319
    %v321 = vsel %vm314, %v308, 0.0
    %322 = vadd.xlane.f32.xlu0 %v321
    %v323 = vpop.xlane.xlu0 %322
    %v324 = vsel %vm314, %v309, 0.0
    %325 = vadd.xlane.f32.xlu0 %v324
    %v326 = vpop.xlane.xlu0 %325
    %v327 = vsel %vm314, %v310, 0.0
    %328 = vadd.xlane.f32.xlu0 %v327
    %v329 = vpop.xlane.xlu0 %328
    %v330 = vsel %vm314, %v311, 0.0
    %331 = vadd.xlane.f32.xlu0 %v330
    %v332 = vpop.xlane.xlu0 %331
    %v333 = vsel %vm314, %v312, 0.0
    %334 = vadd.xlane.f32.xlu0 %v333
    %v335 = vpop.xlane.xlu0 %334
    %v336 = vsel %vm314, %v313, 0.0
    %337 = vadd.xlane.f32.xlu0 %v336
    %v338 = vpop.xlane.xlu0 %337
    %v339 = vrcp.pop 32.0
    %v340 = vmul.f32 %v317, %v339
    %v341 = vmul.f32 %v320, %v339
    %v342 = vmul.f32 %v323, %v339
    %v343 = vmul.f32 %v326, %v339
    %v344 = vmul.f32 %v329, %v339
    %v345 = vmul.f32 %v332, %v339
    %v346 = vmul.f32 %v335, %v339
    %v347 = vmul.f32 %v338, %v339
    %v348 = vsub.f32 %v306, %v340
    %v349 = vsub.f32 %v307, %v341
    %v350 = vsub.f32 %v308, %v342
    %v351 = vsub.f32 %v309, %v343
    %v352 = vsub.f32 %v310, %v344
    %v353 = vsub.f32 %v311, %v345
    %v354 = vsub.f32 %v312, %v346
    %v355 = vsub.f32 %v313, %v347
    %v356 = vmul.f32 %v348, %v348
    %v357 = vmul.f32 %v349, %v349
    %v358 = vmul.f32 %v350, %v350
    %v359 = vmul.f32 %v351, %v351
    %v360 = vmul.f32 %v352, %v352
    %v361 = vmul.f32 %v353, %v353
    %v362 = vmul.f32 %v354, %v354
    %v363 = vmul.f32 %v355, %v355
    %v364 = vsel %vm314, %v356, 0.0
    %365 = vadd.xlane.f32.xlu0 %v364
    %v366 = vpop.xlane.xlu0 %365
    %v367 = vsel %vm314, %v357, 0.0
    %368 = vadd.xlane.f32.xlu0 %v367
    %v369 = vpop.xlane.xlu0 %368
    %v370 = vsel %vm314, %v358, 0.0
    %371 = vadd.xlane.f32.xlu0 %v370
    %v372 = vpop.xlane.xlu0 %371
    %v373 = vsel %vm314, %v359, 0.0
    %374 = vadd.xlane.f32.xlu0 %v373
    %v375 = vpop.xlane.xlu0 %374
    %v376 = vsel %vm314, %v360, 0.0
    %377 = vadd.xlane.f32.xlu0 %v376
    %v378 = vpop.xlane.xlu0 %377
    %v379 = vsel %vm314, %v361, 0.0
    %380 = vadd.xlane.f32.xlu0 %v379
    %v381 = vpop.xlane.xlu0 %380
    %v382 = vsel %vm314, %v362, 0.0
    %383 = vadd.xlane.f32.xlu0 %v382
    %v384 = vpop.xlane.xlu0 %383
    %v385 = vsel %vm314, %v363, 0.0
    %386 = vadd.xlane.f32.xlu0 %v385
    %v387 = vpop.xlane.xlu0 %386
    %v388 = vmul.f32 %v366, %v339
    %v389 = vmul.f32 %v369, %v339
    %v390 = vmul.f32 %v372, %v339
    %v391 = vmul.f32 %v375, %v339
    %v392 = vmul.f32 %v378, %v339
    %v393 = vmul.f32 %v381, %v339
    %v394 = vmul.f32 %v384, %v339
    %v395 = vmul.f32 %v387, %v339
    %v396 = vadd.f32 %v388, 1e-05
    %v397 = vadd.f32 %v389, 1e-05
    %v398 = vadd.f32 %v390, 1e-05
    %v399 = vadd.f32 %v391, 1e-05
    %v400 = vadd.f32 %v392, 1e-05
    %v401 = vadd.f32 %v393, 1e-05
    %v402 = vadd.f32 %v394, 1e-05
    %v403 = vadd.f32 %v395, 1e-05
    %v404 = vrsqrt.pop %v396
    %v405 = vrsqrt.pop %v397
    %v406 = vrsqrt.pop %v398
    %v407 = vrsqrt.pop %v399
    %v408 = vrsqrt.pop %v400
    %v409 = vrsqrt.pop %v401
    %v410 = vrsqrt.pop %v402
    %v411 = vrsqrt.pop %v403
    %v412 = vmul.f32 %v348, %v404
    %v413 = vmul.f32 %v349, %v405
    %v414 = vmul.f32 %v350, %v406
    %v415 = vmul.f32 %v351, %v407
    %v416 = vmul.f32 %v352, %v408
    %v417 = vmul.f32 %v353, %v409
    %v418 = vmul.f32 %v354, %v410
    %v419 = vmul.f32 %v355, %v411
    %v420 = vlaneseq
    %v421 = vshrl.u32 %v420, 7
    %v422 = vsub.s32 0, %v421
    %v423 = vrot.slane %v147, %v422
    %v424 = vmul.f32 %v412, %v423
    %v425 = vmul.f32 %v413, %v423
    %v426 = vmul.f32 %v414, %v423
    %v427 = vmul.f32 %v415, %v423
    %v428 = vmul.f32 %v416, %v423
    %v429 = vmul.f32 %v417, %v423
    %v430 = vmul.f32 %v418, %v423
    %v431 = vmul.f32 %v419, %v423
    %v432 = vlaneseq
    %v433 = vshrl.u32 %v432, 7
    %v434 = vsub.s32 0, %v433
    %v435 = vrot.slane %v148, %v434
    %v436 = vadd.f32 %v424, %v435
    %v437 = vadd.f32 %v425, %v435
    %v438 = vadd.f32 %v426, %v435
    %v439 = vadd.f32 %v427, %v435
    %v440 = vadd.f32 %v428, %v435
    %v441 = vadd.f32 %v429, %v435
    %v442 = vadd.f32 %v430, %v435
    %v443 = vadd.f32 %v431, %v435
    %v444 = vpack.c.bf16 %v437, %v436
    %v445 = vpack.c.bf16 %v439, %v438
    %v446 = vpack.c.bf16 %v441, %v440
    %v447 = vpack.c.bf16 %v443, %v442
    %v448 = vlaneseq
    %v449 = vshrl.u32 %v448, 7
    %v450 = vsub.s32 0, %v449
    %v451 = vrot.slane %v149, %v450
    %v456 = vunpack.c.l.b16 %v166
    %v457 = vunpack.c.l.b16 %v167
    %v458 = vunpack.c.l.b16 %v168
    %v459 = vunpack.c.l.b16 %v169
    %v460 = vpack.c.b16 %v457, %v456
    %v461 = vpack.c.b16 %v459, %v458
    %v465 = vsel %vm314, %v444, 0
    %v468 = vsel %vm314, %v445, 0
    %v471 = vsel %vm314, %v446, 0
    %v474 = vsel %vm314, %v447, 0
    %476 = vmatprep.subr.bf16.mxu0 0
    %477 = vmatpush1.bf16.msra.mxu0 0
    %478 = vmatprep.subr.bf16.mxu0 0
    %479 = vmatpush1.bf16.msra.mxu0 0
    %480 = vmatprep.subr.bf16.mxu0 0
    %481 = vmatpush1.bf16.msra.mxu0 0
    %482 = vmatprep.subr.bf16.mxu0 0
    %483 = vmatpush1.bf16.msra.mxu0 0
    %484 = vmatprep.subr.bf16.mxu0 0
    %485 = vmatpush1.bf16.msra.mxu0 0
    %486 = vmatprep.subr.bf16.mxu0 0
    %487 = vmatpush1.bf16.msra.mxu0 0
    %488 = vmatprep.subr.bf16.mxu0 0
    %489 = vmatpush1.bf16.msra.mxu0 %v461
    %490 = vmatprep.subr.bf16.mxu0 0
    %491 = vmatpush1.bf16.msra.mxu0 %v460
    %492 = vmatprep.subr.bf16.mxu0 0
    %493 = vmatpush2.bf16.msra.mxu0 0
    %494 = vmatprep.subr.bf16.mxu0 0
    %495 = vmatpush2.bf16.msra.mxu0 0
    %496 = vmatprep.subr.bf16.mxu0 0
    %497 = vmatpush2.bf16.msra.mxu0 0
    %498 = vmatprep.subr.bf16.mxu0 0
    %499 = vmatpush2.bf16.msra.mxu0 0
    %500 = vmatprep.subr.bf16.mxu0 0
    %501 = vmatpush2.bf16.msra.mxu0 0
    %502 = vmatprep.subr.bf16.mxu0 0
    %503 = vmatpush2.bf16.msra.mxu0 0
    %504 = vmatprep.subr.bf16.mxu0 0
    %505 = vmatpush2.bf16.msra.mxu0 0
    %506 = vmatprep.subr.bf16.mxu0 0
    %507 = vmatpush2.bf16.msra.mxu0 0
    %508 = vmatprep.mubr.bf16.mxu0 0
    %509 = vmatmul.mubr.bf16.gmra.mxu0 %v465
    %v510 = vpop.f32.mrf.mxu0
    %v511 = vadd.f32 %v451, %v510
    %v512 = vpop.f32.mrf.mxu0
    %v513 = vpop.f32.mrf.mxu0
    %v514 = vadd.f32 %v451, %v513
    %v515 = vpop.f32.mrf.mxu0
    %516 = vmatprep.mubr.bf16.mxu0 0
    %517 = vmatmul.mubr.bf16.gmra.mxu0 %v468
    %v518 = vpop.f32.mrf.mxu0
    %v519 = vadd.f32 %v451, %v518
    %v520 = vpop.f32.mrf.mxu0
    %v521 = vpop.f32.mrf.mxu0
    %v522 = vadd.f32 %v451, %v521
    %v523 = vpop.f32.mrf.mxu0
    %524 = vmatprep.mubr.bf16.mxu0 0
    %525 = vmatmul.mubr.bf16.gmra.mxu0 %v471
    %v526 = vpop.f32.mrf.mxu0
    %v527 = vadd.f32 %v451, %v526
    %v528 = vpop.f32.mrf.mxu0
    %v529 = vpop.f32.mrf.mxu0
    %v530 = vadd.f32 %v451, %v529
    %v531 = vpop.f32.mrf.mxu0
    %532 = vmatprep.mubr.bf16.mxu0 0
    %533 = vmatmul.mubr.bf16.gmra.mxu0 %v474
    %v534 = vpop.f32.mrf.mxu0
    %v535 = vadd.f32 %v451, %v534
    %v536 = vpop.f32.mrf.mxu0
    %v537 = vpop.f32.mrf.mxu0
    %v538 = vadd.f32 %v451, %v537
    %v539 = vpop.f32.mrf.mxu0
    %540 = vdwg.mxu0
    %v541 = vsel %vm314, %v511, 0.0
    %542 = vadd.xlane.f32.xlu0 %v541
    %v543 = vpop.xlane.xlu0 %542
    %v544 = vsel %vm314, %v514, 0.0
    %545 = vadd.xlane.f32.xlu0 %v544
    %v546 = vpop.xlane.xlu0 %545
    %v547 = vsel %vm314, %v519, 0.0
    %548 = vadd.xlane.f32.xlu0 %v547
    %v549 = vpop.xlane.xlu0 %548
    %v550 = vsel %vm314, %v522, 0.0
    %551 = vadd.xlane.f32.xlu0 %v550
    %v552 = vpop.xlane.xlu0 %551
    %v553 = vsel %vm314, %v527, 0.0
    %554 = vadd.xlane.f32.xlu0 %v553
    %v555 = vpop.xlane.xlu0 %554
    %v556 = vsel %vm314, %v530, 0.0
    %557 = vadd.xlane.f32.xlu0 %v556
    %v558 = vpop.xlane.xlu0 %557
    %v559 = vsel %vm314, %v535, 0.0
    %560 = vadd.xlane.f32.xlu0 %v559
    %v561 = vpop.xlane.xlu0 %560
    %v562 = vsel %vm314, %v538, 0.0
    %563 = vadd.xlane.f32.xlu0 %v562
    %v564 = vpop.xlane.xlu0 %563
    %v565 = vmul.f32 %v543, %v339
    %v566 = vmul.f32 %v546, %v339
    %v567 = vmul.f32 %v549, %v339
    %v568 = vmul.f32 %v552, %v339
    %v569 = vmul.f32 %v555, %v339
    %v570 = vmul.f32 %v558, %v339
    %v571 = vmul.f32 %v561, %v339
    %v572 = vmul.f32 %v564, %v339
    %v573 = vsub.f32 %v511, %v565
    %v574 = vsub.f32 %v514, %v566
    %v575 = vsub.f32 %v519, %v567
    %v576 = vsub.f32 %v522, %v568
    %v577 = vsub.f32 %v527, %v569
    %v578 = vsub.f32 %v530, %v570
    %v579 = vsub.f32 %v535, %v571
    %v580 = vsub.f32 %v538, %v572
    %v581 = vmul.f32 %v573, %v573
    %v582 = vmul.f32 %v574, %v574
    %v583 = vmul.f32 %v575, %v575
    %v584 = vmul.f32 %v576, %v576
    %v585 = vmul.f32 %v577, %v577
    %v586 = vmul.f32 %v578, %v578
    %v587 = vmul.f32 %v579, %v579
    %v588 = vmul.f32 %v580, %v580
    %v589 = vsel %vm314, %v581, 0.0
    %590 = vadd.xlane.f32.xlu0 %v589
    %v591 = vpop.xlane.xlu0 %590
    %v592 = vsel %vm314, %v582, 0.0
    %593 = vadd.xlane.f32.xlu0 %v592
    %v594 = vpop.xlane.xlu0 %593
    %v595 = vsel %vm314, %v583, 0.0
    %596 = vadd.xlane.f32.xlu0 %v595
    %v597 = vpop.xlane.xlu0 %596
    %v598 = vsel %vm314, %v584, 0.0
    %599 = vadd.xlane.f32.xlu0 %v598
    %v600 = vpop.xlane.xlu0 %599
    %v601 = vsel %vm314, %v585, 0.0
    %602 = vadd.xlane.f32.xlu0 %v601
    %v603 = vpop.xlane.xlu0 %602
    %v604 = vsel %vm314, %v586, 0.0
    %605 = vadd.xlane.f32.xlu0 %v604
    %v606 = vpop.xlane.xlu0 %605
    %v607 = vsel %vm314, %v587, 0.0
    %608 = vadd.xlane.f32.xlu0 %v607
    %v609 = vpop.xlane.xlu0 %608
    %v610 = vsel %vm314, %v588, 0.0
    %611 = vadd.xlane.f32.xlu0 %v610
    %v612 = vpop.xlane.xlu0 %611
    %v613 = vmul.f32 %v591, %v339
    %v614 = vmul.f32 %v594, %v339
    %v615 = vmul.f32 %v597, %v339
    %v616 = vmul.f32 %v600, %v339
    %v617 = vmul.f32 %v603, %v339
    %v618 = vmul.f32 %v606, %v339
    %v619 = vmul.f32 %v609, %v339
    %v620 = vmul.f32 %v612, %v339
    %v621 = vadd.f32 %v613, 1e-05
    %v622 = vadd.f32 %v614, 1e-05
    %v623 = vadd.f32 %v615, 1e-05
    %v624 = vadd.f32 %v616, 1e-05
    %v625 = vadd.f32 %v617, 1e-05
    %v626 = vadd.f32 %v618, 1e-05
    %v627 = vadd.f32 %v619, 1e-05
    %v628 = vadd.f32 %v620, 1e-05
    %v629 = vrsqrt.pop %v621
    %v630 = vrsqrt.pop %v622
    %v631 = vrsqrt.pop %v623
    %v632 = vrsqrt.pop %v624
    %v633 = vrsqrt.pop %v625
    %v634 = vrsqrt.pop %v626
    %v635 = vrsqrt.pop %v627
    %v636 = vrsqrt.pop %v628
    %v637 = vmul.f32 %v573, %v629
    %v638 = vmul.f32 %v574, %v630
    %v639 = vmul.f32 %v575, %v631
    %v640 = vmul.f32 %v576, %v632
    %v641 = vmul.f32 %v577, %v633
    %v642 = vmul.f32 %v578, %v634
    %v643 = vmul.f32 %v579, %v635
    %v644 = vmul.f32 %v580, %v636
    %v645 = vlaneseq
    %v646 = vshrl.u32 %v645, 7
    %v647 = vsub.s32 0, %v646
    %v648 = vrot.slane %v150, %v647
    %v649 = vmul.f32 %v637, %v648
    %v650 = vmul.f32 %v638, %v648
    %v651 = vmul.f32 %v639, %v648
    %v652 = vmul.f32 %v640, %v648
    %v653 = vmul.f32 %v641, %v648
    %v654 = vmul.f32 %v642, %v648
    %v655 = vmul.f32 %v643, %v648
    %v656 = vmul.f32 %v644, %v648
    %v657 = vlaneseq
    %v658 = vshrl.u32 %v657, 7
    %v659 = vsub.s32 0, %v658
    %v660 = vrot.slane %v151, %v659
    %v661 = vadd.f32 %v649, %v660
    %v662 = vadd.f32 %v650, %v660
    %v663 = vadd.f32 %v651, %v660
    %v664 = vadd.f32 %v652, %v660
    %v665 = vadd.f32 %v653, %v660
    %v666 = vadd.f32 %v654, %v660
    %v667 = vadd.f32 %v655, %v660
    %v668 = vadd.f32 %v656, %v660
    %v669 = vmax.f32 %v661, 0.0
    %v670 = vmax.f32 %v662, 0.0
    %v671 = vmax.f32 %v663, 0.0
    %v672 = vmax.f32 %v664, 0.0
    %v673 = vmax.f32 %v665, 0.0
    %v674 = vmax.f32 %v666, 0.0
    %v675 = vmax.f32 %v667, 0.0
    %v676 = vmax.f32 %v668, 0.0
    %v677 = vpack.c.bf16 %v670, %v669
    %v678 = vpack.c.bf16 %v672, %v671
    %v679 = vpack.c.bf16 %v674, %v673
    %v680 = vpack.c.bf16 %v676, %v675
    %v681 = vlaneseq
    %v682 = vshrl.u32 %v681, 7
    %v683 = vsub.s32 0, %v682
    %v684 = vrot.slane %v152, %v683
    %v689 = vunpack.c.l.b16 %v171
    %v690 = vunpack.c.l.b16 %v172
    %v691 = vunpack.c.l.b16 %v173
    %v692 = vunpack.c.l.b16 %v174
    %v693 = vpack.c.b16 %v690, %v689
    %v694 = vpack.c.b16 %v692, %v691
    %v698 = vsel %vm314, %v677, 0
    %v701 = vsel %vm314, %v678, 0
    %v704 = vsel %vm314, %v679, 0
    %v707 = vsel %vm314, %v680, 0
    %709 = vmatprep.subr.bf16.mxu0 0
    %710 = vmatpush1.bf16.msra.mxu0 0
    %711 = vmatprep.subr.bf16.mxu0 0
    %712 = vmatpush1.bf16.msra.mxu0 0
    %713 = vmatprep.subr.bf16.mxu0 0
    %714 = vmatpush1.bf16.msra.mxu0 0
    %715 = vmatprep.subr.bf16.mxu0 0
    %716 = vmatpush1.bf16.msra.mxu0 0
    %717 = vmatprep.subr.bf16.mxu0 0
    %718 = vmatpush1.bf16.msra.mxu0 0
    %719 = vmatprep.subr.bf16.mxu0 0
    %720 = vmatpush1.bf16.msra.mxu0 0
    %721 = vmatprep.subr.bf16.mxu0 0
    %722 = vmatpush1.bf16.msra.mxu0 %v694
    %723 = vmatprep.subr.bf16.mxu0 0
    %724 = vmatpush1.bf16.msra.mxu0 %v693
    %725 = vmatprep.subr.bf16.mxu0 0
    %726 = vmatpush2.bf16.msra.mxu0 0
    %727 = vmatprep.subr.bf16.mxu0 0
    %728 = vmatpush2.bf16.msra.mxu0 0
    %729 = vmatprep.subr.bf16.mxu0 0
    %730 = vmatpush2.bf16.msra.mxu0 0
    %731 = vmatprep.subr.bf16.mxu0 0
    %732 = vmatpush2.bf16.msra.mxu0 0
    %733 = vmatprep.subr.bf16.mxu0 0
    %734 = vmatpush2.bf16.msra.mxu0 0
    %735 = vmatprep.subr.bf16.mxu0 0
    %736 = vmatpush2.bf16.msra.mxu0 0
    %737 = vmatprep.subr.bf16.mxu0 0
    %738 = vmatpush2.bf16.msra.mxu0 0
    %739 = vmatprep.subr.bf16.mxu0 0
    %740 = vmatpush2.bf16.msra.mxu0 0
    %741 = vmatprep.mubr.bf16.mxu0 0
    %742 = vmatmul.mubr.bf16.gmra.mxu0 %v698
    %v743 = vpop.f32.mrf.mxu0
    %v744 = vadd.f32 %v684, %v743
    %v745 = vpop.f32.mrf.mxu0
    %v746 = vpop.f32.mrf.mxu0
    %v747 = vadd.f32 %v684, %v746
    %v748 = vpop.f32.mrf.mxu0
    %749 = vmatprep.mubr.bf16.mxu0 0
    %750 = vmatmul.mubr.bf16.gmra.mxu0 %v701
    %v751 = vpop.f32.mrf.mxu0
    %v752 = vadd.f32 %v684, %v751
    %v753 = vpop.f32.mrf.mxu0
    %v754 = vpop.f32.mrf.mxu0
    %v755 = vadd.f32 %v684, %v754
    %v756 = vpop.f32.mrf.mxu0
    %757 = vmatprep.mubr.bf16.mxu0 0
    %758 = vmatmul.mubr.bf16.gmra.mxu0 %v704
    %v759 = vpop.f32.mrf.mxu0
    %v760 = vadd.f32 %v684, %v759
    %v761 = vpop.f32.mrf.mxu0
    %v762 = vpop.f32.mrf.mxu0
    %v763 = vadd.f32 %v684, %v762
    %v764 = vpop.f32.mrf.mxu0
    %765 = vmatprep.mubr.bf16.mxu0 0
    %766 = vmatmul.mubr.bf16.gmra.mxu0 %v707
    %v767 = vpop.f32.mrf.mxu0
    %v768 = vadd.f32 %v684, %v767
    %v769 = vpop.f32.mrf.mxu0
    %v770 = vpop.f32.mrf.mxu0
    %v771 = vadd.f32 %v684, %v770
    %v772 = vpop.f32.mrf.mxu0
    %773 = vdwg.mxu0
    %v774 = vsel %vm314, %v744, 0.0
    %775 = vadd.xlane.f32.xlu0 %v774
    %v776 = vpop.xlane.xlu0 %775
    %v777 = vsel %vm314, %v747, 0.0
    %778 = vadd.xlane.f32.xlu0 %v777
    %v779 = vpop.xlane.xlu0 %778
    %v780 = vsel %vm314, %v752, 0.0
    %781 = vadd.xlane.f32.xlu0 %v780
    %v782 = vpop.xlane.xlu0 %781
    %v783 = vsel %vm314, %v755, 0.0
    %784 = vadd.xlane.f32.xlu0 %v783
    %v785 = vpop.xlane.xlu0 %784
    %v786 = vsel %vm314, %v760, 0.0
    %787 = vadd.xlane.f32.xlu0 %v786
    %v788 = vpop.xlane.xlu0 %787
    %v789 = vsel %vm314, %v763, 0.0
    %790 = vadd.xlane.f32.xlu0 %v789
    %v791 = vpop.xlane.xlu0 %790
    %v792 = vsel %vm314, %v768, 0.0
    %793 = vadd.xlane.f32.xlu0 %v792
    %v794 = vpop.xlane.xlu0 %793
    %v795 = vsel %vm314, %v771, 0.0
    %796 = vadd.xlane.f32.xlu0 %v795
    %v797 = vpop.xlane.xlu0 %796
    %v798 = vmul.f32 %v776, %v339
    %v799 = vmul.f32 %v779, %v339
    %v800 = vmul.f32 %v782, %v339
    %v801 = vmul.f32 %v785, %v339
    %v802 = vmul.f32 %v788, %v339
    %v803 = vmul.f32 %v791, %v339
    %v804 = vmul.f32 %v794, %v339
    %v805 = vmul.f32 %v797, %v339
    %v806 = vsub.f32 %v744, %v798
    %v807 = vsub.f32 %v747, %v799
    %v808 = vsub.f32 %v752, %v800
    %v809 = vsub.f32 %v755, %v801
    %v810 = vsub.f32 %v760, %v802
    %v811 = vsub.f32 %v763, %v803
    %v812 = vsub.f32 %v768, %v804
    %v813 = vsub.f32 %v771, %v805
    %v814 = vmul.f32 %v806, %v806
    %v815 = vmul.f32 %v807, %v807
    %v816 = vmul.f32 %v808, %v808
    %v817 = vmul.f32 %v809, %v809
    %v818 = vmul.f32 %v810, %v810
    %v819 = vmul.f32 %v811, %v811
    %v820 = vmul.f32 %v812, %v812
    %v821 = vmul.f32 %v813, %v813
    %v822 = vsel %vm314, %v814, 0.0
    %823 = vadd.xlane.f32.xlu0 %v822
    %v824 = vpop.xlane.xlu0 %823
    %v825 = vsel %vm314, %v815, 0.0
    %826 = vadd.xlane.f32.xlu0 %v825
    %v827 = vpop.xlane.xlu0 %826
    %v828 = vsel %vm314, %v816, 0.0
    %829 = vadd.xlane.f32.xlu0 %v828
    %v830 = vpop.xlane.xlu0 %829
    %v831 = vsel %vm314, %v817, 0.0
    %832 = vadd.xlane.f32.xlu0 %v831
    %v833 = vpop.xlane.xlu0 %832
    %v834 = vsel %vm314, %v818, 0.0
    %835 = vadd.xlane.f32.xlu0 %v834
    %v836 = vpop.xlane.xlu0 %835
    %v837 = vsel %vm314, %v819, 0.0
    %838 = vadd.xlane.f32.xlu0 %v837
    %v839 = vpop.xlane.xlu0 %838
    %v840 = vsel %vm314, %v820, 0.0
    %841 = vadd.xlane.f32.xlu0 %v840
    %v842 = vpop.xlane.xlu0 %841
    %v843 = vsel %vm314, %v821, 0.0
    %844 = vadd.xlane.f32.xlu0 %v843
    %v845 = vpop.xlane.xlu0 %844
    %v846 = vmul.f32 %v824, %v339
    %v847 = vmul.f32 %v827, %v339
    %v848 = vmul.f32 %v830, %v339
    %v849 = vmul.f32 %v833, %v339
    %v850 = vmul.f32 %v836, %v339
    %v851 = vmul.f32 %v839, %v339
    %v852 = vmul.f32 %v842, %v339
    %v853 = vmul.f32 %v845, %v339
    %v854 = vadd.f32 %v846, 1e-05
    %v855 = vadd.f32 %v847, 1e-05
    %v856 = vadd.f32 %v848, 1e-05
    %v857 = vadd.f32 %v849, 1e-05
    %v858 = vadd.f32 %v850, 1e-05
    %v859 = vadd.f32 %v851, 1e-05
    %v860 = vadd.f32 %v852, 1e-05
    %v861 = vadd.f32 %v853, 1e-05
    %v862 = vrsqrt.pop %v854
    %v863 = vrsqrt.pop %v855
    %v864 = vrsqrt.pop %v856
    %v865 = vrsqrt.pop %v857
    %v866 = vrsqrt.pop %v858
    %v867 = vrsqrt.pop %v859
    %v868 = vrsqrt.pop %v860
    %v869 = vrsqrt.pop %v861
    %v870 = vmul.f32 %v806, %v862
    %v871 = vmul.f32 %v807, %v863
    %v872 = vmul.f32 %v808, %v864
    %v873 = vmul.f32 %v809, %v865
    %v874 = vmul.f32 %v810, %v866
    %v875 = vmul.f32 %v811, %v867
    %v876 = vmul.f32 %v812, %v868
    %v877 = vmul.f32 %v813, %v869
    %v878 = vlaneseq
    %v879 = vshrl.u32 %v878, 7
    %v880 = vsub.s32 0, %v879
    %v881 = vrot.slane %v153, %v880
    %v882 = vmul.f32 %v870, %v881
    %v883 = vmul.f32 %v871, %v881
    %v884 = vmul.f32 %v872, %v881
    %v885 = vmul.f32 %v873, %v881
    %v886 = vmul.f32 %v874, %v881
    %v887 = vmul.f32 %v875, %v881
    %v888 = vmul.f32 %v876, %v881
    %v889 = vmul.f32 %v877, %v881
    %v890 = vlaneseq
    %v891 = vshrl.u32 %v890, 7
    %v892 = vsub.s32 0, %v891
    %v893 = vrot.slane %v154, %v892
    %v894 = vadd.f32 %v882, %v893
    %v895 = vadd.f32 %v883, %v893
    %v896 = vadd.f32 %v884, %v893
    %v897 = vadd.f32 %v885, %v893
    %v898 = vadd.f32 %v886, %v893
    %v899 = vadd.f32 %v887, %v893
    %v900 = vadd.f32 %v888, %v893
    %v901 = vadd.f32 %v889, %v893
    %v902 = vmax.f32 %v894, 0.0
    %v903 = vmax.f32 %v895, 0.0
    %v904 = vmax.f32 %v896, 0.0
    %v905 = vmax.f32 %v897, 0.0
    %v906 = vmax.f32 %v898, 0.0
    %v907 = vmax.f32 %v899, 0.0
    %v908 = vmax.f32 %v900, 0.0
    %v909 = vmax.f32 %v901, 0.0
    %v910 = vadd.f32 %v902, %v436
    %v911 = vadd.f32 %v903, %v437
    %v912 = vadd.f32 %v904, %v438
    %v913 = vadd.f32 %v905, %v439
    %v914 = vadd.f32 %v906, %v440
    %v915 = vadd.f32 %v907, %v441
    %v916 = vadd.f32 %v908, %v442
    %v917 = vadd.f32 %v909, %v443
    %v918 = vsel %vm314, %v910, 0.0
    %919 = vadd.xlane.f32.xlu0 %v918
    %v920 = vpop.xlane.xlu0 %919
    %v921 = vsel %vm314, %v911, 0.0
    %922 = vadd.xlane.f32.xlu0 %v921
    %v923 = vpop.xlane.xlu0 %922
    %v924 = vsel %vm314, %v912, 0.0
    %925 = vadd.xlane.f32.xlu0 %v924
    %v926 = vpop.xlane.xlu0 %925
    %v927 = vsel %vm314, %v913, 0.0
    %928 = vadd.xlane.f32.xlu0 %v927
    %v929 = vpop.xlane.xlu0 %928
    %v930 = vsel %vm314, %v914, 0.0
    %931 = vadd.xlane.f32.xlu0 %v930
    %v932 = vpop.xlane.xlu0 %931
    %v933 = vsel %vm314, %v915, 0.0
    %934 = vadd.xlane.f32.xlu0 %v933
    %v935 = vpop.xlane.xlu0 %934
    %v936 = vsel %vm314, %v916, 0.0
    %937 = vadd.xlane.f32.xlu0 %v936
    %v938 = vpop.xlane.xlu0 %937
    %v939 = vsel %vm314, %v917, 0.0
    %940 = vadd.xlane.f32.xlu0 %v939
    %v941 = vpop.xlane.xlu0 %940
    %v942 = vmul.f32 %v920, %v339
    %v943 = vmul.f32 %v923, %v339
    %v944 = vmul.f32 %v926, %v339
    %v945 = vmul.f32 %v929, %v339
    %v946 = vmul.f32 %v932, %v339
    %v947 = vmul.f32 %v935, %v339
    %v948 = vmul.f32 %v938, %v339
    %v949 = vmul.f32 %v941, %v339
    %v950 = vsub.f32 %v910, %v942
    %v951 = vsub.f32 %v911, %v943
    %v952 = vsub.f32 %v912, %v944
    %v953 = vsub.f32 %v913, %v945
    %v954 = vsub.f32 %v914, %v946
    %v955 = vsub.f32 %v915, %v947
    %v956 = vsub.f32 %v916, %v948
    %v957 = vsub.f32 %v917, %v949
    %v958 = vmul.f32 %v950, %v950
    %v959 = vmul.f32 %v951, %v951
    %v960 = vmul.f32 %v952, %v952
    %v961 = vmul.f32 %v953, %v953
    %v962 = vmul.f32 %v954, %v954
    %v963 = vmul.f32 %v955, %v955
    %v964 = vmul.f32 %v956, %v956
    %v965 = vmul.f32 %v957, %v957
    %v966 = vsel %vm314, %v958, 0.0
    %967 = vadd.xlane.f32.xlu0 %v966
    %v968 = vpop.xlane.xlu0 %967
    %v969 = vsel %vm314, %v959, 0.0
    %970 = vadd.xlane.f32.xlu0 %v969
    %v971 = vpop.xlane.xlu0 %970
    %v972 = vsel %vm314, %v960, 0.0
    %973 = vadd.xlane.f32.xlu0 %v972
    %v974 = vpop.xlane.xlu0 %973
    %v975 = vsel %vm314, %v961, 0.0
    %976 = vadd.xlane.f32.xlu0 %v975
    %v977 = vpop.xlane.xlu0 %976
    %v978 = vsel %vm314, %v962, 0.0
    %979 = vadd.xlane.f32.xlu0 %v978
    %v980 = vpop.xlane.xlu0 %979
    %v981 = vsel %vm314, %v963, 0.0
    %982 = vadd.xlane.f32.xlu0 %v981
    %v983 = vpop.xlane.xlu0 %982
    %v984 = vsel %vm314, %v964, 0.0
    %985 = vadd.xlane.f32.xlu0 %v984
    %v986 = vpop.xlane.xlu0 %985
    %v987 = vsel %vm314, %v965, 0.0
    %988 = vadd.xlane.f32.xlu0 %v987
    %v989 = vpop.xlane.xlu0 %988
    %v990 = vmul.f32 %v968, %v339
    %v991 = vmul.f32 %v971, %v339
    %v992 = vmul.f32 %v974, %v339
    %v993 = vmul.f32 %v977, %v339
    %v994 = vmul.f32 %v980, %v339
    %v995 = vmul.f32 %v983, %v339
    %v996 = vmul.f32 %v986, %v339
    %v997 = vmul.f32 %v989, %v339
    %v998 = vadd.f32 %v990, 1e-05
    %v999 = vadd.f32 %v991, 1e-05
    %v1000 = vadd.f32 %v992, 1e-05
    %v1001 = vadd.f32 %v993, 1e-05
    %v1002 = vadd.f32 %v994, 1e-05
    %v1003 = vadd.f32 %v995, 1e-05
    %v1004 = vadd.f32 %v996, 1e-05
    %v1005 = vadd.f32 %v997, 1e-05
    %v1006 = vrsqrt.pop %v998
    %v1007 = vrsqrt.pop %v999
    %v1008 = vrsqrt.pop %v1000
    %v1009 = vrsqrt.pop %v1001
    %v1010 = vrsqrt.pop %v1002
    %v1011 = vrsqrt.pop %v1003
    %v1012 = vrsqrt.pop %v1004
    %v1013 = vrsqrt.pop %v1005
    %v1014 = vmul.f32 %v950, %v1006
    %v1015 = vmul.f32 %v951, %v1007
    %v1016 = vmul.f32 %v952, %v1008
    %v1017 = vmul.f32 %v953, %v1009
    %v1018 = vmul.f32 %v954, %v1010
    %v1019 = vmul.f32 %v955, %v1011
    %v1020 = vmul.f32 %v956, %v1012
    %v1021 = vmul.f32 %v957, %v1013
    %v1022 = vlaneseq
    %v1023 = vshrl.u32 %v1022, 7
    %v1024 = vsub.s32 0, %v1023
    %v1025 = vrot.slane %v155, %v1024
    %v1026 = vmul.f32 %v1014, %v1025
    %v1027 = vmul.f32 %v1015, %v1025
    %v1028 = vmul.f32 %v1016, %v1025
    %v1029 = vmul.f32 %v1017, %v1025
    %v1030 = vmul.f32 %v1018, %v1025
    %v1031 = vmul.f32 %v1019, %v1025
    %v1032 = vmul.f32 %v1020, %v1025
    %v1033 = vmul.f32 %v1021, %v1025
    %v1034 = vlaneseq
    %v1035 = vshrl.u32 %v1034, 7
    %v1036 = vsub.s32 0, %v1035
    %v1037 = vrot.slane %v156, %v1036
    %v1038 = vadd.f32 %v1026, %v1037
    %v1039 = vadd.f32 %v1027, %v1037
    %v1040 = vadd.f32 %v1028, %v1037
    %v1041 = vadd.f32 %v1029, %v1037
    %v1042 = vadd.f32 %v1030, %v1037
    %v1043 = vadd.f32 %v1031, %v1037
    %v1044 = vadd.f32 %v1032, %v1037
    %v1045 = vadd.f32 %v1033, %v1037
    %v1046 = vpack.c.bf16 %v1039, %v1038
    %v1047 = vpack.c.bf16 %v1041, %v1040
    %v1048 = vpack.c.bf16 %v1043, %v1042
    %v1049 = vpack.c.bf16 %v1045, %v1044
    %v1050 = vlaneseq
    %v1051 = vshrl.u32 %v1050, 7
    %v1052 = vsub.s32 0, %v1051
    %v1053 = vrot.slane %v157, %v1052
    %v1058 = vunpack.c.l.b16 %v176
    %v1059 = vunpack.c.l.b16 %v177
    %v1060 = vunpack.c.l.b16 %v178
    %v1061 = vunpack.c.l.b16 %v179
    %v1062 = vpack.c.b16 %v1059, %v1058
    %v1063 = vpack.c.b16 %v1061, %v1060
    %v1067 = vsel %vm314, %v1046, 0
    %v1070 = vsel %vm314, %v1047, 0
    %v1073 = vsel %vm314, %v1048, 0
    %v1076 = vsel %vm314, %v1049, 0
    %1078 = vmatprep.subr.bf16.mxu0 0
    %1079 = vmatpush1.bf16.msra.mxu0 0
    %1080 = vmatprep.subr.bf16.mxu0 0
    %1081 = vmatpush1.bf16.msra.mxu0 0
    %1082 = vmatprep.subr.bf16.mxu0 0
    %1083 = vmatpush1.bf16.msra.mxu0 0
    %1084 = vmatprep.subr.bf16.mxu0 0
    %1085 = vmatpush1.bf16.msra.mxu0 0
    %1086 = vmatprep.subr.bf16.mxu0 0
    %1087 = vmatpush1.bf16.msra.mxu0 0
    %1088 = vmatprep.subr.bf16.mxu0 0
    %1089 = vmatpush1.bf16.msra.mxu0 0
    %1090 = vmatprep.subr.bf16.mxu0 0
    %1091 = vmatpush1.bf16.msra.mxu0 %v1063
    %1092 = vmatprep.subr.bf16.mxu0 0
    %1093 = vmatpush1.bf16.msra.mxu0 %v1062
    %1094 = vmatprep.subr.bf16.mxu0 0
    %1095 = vmatpush2.bf16.msra.mxu0 0
    %1096 = vmatprep.subr.bf16.mxu0 0
    %1097 = vmatpush2.bf16.msra.mxu0 0
    %1098 = vmatprep.subr.bf16.mxu0 0
    %1099 = vmatpush2.bf16.msra.mxu0 0
    %1100 = vmatprep.subr.bf16.mxu0 0
    %1101 = vmatpush2.bf16.msra.mxu0 0
    %1102 = vmatprep.subr.bf16.mxu0 0
    %1103 = vmatpush2.bf16.msra.mxu0 0
    %1104 = vmatprep.subr.bf16.mxu0 0
    %1105 = vmatpush2.bf16.msra.mxu0 0
    %1106 = vmatprep.subr.bf16.mxu0 0
    %1107 = vmatpush2.bf16.msra.mxu0 0
    %1108 = vmatprep.subr.bf16.mxu0 0
    %1109 = vmatpush2.bf16.msra.mxu0 0
    %1110 = vmatprep.mubr.bf16.mxu0 0
    %1111 = vmatmul.mubr.bf16.gmra.mxu0 %v1067
    %v1112 = vpop.f32.mrf.mxu0
    %v1113 = vadd.f32 %v1053, %v1112
    %v1114 = vpop.f32.mrf.mxu0
    %v1115 = vpop.f32.mrf.mxu0
    %v1116 = vadd.f32 %v1053, %v1115
    %v1117 = vpop.f32.mrf.mxu0
    %1118 = vmatprep.mubr.bf16.mxu0 0
    %1119 = vmatmul.mubr.bf16.gmra.mxu0 %v1070
    %v1120 = vpop.f32.mrf.mxu0
    %v1121 = vadd.f32 %v1053, %v1120
    %v1122 = vpop.f32.mrf.mxu0
    %v1123 = vpop.f32.mrf.mxu0
    %v1124 = vadd.f32 %v1053, %v1123
    %v1125 = vpop.f32.mrf.mxu0
    %1126 = vmatprep.mubr.bf16.mxu0 0
    %1127 = vmatmul.mubr.bf16.gmra.mxu0 %v1073
    %v1128 = vpop.f32.mrf.mxu0
    %v1129 = vadd.f32 %v1053, %v1128
    %v1130 = vpop.f32.mrf.mxu0
    %v1131 = vpop.f32.mrf.mxu0
    %v1132 = vadd.f32 %v1053, %v1131
    %v1133 = vpop.f32.mrf.mxu0
    %1134 = vmatprep.mubr.bf16.mxu0 0
    %1135 = vmatmul.mubr.bf16.gmra.mxu0 %v1076
    %v1136 = vpop.f32.mrf.mxu0
    %v1137 = vadd.f32 %v1053, %v1136
    %v1138 = vpop.f32.mrf.mxu0
    %v1139 = vpop.f32.mrf.mxu0
    %v1140 = vadd.f32 %v1053, %v1139
    %v1141 = vpop.f32.mrf.mxu0
    %1142 = vdwg.mxu0
    %v1143 = vsel %vm314, %v1113, 0.0
    %1144 = vadd.xlane.f32.xlu0 %v1143
    %v1145 = vpop.xlane.xlu0 %1144
    %v1146 = vsel %vm314, %v1116, 0.0
    %1147 = vadd.xlane.f32.xlu0 %v1146
    %v1148 = vpop.xlane.xlu0 %1147
    %v1149 = vsel %vm314, %v1121, 0.0
    %1150 = vadd.xlane.f32.xlu0 %v1149
    %v1151 = vpop.xlane.xlu0 %1150
    %v1152 = vsel %vm314, %v1124, 0.0
    %1153 = vadd.xlane.f32.xlu0 %v1152
    %v1154 = vpop.xlane.xlu0 %1153
    %v1155 = vsel %vm314, %v1129, 0.0
    %1156 = vadd.xlane.f32.xlu0 %v1155
    %v1157 = vpop.xlane.xlu0 %1156
    %v1158 = vsel %vm314, %v1132, 0.0
    %1159 = vadd.xlane.f32.xlu0 %v1158
    %v1160 = vpop.xlane.xlu0 %1159
    %v1161 = vsel %vm314, %v1137, 0.0
    %1162 = vadd.xlane.f32.xlu0 %v1161
    %v1163 = vpop.xlane.xlu0 %1162
    %v1164 = vsel %vm314, %v1140, 0.0
    %1165 = vadd.xlane.f32.xlu0 %v1164
    %v1166 = vpop.xlane.xlu0 %1165
    %v1167 = vmul.f32 %v1145, %v339
    %v1168 = vmul.f32 %v1148, %v339
    %v1169 = vmul.f32 %v1151, %v339
    %v1170 = vmul.f32 %v1154, %v339
    %v1171 = vmul.f32 %v1157, %v339
    %v1172 = vmul.f32 %v1160, %v339
    %v1173 = vmul.f32 %v1163, %v339
    %v1174 = vmul.f32 %v1166, %v339
    %v1175 = vsub.f32 %v1113, %v1167
    %v1176 = vsub.f32 %v1116, %v1168
    %v1177 = vsub.f32 %v1121, %v1169
    %v1178 = vsub.f32 %v1124, %v1170
    %v1179 = vsub.f32 %v1129, %v1171
    %v1180 = vsub.f32 %v1132, %v1172
    %v1181 = vsub.f32 %v1137, %v1173
    %v1182 = vsub.f32 %v1140, %v1174
    %v1183 = vmul.f32 %v1175, %v1175
    %v1184 = vmul.f32 %v1176, %v1176
    %v1185 = vmul.f32 %v1177, %v1177
    %v1186 = vmul.f32 %v1178, %v1178
    %v1187 = vmul.f32 %v1179, %v1179
    %v1188 = vmul.f32 %v1180, %v1180
    %v1189 = vmul.f32 %v1181, %v1181
    %v1190 = vmul.f32 %v1182, %v1182
    %v1191 = vsel %vm314, %v1183, 0.0
    %1192 = vadd.xlane.f32.xlu0 %v1191
    %v1193 = vpop.xlane.xlu0 %1192
    %v1194 = vsel %vm314, %v1184, 0.0
    %1195 = vadd.xlane.f32.xlu0 %v1194
    %v1196 = vpop.xlane.xlu0 %1195
    %v1197 = vsel %vm314, %v1185, 0.0
    %1198 = vadd.xlane.f32.xlu0 %v1197
    %v1199 = vpop.xlane.xlu0 %1198
    %v1200 = vsel %vm314, %v1186, 0.0
    %1201 = vadd.xlane.f32.xlu0 %v1200
    %v1202 = vpop.xlane.xlu0 %1201
    %v1203 = vsel %vm314, %v1187, 0.0
    %1204 = vadd.xlane.f32.xlu0 %v1203
    %v1205 = vpop.xlane.xlu0 %1204
    %v1206 = vsel %vm314, %v1188, 0.0
    %1207 = vadd.xlane.f32.xlu0 %v1206
    %v1208 = vpop.xlane.xlu0 %1207
    %v1209 = vsel %vm314, %v1189, 0.0
    %1210 = vadd.xlane.f32.xlu0 %v1209
    %v1211 = vpop.xlane.xlu0 %1210
    %v1212 = vsel %vm314, %v1190, 0.0
    %1213 = vadd.xlane.f32.xlu0 %v1212
    %v1214 = vpop.xlane.xlu0 %1213
    %v1215 = vmul.f32 %v1193, %v339
    %v1216 = vmul.f32 %v1196, %v339
    %v1217 = vmul.f32 %v1199, %v339
    %v1218 = vmul.f32 %v1202, %v339
    %v1219 = vmul.f32 %v1205, %v339
    %v1220 = vmul.f32 %v1208, %v339
    %v1221 = vmul.f32 %v1211, %v339
    %v1222 = vmul.f32 %v1214, %v339
    %v1223 = vadd.f32 %v1215, 1e-05
    %v1224 = vadd.f32 %v1216, 1e-05
    %v1225 = vadd.f32 %v1217, 1e-05
    %v1226 = vadd.f32 %v1218, 1e-05
    %v1227 = vadd.f32 %v1219, 1e-05
    %v1228 = vadd.f32 %v1220, 1e-05
    %v1229 = vadd.f32 %v1221, 1e-05
    %v1230 = vadd.f32 %v1222, 1e-05
    %v1231 = vrsqrt.pop %v1223
    %v1232 = vrsqrt.pop %v1224
    %v1233 = vrsqrt.pop %v1225
    %v1234 = vrsqrt.pop %v1226
    %v1235 = vrsqrt.pop %v1227
    %v1236 = vrsqrt.pop %v1228
    %v1237 = vrsqrt.pop %v1229
    %v1238 = vrsqrt.pop %v1230
    %v1239 = vmul.f32 %v1175, %v1231
    %v1240 = vmul.f32 %v1176, %v1232
    %v1241 = vmul.f32 %v1177, %v1233
    %v1242 = vmul.f32 %v1178, %v1234
    %v1243 = vmul.f32 %v1179, %v1235
    %v1244 = vmul.f32 %v1180, %v1236
    %v1245 = vmul.f32 %v1181, %v1237
    %v1246 = vmul.f32 %v1182, %v1238
    %v1247 = vlaneseq
    %v1248 = vshrl.u32 %v1247, 7
    %v1249 = vsub.s32 0, %v1248
    %v1250 = vrot.slane %v158, %v1249
    %v1251 = vmul.f32 %v1239, %v1250
    %v1252 = vmul.f32 %v1240, %v1250
    %v1253 = vmul.f32 %v1241, %v1250
    %v1254 = vmul.f32 %v1242, %v1250
    %v1255 = vmul.f32 %v1243, %v1250
    %v1256 = vmul.f32 %v1244, %v1250
    %v1257 = vmul.f32 %v1245, %v1250
    %v1258 = vmul.f32 %v1246, %v1250
    %v1259 = vlaneseq
    %v1260 = vshrl.u32 %v1259, 7
    %v1261 = vsub.s32 0, %v1260
    %v1262 = vrot.slane %v159, %v1261
    %v1263 = vadd.f32 %v1251, %v1262
    %v1264 = vadd.f32 %v1252, %v1262
    %v1265 = vadd.f32 %v1253, %v1262
    %v1266 = vadd.f32 %v1254, %v1262
    %v1267 = vadd.f32 %v1255, %v1262
    %v1268 = vadd.f32 %v1256, %v1262
    %v1269 = vadd.f32 %v1257, %v1262
    %v1270 = vadd.f32 %v1258, %v1262
    %v1271 = vmax.f32 %v1263, 0.0
    %v1272 = vmax.f32 %v1264, 0.0
    %v1273 = vmax.f32 %v1265, 0.0
    %v1274 = vmax.f32 %v1266, 0.0
    %v1275 = vmax.f32 %v1267, 0.0
    %v1276 = vmax.f32 %v1268, 0.0
    %v1277 = vmax.f32 %v1269, 0.0
    %v1278 = vmax.f32 %v1270, 0.0
    %v1279 = vpack.c.bf16 %v1272, %v1271
    %v1280 = vpack.c.bf16 %v1274, %v1273
    %v1281 = vpack.c.bf16 %v1276, %v1275
    %v1282 = vpack.c.bf16 %v1278, %v1277
    %v1283 = vlaneseq
    %v1284 = vshrl.u32 %v1283, 7
    %v1285 = vsub.s32 0, %v1284
    %v1286 = vrot.slane %v160, %v1285
    %v1291 = vunpack.c.l.b16 %v181
    %v1292 = vunpack.c.l.b16 %v182
    %v1293 = vunpack.c.l.b16 %v183
    %v1294 = vunpack.c.l.b16 %v184
    %v1295 = vpack.c.b16 %v1292, %v1291
    %v1296 = vpack.c.b16 %v1294, %v1293
    %v1300 = vsel %vm314, %v1279, 0
    %v1303 = vsel %vm314, %v1280, 0
    %v1306 = vsel %vm314, %v1281, 0
    %v1309 = vsel %vm314, %v1282, 0
    %1311 = vmatprep.subr.bf16.mxu0 0
    %1312 = vmatpush1.bf16.msra.mxu0 0
    %1313 = vmatprep.subr.bf16.mxu0 0
    %1314 = vmatpush1.bf16.msra.mxu0 0
    %1315 = vmatprep.subr.bf16.mxu0 0
    %1316 = vmatpush1.bf16.msra.mxu0 0
    %1317 = vmatprep.subr.bf16.mxu0 0
    %1318 = vmatpush1.bf16.msra.mxu0 0
    %1319 = vmatprep.subr.bf16.mxu0 0
    %1320 = vmatpush1.bf16.msra.mxu0 0
    %1321 = vmatprep.subr.bf16.mxu0 0
    %1322 = vmatpush1.bf16.msra.mxu0 0
    %1323 = vmatprep.subr.bf16.mxu0 0
    %1324 = vmatpush1.bf16.msra.mxu0 %v1296
    %1325 = vmatprep.subr.bf16.mxu0 0
    %1326 = vmatpush1.bf16.msra.mxu0 %v1295
    %1327 = vmatprep.subr.bf16.mxu0 0
    %1328 = vmatpush2.bf16.msra.mxu0 0
    %1329 = vmatprep.subr.bf16.mxu0 0
    %1330 = vmatpush2.bf16.msra.mxu0 0
    %1331 = vmatprep.subr.bf16.mxu0 0
    %1332 = vmatpush2.bf16.msra.mxu0 0
    %1333 = vmatprep.subr.bf16.mxu0 0
    %1334 = vmatpush2.bf16.msra.mxu0 0
    %1335 = vmatprep.subr.bf16.mxu0 0
    %1336 = vmatpush2.bf16.msra.mxu0 0
    %1337 = vmatprep.subr.bf16.mxu0 0
    %1338 = vmatpush2.bf16.msra.mxu0 0
    %1339 = vmatprep.subr.bf16.mxu0 0
    %1340 = vmatpush2.bf16.msra.mxu0 0
    %1341 = vmatprep.subr.bf16.mxu0 0
    %1342 = vmatpush2.bf16.msra.mxu0 0
    %1343 = vmatprep.mubr.bf16.mxu0 0
    %1344 = vmatmul.mubr.bf16.gmra.mxu0 %v1300
    %v1345 = vpop.f32.mrf.mxu0
    %v1346 = vadd.f32 %v1286, %v1345
    %v1347 = vpop.f32.mrf.mxu0
    %v1348 = vpop.f32.mrf.mxu0
    %v1349 = vadd.f32 %v1286, %v1348
    %v1350 = vpop.f32.mrf.mxu0
    %1351 = vmatprep.mubr.bf16.mxu0 0
    %1352 = vmatmul.mubr.bf16.gmra.mxu0 %v1303
    %v1353 = vpop.f32.mrf.mxu0
    %v1354 = vadd.f32 %v1286, %v1353
    %v1355 = vpop.f32.mrf.mxu0
    %v1356 = vpop.f32.mrf.mxu0
    %v1357 = vadd.f32 %v1286, %v1356
    %v1358 = vpop.f32.mrf.mxu0
    %1359 = vmatprep.mubr.bf16.mxu0 0
    %1360 = vmatmul.mubr.bf16.gmra.mxu0 %v1306
    %v1361 = vpop.f32.mrf.mxu0
    %v1362 = vadd.f32 %v1286, %v1361
    %v1363 = vpop.f32.mrf.mxu0
    %v1364 = vpop.f32.mrf.mxu0
    %v1365 = vadd.f32 %v1286, %v1364
    %v1366 = vpop.f32.mrf.mxu0
    %1367 = vmatprep.mubr.bf16.mxu0 0
    %1368 = vmatmul.mubr.bf16.gmra.mxu0 %v1309
    %v1369 = vpop.f32.mrf.mxu0
    %v1370 = vadd.f32 %v1286, %v1369
    %v1371 = vpop.f32.mrf.mxu0
    %v1372 = vpop.f32.mrf.mxu0
    %v1373 = vadd.f32 %v1286, %v1372
    %v1374 = vpop.f32.mrf.mxu0
    %1375 = vdwg.mxu0
    %v1376 = vsel %vm314, %v1346, 0.0
    %1377 = vadd.xlane.f32.xlu0 %v1376
    %v1378 = vpop.xlane.xlu0 %1377
    %v1379 = vsel %vm314, %v1349, 0.0
    %1380 = vadd.xlane.f32.xlu0 %v1379
    %v1381 = vpop.xlane.xlu0 %1380
    %v1382 = vsel %vm314, %v1354, 0.0
    %1383 = vadd.xlane.f32.xlu0 %v1382
    %v1384 = vpop.xlane.xlu0 %1383
    %v1385 = vsel %vm314, %v1357, 0.0
    %1386 = vadd.xlane.f32.xlu0 %v1385
    %v1387 = vpop.xlane.xlu0 %1386
    %v1388 = vsel %vm314, %v1362, 0.0
    %1389 = vadd.xlane.f32.xlu0 %v1388
    %v1390 = vpop.xlane.xlu0 %1389
    %v1391 = vsel %vm314, %v1365, 0.0
    %1392 = vadd.xlane.f32.xlu0 %v1391
    %v1393 = vpop.xlane.xlu0 %1392
    %v1394 = vsel %vm314, %v1370, 0.0
    %1395 = vadd.xlane.f32.xlu0 %v1394
    %v1396 = vpop.xlane.xlu0 %1395
    %v1397 = vsel %vm314, %v1373, 0.0
    %1398 = vadd.xlane.f32.xlu0 %v1397
    %v1399 = vpop.xlane.xlu0 %1398
    %v1400 = vmul.f32 %v1378, %v339
    %v1401 = vmul.f32 %v1381, %v339
    %v1402 = vmul.f32 %v1384, %v339
    %v1403 = vmul.f32 %v1387, %v339
    %v1404 = vmul.f32 %v1390, %v339
    %v1405 = vmul.f32 %v1393, %v339
    %v1406 = vmul.f32 %v1396, %v339
    %v1407 = vmul.f32 %v1399, %v339
    %v1408 = vsub.f32 %v1346, %v1400
    %v1409 = vsub.f32 %v1349, %v1401
    %v1410 = vsub.f32 %v1354, %v1402
    %v1411 = vsub.f32 %v1357, %v1403
    %v1412 = vsub.f32 %v1362, %v1404
    %v1413 = vsub.f32 %v1365, %v1405
    %v1414 = vsub.f32 %v1370, %v1406
    %v1415 = vsub.f32 %v1373, %v1407
    %v1416 = vmul.f32 %v1408, %v1408
    %v1417 = vmul.f32 %v1409, %v1409
    %v1418 = vmul.f32 %v1410, %v1410
    %v1419 = vmul.f32 %v1411, %v1411
    %v1420 = vmul.f32 %v1412, %v1412
    %v1421 = vmul.f32 %v1413, %v1413
    %v1422 = vmul.f32 %v1414, %v1414
    %v1423 = vmul.f32 %v1415, %v1415
    %v1424 = vsel %vm314, %v1416, 0.0
    %1425 = vadd.xlane.f32.xlu0 %v1424
    %v1426 = vpop.xlane.xlu0 %1425
    %v1427 = vsel %vm314, %v1417, 0.0
    %1428 = vadd.xlane.f32.xlu0 %v1427
    %v1429 = vpop.xlane.xlu0 %1428
    %v1430 = vsel %vm314, %v1418, 0.0
    %1431 = vadd.xlane.f32.xlu0 %v1430
    %v1432 = vpop.xlane.xlu0 %1431
    %v1433 = vsel %vm314, %v1419, 0.0
    %1434 = vadd.xlane.f32.xlu0 %v1433
    %v1435 = vpop.xlane.xlu0 %1434
    %v1436 = vsel %vm314, %v1420, 0.0
    %1437 = vadd.xlane.f32.xlu0 %v1436
    %v1438 = vpop.xlane.xlu0 %1437
    %v1439 = vsel %vm314, %v1421, 0.0
    %1440 = vadd.xlane.f32.xlu0 %v1439
    %v1441 = vpop.xlane.xlu0 %1440
    %v1442 = vsel %vm314, %v1422, 0.0
    %1443 = vadd.xlane.f32.xlu0 %v1442
    %v1444 = vpop.xlane.xlu0 %1443
    %v1445 = vsel %vm314, %v1423, 0.0
    %1446 = vadd.xlane.f32.xlu0 %v1445
    %v1447 = vpop.xlane.xlu0 %1446
    %v1448 = vmul.f32 %v1426, %v339
    %v1449 = vmul.f32 %v1429, %v339
    %v1450 = vmul.f32 %v1432, %v339
    %v1451 = vmul.f32 %v1435, %v339
    %v1452 = vmul.f32 %v1438, %v339
    %v1453 = vmul.f32 %v1441, %v339
    %v1454 = vmul.f32 %v1444, %v339
    %v1455 = vmul.f32 %v1447, %v339
    %v1456 = vadd.f32 %v1448, 1e-05
    %v1457 = vadd.f32 %v1449, 1e-05
    %v1458 = vadd.f32 %v1450, 1e-05
    %v1459 = vadd.f32 %v1451, 1e-05
    %v1460 = vadd.f32 %v1452, 1e-05
    %v1461 = vadd.f32 %v1453, 1e-05
    %v1462 = vadd.f32 %v1454, 1e-05
    %v1463 = vadd.f32 %v1455, 1e-05
    %v1464 = vrsqrt.pop %v1456
    %v1465 = vrsqrt.pop %v1457
    %v1466 = vrsqrt.pop %v1458
    %v1467 = vrsqrt.pop %v1459
    %v1468 = vrsqrt.pop %v1460
    %v1469 = vrsqrt.pop %v1461
    %v1470 = vrsqrt.pop %v1462
    %v1471 = vrsqrt.pop %v1463
    %v1472 = vmul.f32 %v1408, %v1464
    %v1473 = vmul.f32 %v1409, %v1465
    %v1474 = vmul.f32 %v1410, %v1466
    %v1475 = vmul.f32 %v1411, %v1467
    %v1476 = vmul.f32 %v1412, %v1468
    %v1477 = vmul.f32 %v1413, %v1469
    %v1478 = vmul.f32 %v1414, %v1470
    %v1479 = vmul.f32 %v1415, %v1471
    %v1480 = vlaneseq
    %v1481 = vshrl.u32 %v1480, 7
    %v1482 = vsub.s32 0, %v1481
    %v1483 = vrot.slane %v161, %v1482
    %v1484 = vmul.f32 %v1472, %v1483
    %v1485 = vmul.f32 %v1473, %v1483
    %v1486 = vmul.f32 %v1474, %v1483
    %v1487 = vmul.f32 %v1475, %v1483
    %v1488 = vmul.f32 %v1476, %v1483
    %v1489 = vmul.f32 %v1477, %v1483
    %v1490 = vmul.f32 %v1478, %v1483
    %v1491 = vmul.f32 %v1479, %v1483
    %v1492 = vlaneseq
    %v1493 = vshrl.u32 %v1492, 7
    %v1494 = vsub.s32 0, %v1493
    %v1495 = vrot.slane %v162, %v1494
    %v1496 = vadd.f32 %v1484, %v1495
    %v1497 = vadd.f32 %v1485, %v1495
    %v1498 = vadd.f32 %v1486, %v1495
    %v1499 = vadd.f32 %v1487, %v1495
    %v1500 = vadd.f32 %v1488, %v1495
    %v1501 = vadd.f32 %v1489, %v1495
    %v1502 = vadd.f32 %v1490, %v1495
    %v1503 = vadd.f32 %v1491, %v1495
    %v1504 = vmax.f32 %v1496, 0.0
    %v1505 = vmax.f32 %v1497, 0.0
    %v1506 = vmax.f32 %v1498, 0.0
    %v1507 = vmax.f32 %v1499, 0.0
    %v1508 = vmax.f32 %v1500, 0.0
    %v1509 = vmax.f32 %v1501, 0.0
    %v1510 = vmax.f32 %v1502, 0.0
    %v1511 = vmax.f32 %v1503, 0.0
    %v1512 = vadd.f32 %v1504, %v1038
    %v1513 = vadd.f32 %v1505, %v1039
    %v1514 = vadd.f32 %v1506, %v1040
    %v1515 = vadd.f32 %v1507, %v1041
    %v1516 = vadd.f32 %v1508, %v1042
    %v1517 = vadd.f32 %v1509, %v1043
    %v1518 = vadd.f32 %v1510, %v1044
    %v1519 = vadd.f32 %v1511, %v1045
    %v1520 = vsel %vm314, %v1512, 0.0
    %1521 = vadd.xlane.f32.xlu0 %v1520
    %v1522 = vpop.xlane.xlu0 %1521
    %v1523 = vsel %vm314, %v1513, 0.0
    %1524 = vadd.xlane.f32.xlu0 %v1523
    %v1525 = vpop.xlane.xlu0 %1524
    %v1526 = vsel %vm314, %v1514, 0.0
    %1527 = vadd.xlane.f32.xlu0 %v1526
    %v1528 = vpop.xlane.xlu0 %1527
    %v1529 = vsel %vm314, %v1515, 0.0
    %1530 = vadd.xlane.f32.xlu0 %v1529
    %v1531 = vpop.xlane.xlu0 %1530
    %v1532 = vsel %vm314, %v1516, 0.0
    %1533 = vadd.xlane.f32.xlu0 %v1532
    %v1534 = vpop.xlane.xlu0 %1533
    %v1535 = vsel %vm314, %v1517, 0.0
    %1536 = vadd.xlane.f32.xlu0 %v1535
    %v1537 = vpop.xlane.xlu0 %1536
    %v1538 = vsel %vm314, %v1518, 0.0
    %1539 = vadd.xlane.f32.xlu0 %v1538
    %v1540 = vpop.xlane.xlu0 %1539
    %v1541 = vsel %vm314, %v1519, 0.0
    %1542 = vadd.xlane.f32.xlu0 %v1541
    %v1543 = vpop.xlane.xlu0 %1542
    %v1544 = vmul.f32 %v1522, %v339
    %v1545 = vmul.f32 %v1525, %v339
    %v1546 = vmul.f32 %v1528, %v339
    %v1547 = vmul.f32 %v1531, %v339
    %v1548 = vmul.f32 %v1534, %v339
    %v1549 = vmul.f32 %v1537, %v339
    %v1550 = vmul.f32 %v1540, %v339
    %v1551 = vmul.f32 %v1543, %v339
    %v1552 = vsub.f32 %v1512, %v1544
    %v1553 = vsub.f32 %v1513, %v1545
    %v1554 = vsub.f32 %v1514, %v1546
    %v1555 = vsub.f32 %v1515, %v1547
    %v1556 = vsub.f32 %v1516, %v1548
    %v1557 = vsub.f32 %v1517, %v1549
    %v1558 = vsub.f32 %v1518, %v1550
    %v1559 = vsub.f32 %v1519, %v1551
    %v1560 = vmul.f32 %v1552, %v1552
    %v1561 = vmul.f32 %v1553, %v1553
    %v1562 = vmul.f32 %v1554, %v1554
    %v1563 = vmul.f32 %v1555, %v1555
    %v1564 = vmul.f32 %v1556, %v1556
    %v1565 = vmul.f32 %v1557, %v1557
    %v1566 = vmul.f32 %v1558, %v1558
    %v1567 = vmul.f32 %v1559, %v1559
    %v1568 = vsel %vm314, %v1560, 0.0
    %1569 = vadd.xlane.f32.xlu0 %v1568
    %v1570 = vpop.xlane.xlu0 %1569
    %v1571 = vsel %vm314, %v1561, 0.0
    %1572 = vadd.xlane.f32.xlu0 %v1571
    %v1573 = vpop.xlane.xlu0 %1572
    %v1574 = vsel %vm314, %v1562, 0.0
    %1575 = vadd.xlane.f32.xlu0 %v1574
    %v1576 = vpop.xlane.xlu0 %1575
    %v1577 = vsel %vm314, %v1563, 0.0
    %1578 = vadd.xlane.f32.xlu0 %v1577
    %v1579 = vpop.xlane.xlu0 %1578
    %v1580 = vsel %vm314, %v1564, 0.0
    %1581 = vadd.xlane.f32.xlu0 %v1580
    %v1582 = vpop.xlane.xlu0 %1581
    %v1583 = vsel %vm314, %v1565, 0.0
    %1584 = vadd.xlane.f32.xlu0 %v1583
    %v1585 = vpop.xlane.xlu0 %1584
    %v1586 = vsel %vm314, %v1566, 0.0
    %1587 = vadd.xlane.f32.xlu0 %v1586
    %v1588 = vpop.xlane.xlu0 %1587
    %v1589 = vsel %vm314, %v1567, 0.0
    %1590 = vadd.xlane.f32.xlu0 %v1589
    %v1591 = vpop.xlane.xlu0 %1590
    %v1592 = vmul.f32 %v1570, %v339
    %v1593 = vmul.f32 %v1573, %v339
    %v1594 = vmul.f32 %v1576, %v339
    %v1595 = vmul.f32 %v1579, %v339
    %v1596 = vmul.f32 %v1582, %v339
    %v1597 = vmul.f32 %v1585, %v339
    %v1598 = vmul.f32 %v1588, %v339
    %v1599 = vmul.f32 %v1591, %v339
    %v1600 = vadd.f32 %v1592, 1e-05
    %v1601 = vadd.f32 %v1593, 1e-05
    %v1602 = vadd.f32 %v1594, 1e-05
    %v1603 = vadd.f32 %v1595, 1e-05
    %v1604 = vadd.f32 %v1596, 1e-05
    %v1605 = vadd.f32 %v1597, 1e-05
    %v1606 = vadd.f32 %v1598, 1e-05
    %v1607 = vadd.f32 %v1599, 1e-05
    %v1608 = vrsqrt.pop %v1600
    %v1609 = vrsqrt.pop %v1601
    %v1610 = vrsqrt.pop %v1602
    %v1611 = vrsqrt.pop %v1603
    %v1612 = vrsqrt.pop %v1604
    %v1613 = vrsqrt.pop %v1605
    %v1614 = vrsqrt.pop %v1606
    %v1615 = vrsqrt.pop %v1607
    %v1616 = vmul.f32 %v1552, %v1608
    %v1617 = vmul.f32 %v1553, %v1609
    %v1618 = vmul.f32 %v1554, %v1610
    %v1619 = vmul.f32 %v1555, %v1611
    %v1620 = vmul.f32 %v1556, %v1612
    %v1621 = vmul.f32 %v1557, %v1613
    %v1622 = vmul.f32 %v1558, %v1614
    %v1623 = vmul.f32 %v1559, %v1615
    %v1624 = vlaneseq
    %v1625 = vshrl.u32 %v1624, 7
    %v1626 = vsub.s32 0, %v1625
    %v1627 = vrot.slane %v163, %v1626
    %v1628 = vmul.f32 %v1616, %v1627
    %v1629 = vmul.f32 %v1617, %v1627
    %v1630 = vmul.f32 %v1618, %v1627
    %v1631 = vmul.f32 %v1619, %v1627
    %v1632 = vmul.f32 %v1620, %v1627
    %v1633 = vmul.f32 %v1621, %v1627
    %v1634 = vmul.f32 %v1622, %v1627
    %v1635 = vmul.f32 %v1623, %v1627
    %v1636 = vlaneseq
    %v1637 = vshrl.u32 %v1636, 7
    %v1638 = vsub.s32 0, %v1637
    %v1639 = vrot.slane %v164, %v1638
    %v1640 = vadd.f32 %v1628, %v1639
    %v1641 = vadd.f32 %v1629, %v1639
    %v1642 = vadd.f32 %v1630, %v1639
    %v1643 = vadd.f32 %v1631, %v1639
    %v1644 = vadd.f32 %v1632, %v1639
    %v1645 = vadd.f32 %v1633, %v1639
    %v1646 = vadd.f32 %v1634, %v1639
    %v1647 = vadd.f32 %v1635, %v1639
    %v1649 = vlaneseq
    %v1650 = vshrl.u32 %v1649, 7
    %v1651 = vsub.s32 0, %v1650
    %v1652 = vrot.slane %v126, %v1651
    %v1658 = vunpack.c.l.b16 %v130
    %v1659 = vunpack.c.l.b16 %v131
    %v1660 = vunpack.c.l.b16 %v132
    %v1661 = vunpack.c.l.b16 %v133
    %v1662 = vpack.c.b16 %v1659, %v1658
    %v1663 = vpack.c.b16 %v1661, %v1660
    %1666 = vmatprep.subr.bf16.mxu0 0
    %1667 = vmatpush1.bf16.msra.mxu0 0
    %1668 = vmatprep.subr.bf16.mxu0 0
    %1669 = vmatpush1.bf16.msra.mxu0 0
    %1670 = vmatprep.subr.bf16.mxu0 0
    %1671 = vmatpush1.bf16.msra.mxu0 0
    %1672 = vmatprep.subr.bf16.mxu0 0
    %1673 = vmatpush1.bf16.msra.mxu0 0
    %1674 = vmatprep.subr.bf16.mxu0 0
    %1675 = vmatpush1.bf16.msra.mxu0 0
    %1676 = vmatprep.subr.bf16.mxu0 0
    %1677 = vmatpush1.bf16.msra.mxu0 0
    %1678 = vmatprep.subr.bf16.mxu0 0
    %1679 = vmatpush1.bf16.msra.mxu0 %v1663
    %1680 = vmatprep.subr.bf16.mxu0 0
    %1681 = vmatpush1.bf16.msra.mxu0 %v1662
    %1682 = vmatprep.subr.bf16.mxu0 0
    %1683 = vmatpush2.bf16.msra.mxu0 0
    %1684 = vmatprep.subr.bf16.mxu0 0
    %1685 = vmatpush2.bf16.msra.mxu0 0
    %1686 = vmatprep.subr.bf16.mxu0 0
    %1687 = vmatpush2.bf16.msra.mxu0 0
    %1688 = vmatprep.subr.bf16.mxu0 0
    %1689 = vmatpush2.bf16.msra.mxu0 0
    %1690 = vmatprep.subr.bf16.mxu0 0
    %1691 = vmatpush2.bf16.msra.mxu0 0
    %1692 = vmatprep.subr.bf16.mxu0 0
    %1693 = vmatpush2.bf16.msra.mxu0 0
    %1694 = vmatprep.subr.bf16.mxu0 0
    %1695 = vmatpush2.bf16.msra.mxu0 0
    %1696 = vmatprep.subr.bf16.mxu0 0
    %1697 = vmatpush2.bf16.msra.mxu0 0
    %1698 = vmatprep.mubr.bf16.mxu0 0
    %1699 = vmatmul.mubr.bf16.gmra.mxu0 %v465
    %v1700 = vpop.f32.mrf.mxu0
    %v1701 = vadd.f32 %v1652, %v1700
    %v1702 = vpop.f32.mrf.mxu0
    %v1703 = vpop.f32.mrf.mxu0
    %v1704 = vadd.f32 %v1652, %v1703
    %v1705 = vpop.f32.mrf.mxu0
    %1706 = vmatprep.mubr.bf16.mxu0 0
    %1707 = vmatmul.mubr.bf16.gmra.mxu0 %v468
    %v1708 = vpop.f32.mrf.mxu0
    %v1709 = vadd.f32 %v1652, %v1708
    %v1710 = vpop.f32.mrf.mxu0
    %v1711 = vpop.f32.mrf.mxu0
    %v1712 = vadd.f32 %v1652, %v1711
    %v1713 = vpop.f32.mrf.mxu0
    %1714 = vmatprep.mubr.bf16.mxu0 0
    %1715 = vmatmul.mubr.bf16.gmra.mxu0 %v471
    %v1716 = vpop.f32.mrf.mxu0
    %v1717 = vadd.f32 %v1652, %v1716
    %v1718 = vpop.f32.mrf.mxu0
    %v1719 = vpop.f32.mrf.mxu0
    %v1720 = vadd.f32 %v1652, %v1719
    %v1721 = vpop.f32.mrf.mxu0
    %1722 = vmatprep.mubr.bf16.mxu0 0
    %1723 = vmatmul.mubr.bf16.gmra.mxu0 %v474
    %v1724 = vpop.f32.mrf.mxu0
    %v1725 = vadd.f32 %v1652, %v1724
    %v1726 = vpop.f32.mrf.mxu0
    %v1727 = vpop.f32.mrf.mxu0
    %v1728 = vadd.f32 %v1652, %v1727
    %v1729 = vpop.f32.mrf.mxu0
    %1730 = vdwg.mxu0
    %v1731 = vpack.c.bf16 %v1641, %v1640
    %v1732 = vpack.c.bf16 %v1643, %v1642
    %v1733 = vpack.c.bf16 %v1645, %v1644
    %v1734 = vpack.c.bf16 %v1647, %v1646
    %v1735 = vlaneseq
    %v1736 = vshrl.u32 %v1735, 7
    %v1737 = vsub.s32 0, %v1736
    %v1738 = vrot.slane %v165, %v1737
    %v1743 = vunpack.c.l.b16 %v186
    %v1744 = vunpack.c.l.b16 %v187
    %v1745 = vunpack.c.l.b16 %v188
    %v1746 = vunpack.c.l.b16 %v189
    %v1747 = vpack.c.b16 %v1744, %v1743
    %v1748 = vpack.c.b16 %v1746, %v1745
    %v1752 = vsel %vm314, %v1731, 0
    %v1755 = vsel %vm314, %v1732, 0
    %v1758 = vsel %vm314, %v1733, 0
    %v1761 = vsel %vm314, %v1734, 0
    %1763 = vmatprep.subr.bf16.mxu0 0
    %1764 = vmatpush1.bf16.msra.mxu0 0
    %1765 = vmatprep.subr.bf16.mxu0 0
    %1766 = vmatpush1.bf16.msra.mxu0 0
    %1767 = vmatprep.subr.bf16.mxu0 0
    %1768 = vmatpush1.bf16.msra.mxu0 0
    %1769 = vmatprep.subr.bf16.mxu0 0
    %1770 = vmatpush1.bf16.msra.mxu0 0
    %1771 = vmatprep.subr.bf16.mxu0 0
    %1772 = vmatpush1.bf16.msra.mxu0 0
    %1773 = vmatprep.subr.bf16.mxu0 0
    %1774 = vmatpush1.bf16.msra.mxu0 0
    %1775 = vmatprep.subr.bf16.mxu0 0
    %1776 = vmatpush1.bf16.msra.mxu0 %v1748
    %1777 = vmatprep.subr.bf16.mxu0 0
    %1778 = vmatpush1.bf16.msra.mxu0 %v1747
    %1779 = vmatprep.subr.bf16.mxu0 0
    %1780 = vmatpush2.bf16.msra.mxu0 0
    %1781 = vmatprep.subr.bf16.mxu0 0
    %1782 = vmatpush2.bf16.msra.mxu0 0
    %1783 = vmatprep.subr.bf16.mxu0 0
    %1784 = vmatpush2.bf16.msra.mxu0 0
    %1785 = vmatprep.subr.bf16.mxu0 0
    %1786 = vmatpush2.bf16.msra.mxu0 0
    %1787 = vmatprep.subr.bf16.mxu0 0
    %1788 = vmatpush2.bf16.msra.mxu0 0
    %1789 = vmatprep.subr.bf16.mxu0 0
    %1790 = vmatpush2.bf16.msra.mxu0 0
    %1791 = vmatprep.subr.bf16.mxu0 0
    %1792 = vmatpush2.bf16.msra.mxu0 0
    %1793 = vmatprep.subr.bf16.mxu0 0
    %1794 = vmatpush2.bf16.msra.mxu0 0
    %1795 = vmatprep.mubr.bf16.mxu0 0
    %1796 = vmatmul.mubr.bf16.gmra.mxu0 %v1752
    %v1797 = vpop.f32.mrf.mxu0
    %v1798 = vadd.f32 %v1738, %v1797
    %v1799 = vpop.f32.mrf.mxu0
    %v1800 = vpop.f32.mrf.mxu0
    %v1801 = vadd.f32 %v1738, %v1800
    %v1802 = vpop.f32.mrf.mxu0
    %1803 = vmatprep.mubr.bf16.mxu0 0
    %1804 = vmatmul.mubr.bf16.gmra.mxu0 %v1755
    %v1805 = vpop.f32.mrf.mxu0
    %v1806 = vadd.f32 %v1738, %v1805
    %v1807 = vpop.f32.mrf.mxu0
    %v1808 = vpop.f32.mrf.mxu0
    %v1809 = vadd.f32 %v1738, %v1808
    %v1810 = vpop.f32.mrf.mxu0
    %1811 = vmatprep.mubr.bf16.mxu0 0
    %1812 = vmatmul.mubr.bf16.gmra.mxu0 %v1758
    %v1813 = vpop.f32.mrf.mxu0
    %v1814 = vadd.f32 %v1738, %v1813
    %v1815 = vpop.f32.mrf.mxu0
    %v1816 = vpop.f32.mrf.mxu0
    %v1817 = vadd.f32 %v1738, %v1816
    %v1818 = vpop.f32.mrf.mxu0
    %1819 = vmatprep.mubr.bf16.mxu0 0
    %1820 = vmatmul.mubr.bf16.gmra.mxu0 %v1761
    %v1821 = vpop.f32.mrf.mxu0
    %v1822 = vadd.f32 %v1738, %v1821
    %v1823 = vpop.f32.mrf.mxu0
    %v1824 = vpop.f32.mrf.mxu0
    %v1825 = vadd.f32 %v1738, %v1824
    %v1826 = vpop.f32.mrf.mxu0
    %1827 = vdwg.mxu0
    %1828 = vst [vmem:[#allocation4] sm:$0xff] %v1701
    %1829 = vst [vmem:[#allocation4 + $0x8] sm:$0xff] %v1704
    %1830 = vst [vmem:[#allocation4 + $0x10] sm:$0xff] %v1709
    %1831 = vst [vmem:[#allocation4 + $0x18] sm:$0xff] %v1712
    %1832 = vst [vmem:[#allocation4 + $0x20] sm:$0xff] %v1717
    %1833 = vst [vmem:[#allocation4 + $0x28] sm:$0xff] %v1720
    %1834 = vst [vmem:[#allocation4 + $0x30] sm:$0xff] %v1725
    %1835 = vst [vmem:[#allocation4 + $0x38] sm:$0xff] %v1728
    %1836 = vst.msk [vmem:[#allocation6] sm:$0xff] %vm314, %v1798
    %1837 = vst.msk [vmem:[#allocation6 + $0x8] sm:$0xff] %vm314, %v1801
    %1838 = vst.msk [vmem:[#allocation6 + $0x10] sm:$0xff] %vm314, %v1806
    %1839 = vst.msk [vmem:[#allocation6 + $0x18] sm:$0xff] %vm314, %v1809
    %1840 = vst.msk [vmem:[#allocation6 + $0x20] sm:$0xff] %vm314, %v1814
    %1841 = vst.msk [vmem:[#allocation6 + $0x28] sm:$0xff] %vm314, %v1817
    %1842 = vst.msk [vmem:[#allocation6 + $0x30] sm:$0xff] %vm314, %v1822
    %1843 = vst.msk [vmem:[#allocation6 + $0x38] sm:$0xff] %vm314, %v1825
    %v1844 = vld [vmem:[#allocation2] sm:$0xff]
    %v1845 = vld [vmem:[#allocation3] sm:$0xff]
    %v1846 = vld [vmem:[#allocation4] sm:$0xff]
    %v1847 = vpack.c.bf16 %v1844, %v1844
    %v1852 = vunpack.c.l.b16 %v134
    %v1853 = vunpack.c.l.b16 %v135
    %v1854 = vunpack.c.l.b16 %v136
    %v1855 = vunpack.c.l.b16 %v137
    %v1856 = vpack.c.b16 %v1853, %v1852
    %v1857 = vpack.c.b16 %v1855, %v1854
    %v1861 = vsel %vm314, %v1847, 0
    %1863 = vmatprep.subr.bf16.mxu0 0
    %1864 = vmatpush1.bf16.msra.mxu0 0
    %1865 = vmatprep.subr.bf16.mxu0 0
    %1866 = vmatpush1.bf16.msra.mxu0 0
    %1867 = vmatprep.subr.bf16.mxu0 0
    %1868 = vmatpush1.bf16.msra.mxu0 0
    %1869 = vmatprep.subr.bf16.mxu0 0
    %1870 = vmatpush1.bf16.msra.mxu0 0
    %1871 = vmatprep.subr.bf16.mxu0 0
    %1872 = vmatpush1.bf16.msra.mxu0 0
    %1873 = vmatprep.subr.bf16.mxu0 0
    %1874 = vmatpush1.bf16.msra.mxu0 0
    %1875 = vmatprep.subr.bf16.mxu0 0
    %1876 = vmatpush1.bf16.msra.mxu0 %v1857
    %1877 = vmatprep.subr.bf16.mxu0 0
    %1878 = vmatpush1.bf16.msra.mxu0 %v1856
    %1879 = vmatprep.subr.bf16.mxu0 0
    %1880 = vmatpush2.bf16.msra.mxu0 0
    %1881 = vmatprep.subr.bf16.mxu0 0
    %1882 = vmatpush2.bf16.msra.mxu0 0
    %1883 = vmatprep.subr.bf16.mxu0 0
    %1884 = vmatpush2.bf16.msra.mxu0 0
    %1885 = vmatprep.subr.bf16.mxu0 0
    %1886 = vmatpush2.bf16.msra.mxu0 0
    %1887 = vmatprep.subr.bf16.mxu0 0
    %1888 = vmatpush2.bf16.msra.mxu0 0
    %1889 = vmatprep.subr.bf16.mxu0 0
    %1890 = vmatpush2.bf16.msra.mxu0 0
    %1891 = vmatprep.subr.bf16.mxu0 0
    %1892 = vmatpush2.bf16.msra.mxu0 0
    %1893 = vmatprep.subr.bf16.mxu0 0
    %1894 = vmatpush2.bf16.msra.mxu0 0
    %1895 = vmatprep.mubr.bf16.mxu0 0
    %1896 = vmatmul.mubr.bf16.gmra.mxu0 %v1861
    %v1897 = vpop.f32.mrf.mxu0
    %v1898 = vadd.f32 0.0, %v1897
    %v1899 = vpop.f32.mrf.mxu0
    %v1900 = vpop.f32.mrf.mxu0
    %v1901 = vpop.f32.mrf.mxu0
    %1902 = vdwg.mxu0
    %v1903 = vadd.f32 %v1846, %v1898
    %v1904 = vxor.u32 %v1903, 2147483648
    %v1905 = vmul.f32 %v1904, 1.442695
    %v1906 = vpow.pop %v1905
    %v1907 = vadd.f32 %v1906, 1.0
    %v1908 = vrcp.pop %v1907
    %v1909 = vmul.f32 1.0, %v1908
    %v1910 = vtanh.pop %v1903
    %1912 = vrot.lane.b32.xlu0 %v1845, 32
    %v1913 = vpop.permute.xlu0 %1912
    %v1915 = vmul.f32 %v1909, %v1913
    %1917 = vrot.lane.b32.xlu0 %v1910, 32
    %v1918 = vpop.permute.xlu0 %1917
    %v1920 = vmul.f32 %v1909, %v1918
    %1922 = vrot.lane.b32.xlu0 %v1920, 32
    %v1923 = vpop.permute.xlu0 %1922
    %v1925 = vadd.f32 %v1915, %v1923
    %v1926 = vtanh.pop %v1925
    %1928 = vrot.lane.b32.xlu0 %v1926, 32
    %v1929 = vpop.permute.xlu0 %1928
    %v1931 = vmul.f32 %v1909, %v1929
    %1933 = vrot.lane.b32.xlu0 %v1931, 64
    %v1934 = vpop.permute.xlu0 %1933
    %1936 = vst.msk [vmem:[#allocation5] sm:$0xff] %vm314, %v1934
    %s1937 = scalar_lea.vmem [#allocation4], 8
    %v1938 = vld [vmem:[%s1937] sm:$0xff]
    %v1939 = vpack.c.bf16 %v1931, %v1931
    %1941 = vrot.lane.b32.xlu0 %v1939, 64
    %v1942 = vpop.permute.xlu0 %1941
    %v1944 = vsel %vm314, %v1942, 0
    %1946 = vmatprep.subr.bf16.mxu0 0
    %1947 = vmatpush1.bf16.msra.mxu0 0
    %1948 = vmatprep.subr.bf16.mxu0 0
    %1949 = vmatpush1.bf16.msra.mxu0 0
    %1950 = vmatprep.subr.bf16.mxu0 0
    %1951 = vmatpush1.bf16.msra.mxu0 0
    %1952 = vmatprep.subr.bf16.mxu0 0
    %1953 = vmatpush1.bf16.msra.mxu0 0
    %1954 = vmatprep.subr.bf16.mxu0 0
    %1955 = vmatpush1.bf16.msra.mxu0 0
    %1956 = vmatprep.subr.bf16.mxu0 0
    %1957 = vmatpush1.bf16.msra.mxu0 0
    %1958 = vmatprep.subr.bf16.mxu0 0
    %1959 = vmatpush1.bf16.msra.mxu0 %v1857
    %1960 = vmatprep.subr.bf16.mxu0 0
    %1961 = vmatpush1.bf16.msra.mxu0 %v1856
    %1962 = vmatprep.subr.bf16.mxu0 0
    %1963 = vmatpush2.bf16.msra.mxu0 0
    %1964 = vmatprep.subr.bf16.mxu0 0
    %1965 = vmatpush2.bf16.msra.mxu0 0
    %1966 = vmatprep.subr.bf16.mxu0 0
    %1967 = vmatpush2.bf16.msra.mxu0 0
    %1968 = vmatprep.subr.bf16.mxu0 0
    %1969 = vmatpush2.bf16.msra.mxu0 0
    %1970 = vmatprep.subr.bf16.mxu0 0
    %1971 = vmatpush2.bf16.msra.mxu0 0
    %1972 = vmatprep.subr.bf16.mxu0 0
    %1973 = vmatpush2.bf16.msra.mxu0 0
    %1974 = vmatprep.subr.bf16.mxu0 0
    %1975 = vmatpush2.bf16.msra.mxu0 0
    %1976 = vmatprep.subr.bf16.mxu0 0
    %1977 = vmatpush2.bf16.msra.mxu0 0
    %1978 = vmatprep.mubr.bf16.mxu0 0
    %1979 = vmatmul.mubr.bf16.gmra.mxu0 %v1944
    %v1980 = vpop.f32.mrf.mxu0
    %v1981 = vadd.f32 0.0, %v1980
    %v1982 = vpop.f32.mrf.mxu0
    %v1983 = vpop.f32.mrf.mxu0
    %v1984 = vpop.f32.mrf.mxu0
    %1985 = vdwg.mxu0
    %v1986 = vadd.f32 %v1938, %v1981
    %v1987 = vxor.u32 %v1986, 2147483648
    %v1988 = vmul.f32 %v1987, 1.442695
    %v1989 = vpow.pop %v1988
    %v1990 = vadd.f32 %v1989, 1.0
    %v1991 = vrcp.pop %v1990
    %v1992 = vmul.f32 1.0, %v1991
    %v1993 = vtanh.pop %v1986
    %v1994 = vmul.f32 %v1992, %v1925
    %1996 = vrot.lane.b32.xlu0 %v1993, 32
    %v1997 = vpop.permute.xlu0 %1996
    %v1999 = vmul.f32 %v1992, %v1997
    %2001 = vrot.lane.b32.xlu0 %v1999, 32
    %v2002 = vpop.permute.xlu0 %2001
    %v2004 = vadd.f32 %v1994, %v2002
    %v2005 = vtanh.pop %v2004
    %2007 = vrot.lane.b32.xlu0 %v2005, 32
    %v2008 = vpop.permute.xlu0 %2007
    %v2010 = vmul.f32 %v1992, %v2008
    %2012 = vrot.lane.b32.xlu0 %v2010, 64
    %v2013 = vpop.permute.xlu0 %2012
    %s2015 = scalar_lea.vmem [#allocation5], 8
    %2016 = vst.msk [vmem:[%s2015] sm:$0xff] %vm314, %v2013
    %s2017 = scalar_lea.vmem [#allocation4], 16
    %v2018 = vld [vmem:[%s2017] sm:$0xff]
    %v2019 = vpack.c.bf16 %v2010, %v2010
    %2021 = vrot.lane.b32.xlu0 %v2019, 64
    %v2022 = vpop.permute.xlu0 %2021
    %v2024 = vsel %vm314, %v2022, 0
    %2026 = vmatprep.subr.bf16.mxu0 0
    %2027 = vmatpush1.bf16.msra.mxu0 0
    %2028 = vmatprep.subr.bf16.mxu0 0
    %2029 = vmatpush1.bf16.msra.mxu0 0
    %2030 = vmatprep.subr.bf16.mxu0 0
    %2031 = vmatpush1.bf16.msra.mxu0 0
    %2032 = vmatprep.subr.bf16.mxu0 0
    %2033 = vmatpush1.bf16.msra.mxu0 0
    %2034 = vmatprep.subr.bf16.mxu0 0
    %2035 = vmatpush1.bf16.msra.mxu0 0
    %2036 = vmatprep.subr.bf16.mxu0 0
    %2037 = vmatpush1.bf16.msra.mxu0 0
    %2038 = vmatprep.subr.bf16.mxu0 0
    %2039 = vmatpush1.bf16.msra.mxu0 %v1857
    %2040 = vmatprep.subr.bf16.mxu0 0
    %2041 = vmatpush1.bf16.msra.mxu0 %v1856
    %2042 = vmatprep.subr.bf16.mxu0 0
    %2043 = vmatpush2.bf16.msra.mxu0 0
    %2044 = vmatprep.subr.bf16.mxu0 0
    %2045 = vmatpush2.bf16.msra.mxu0 0
    %2046 = vmatprep.subr.bf16.mxu0 0
    %2047 = vmatpush2.bf16.msra.mxu0 0
    %2048 = vmatprep.subr.bf16.mxu0 0
    %2049 = vmatpush2.bf16.msra.mxu0 0
    %2050 = vmatprep.subr.bf16.mxu0 0
    %2051 = vmatpush2.bf16.msra.mxu0 0
    %2052 = vmatprep.subr.bf16.mxu0 0
    %2053 = vmatpush2.bf16.msra.mxu0 0
    %2054 = vmatprep.subr.bf16.mxu0 0
    %2055 = vmatpush2.bf16.msra.mxu0 0
    %2056 = vmatprep.subr.bf16.mxu0 0
    %2057 = vmatpush2.bf16.msra.mxu0 0
    %2058 = vmatprep.mubr.bf16.mxu0 0
    %2059 = vmatmul.mubr.bf16.gmra.mxu0 %v2024
    %v2060 = vpop.f32.mrf.mxu0
    %v2061 = vadd.f32 0.0, %v2060
    %v2062 = vpop.f32.mrf.mxu0
    %v2063 = vpop.f32.mrf.mxu0
    %v2064 = vpop.f32.mrf.mxu0
    %2065 = vdwg.mxu0
    %v2066 = vadd.f32 %v2018, %v2061
    %v2067 = vxor.u32 %v2066, 2147483648
    %v2068 = vmul.f32 %v2067, 1.442695
    %v2069 = vpow.pop %v2068
    %v2070 = vadd.f32 %v2069, 1.0
    %v2071 = vrcp.pop %v2070
    %v2072 = vmul.f32 1.0, %v2071
    %v2073 = vtanh.pop %v2066
    %v2074 = vmul.f32 %v2072, %v2004
    %2076 = vrot.lane.b32.xlu0 %v2073, 32
    %v2077 = vpop.permute.xlu0 %2076
    %v2079 = vmul.f32 %v2072, %v2077
    %2081 = vrot.lane.b32.xlu0 %v2079, 32
    %v2082 = vpop.permute.xlu0 %2081
    %v2084 = vadd.f32 %v2074, %v2082
    %v2085 = vtanh.pop %v2084
    %2087 = vrot.lane.b32.xlu0 %v2085, 32
    %v2088 = vpop.permute.xlu0 %2087
    %v2090 = vmul.f32 %v2072, %v2088
    %2092 = vrot.lane.b32.xlu0 %v2090, 64
    %v2093 = vpop.permute.xlu0 %2092
    %s2095 = scalar_lea.vmem [#allocation5], 16
    %2096 = vst.msk [vmem:[%s2095] sm:$0xff] %vm314, %v2093
    %s2097 = scalar_lea.vmem [#allocation4], 24
    %v2098 = vld [vmem:[%s2097] sm:$0xff]
    %v2099 = vpack.c.bf16 %v2090, %v2090
    %2101 = vrot.lane.b32.xlu0 %v2099, 64
    %v2102 = vpop.permute.xlu0 %2101
    %v2104 = vsel %vm314, %v2102, 0
    %2106 = vmatprep.subr.bf16.mxu0 0
    %2107 = vmatpush1.bf16.msra.mxu0 0
    %2108 = vmatprep.subr.bf16.mxu0 0
    %2109 = vmatpush1.bf16.msra.mxu0 0
    %2110 = vmatprep.subr.bf16.mxu0 0
    %2111 = vmatpush1.bf16.msra.mxu0 0
    %2112 = vmatprep.subr.bf16.mxu0 0
    %2113 = vmatpush1.bf16.msra.mxu0 0
    %2114 = vmatprep.subr.bf16.mxu0 0
    %2115 = vmatpush1.bf16.msra.mxu0 0
    %2116 = vmatprep.subr.bf16.mxu0 0
    %2117 = vmatpush1.bf16.msra.mxu0 0
    %2118 = vmatprep.subr.bf16.mxu0 0
    %2119 = vmatpush1.bf16.msra.mxu0 %v1857
    %2120 = vmatprep.subr.bf16.mxu0 0
    %2121 = vmatpush1.bf16.msra.mxu0 %v1856
    %2122 = vmatprep.subr.bf16.mxu0 0
    %2123 = vmatpush2.bf16.msra.mxu0 0
    %2124 = vmatprep.subr.bf16.mxu0 0
    %2125 = vmatpush2.bf16.msra.mxu0 0
    %2126 = vmatprep.subr.bf16.mxu0 0
    %2127 = vmatpush2.bf16.msra.mxu0 0
    %2128 = vmatprep.subr.bf16.mxu0 0
    %2129 = vmatpush2.bf16.msra.mxu0 0
    %2130 = vmatprep.subr.bf16.mxu0 0
    %2131 = vmatpush2.bf16.msra.mxu0 0
    %2132 = vmatprep.subr.bf16.mxu0 0
    %2133 = vmatpush2.bf16.msra.mxu0 0
    %2134 = vmatprep.subr.bf16.mxu0 0
    %2135 = vmatpush2.bf16.msra.mxu0 0
    %2136 = vmatprep.subr.bf16.mxu0 0
    %2137 = vmatpush2.bf16.msra.mxu0 0
    %2138 = vmatprep.mubr.bf16.mxu0 0
    %2139 = vmatmul.mubr.bf16.gmra.mxu0 %v2104
    %v2140 = vpop.f32.mrf.mxu0
    %v2141 = vadd.f32 0.0, %v2140
    %v2142 = vpop.f32.mrf.mxu0
    %v2143 = vpop.f32.mrf.mxu0
    %v2144 = vpop.f32.mrf.mxu0
    %2145 = vdwg.mxu0
    %v2146 = vadd.f32 %v2098, %v2141
    %v2147 = vxor.u32 %v2146, 2147483648
    %v2148 = vmul.f32 %v2147, 1.442695
    %v2149 = vpow.pop %v2148
    %v2150 = vadd.f32 %v2149, 1.0
    %v2151 = vrcp.pop %v2150
    %v2152 = vmul.f32 1.0, %v2151
    %v2153 = vtanh.pop %v2146
    %v2154 = vmul.f32 %v2152, %v2084
    %2156 = vrot.lane.b32.xlu0 %v2153, 32
    %v2157 = vpop.permute.xlu0 %2156
    %v2159 = vmul.f32 %v2152, %v2157
    %2161 = vrot.lane.b32.xlu0 %v2159, 32
    %v2162 = vpop.permute.xlu0 %2161
    %v2164 = vadd.f32 %v2154, %v2162
    %v2165 = vtanh.pop %v2164
    %2167 = vrot.lane.b32.xlu0 %v2165, 32
    %v2168 = vpop.permute.xlu0 %2167
    %v2170 = vmul.f32 %v2152, %v2168
    %2172 = vrot.lane.b32.xlu0 %v2170, 64
    %v2173 = vpop.permute.xlu0 %2172
    %s2175 = scalar_lea.vmem [#allocation5], 24
    %2176 = vst.msk [vmem:[%s2175] sm:$0xff] %vm314, %v2173
    %s2177 = scalar_lea.vmem [#allocation4], 32
    %v2178 = vld [vmem:[%s2177] sm:$0xff]
    %v2179 = vpack.c.bf16 %v2170, %v2170
    %2181 = vrot.lane.b32.xlu0 %v2179, 64
    %v2182 = vpop.permute.xlu0 %2181
    %v2184 = vsel %vm314, %v2182, 0
    %2186 = vmatprep.subr.bf16.mxu0 0
    %2187 = vmatpush1.bf16.msra.mxu0 0
    %2188 = vmatprep.subr.bf16.mxu0 0
    %2189 = vmatpush1.bf16.msra.mxu0 0
    %2190 = vmatprep.subr.bf16.mxu0 0
    %2191 = vmatpush1.bf16.msra.mxu0 0
    %2192 = vmatprep.subr.bf16.mxu0 0
    %2193 = vmatpush1.bf16.msra.mxu0 0
    %2194 = vmatprep.subr.bf16.mxu0 0
    %2195 = vmatpush1.bf16.msra.mxu0 0
    %2196 = vmatprep.subr.bf16.mxu0 0
    %2197 = vmatpush1.bf16.msra.mxu0 0
    %2198 = vmatprep.subr.bf16.mxu0 0
    %2199 = vmatpush1.bf16.msra.mxu0 %v1857
    %2200 = vmatprep.subr.bf16.mxu0 0
    %2201 = vmatpush1.bf16.msra.mxu0 %v1856
    %2202 = vmatprep.subr.bf16.mxu0 0
    %2203 = vmatpush2.bf16.msra.mxu0 0
    %2204 = vmatprep.subr.bf16.mxu0 0
    %2205 = vmatpush2.bf16.msra.mxu0 0
    %2206 = vmatprep.subr.bf16.mxu0 0
    %2207 = vmatpush2.bf16.msra.mxu0 0
    %2208 = vmatprep.subr.bf16.mxu0 0
    %2209 = vmatpush2.bf16.msra.mxu0 0
    %2210 = vmatprep.subr.bf16.mxu0 0
    %2211 = vmatpush2.bf16.msra.mxu0 0
    %2212 = vmatprep.subr.bf16.mxu0 0
    %2213 = vmatpush2.bf16.msra.mxu0 0
    %2214 = vmatprep.subr.bf16.mxu0 0
    %2215 = vmatpush2.bf16.msra.mxu0 0
    %2216 = vmatprep.subr.bf16.mxu0 0
    %2217 = vmatpush2.bf16.msra.mxu0 0
    %2218 = vmatprep.mubr.bf16.mxu0 0
    %2219 = vmatmul.mubr.bf16.gmra.mxu0 %v2184
    %v2220 = vpop.f32.mrf.mxu0
    %v2221 = vadd.f32 0.0, %v2220
    %v2222 = vpop.f32.mrf.mxu0
    %v2223 = vpop.f32.mrf.mxu0
    %v2224 = vpop.f32.mrf.mxu0
    %2225 = vdwg.mxu0
    %v2226 = vadd.f32 %v2178, %v2221
    %v2227 = vxor.u32 %v2226, 2147483648
    %v2228 = vmul.f32 %v2227, 1.442695
    %v2229 = vpow.pop %v2228
    %v2230 = vadd.f32 %v2229, 1.0
    %v2231 = vrcp.pop %v2230
    %v2232 = vmul.f32 1.0, %v2231
    %v2233 = vtanh.pop %v2226
    %v2234 = vmul.f32 %v2232, %v2164
    %2236 = vrot.lane.b32.xlu0 %v2233, 32
    %v2237 = vpop.permute.xlu0 %2236
    %v2239 = vmul.f32 %v2232, %v2237
    %2241 = vrot.lane.b32.xlu0 %v2239, 32
    %v2242 = vpop.permute.xlu0 %2241
    %v2244 = vadd.f32 %v2234, %v2242
    %v2245 = vtanh.pop %v2244
    %2247 = vrot.lane.b32.xlu0 %v2245, 32
    %v2248 = vpop.permute.xlu0 %2247
    %v2250 = vmul.f32 %v2232, %v2248
    %2252 = vrot.lane.b32.xlu0 %v2250, 64
    %v2253 = vpop.permute.xlu0 %2252
    %s2255 = scalar_lea.vmem [#allocation5], 32
    %2256 = vst.msk [vmem:[%s2255] sm:$0xff] %vm314, %v2253
    %s2257 = scalar_lea.vmem [#allocation4], 40
    %v2258 = vld [vmem:[%s2257] sm:$0xff]
    %v2259 = vpack.c.bf16 %v2250, %v2250
    %2261 = vrot.lane.b32.xlu0 %v2259, 64
    %v2262 = vpop.permute.xlu0 %2261
    %v2264 = vsel %vm314, %v2262, 0
    %2266 = vmatprep.subr.bf16.mxu0 0
    %2267 = vmatpush1.bf16.msra.mxu0 0
    %2268 = vmatprep.subr.bf16.mxu0 0
    %2269 = vmatpush1.bf16.msra.mxu0 0
    %2270 = vmatprep.subr.bf16.mxu0 0
    %2271 = vmatpush1.bf16.msra.mxu0 0
    %2272 = vmatprep.subr.bf16.mxu0 0
    %2273 = vmatpush1.bf16.msra.mxu0 0
    %2274 = vmatprep.subr.bf16.mxu0 0
    %2275 = vmatpush1.bf16.msra.mxu0 0
    %2276 = vmatprep.subr.bf16.mxu0 0
    %2277 = vmatpush1.bf16.msra.mxu0 0
    %2278 = vmatprep.subr.bf16.mxu0 0
    %2279 = vmatpush1.bf16.msra.mxu0 %v1857
    %2280 = vmatprep.subr.bf16.mxu0 0
    %2281 = vmatpush1.bf16.msra.mxu0 %v1856
    %2282 = vmatprep.subr.bf16.mxu0 0
    %2283 = vmatpush2.bf16.msra.mxu0 0
    %2284 = vmatprep.subr.bf16.mxu0 0
    %2285 = vmatpush2.bf16.msra.mxu0 0
    %2286 = vmatprep.subr.bf16.mxu0 0
    %2287 = vmatpush2.bf16.msra.mxu0 0
    %2288 = vmatprep.subr.bf16.mxu0 0
    %2289 = vmatpush2.bf16.msra.mxu0 0
    %2290 = vmatprep.subr.bf16.mxu0 0
    %2291 = vmatpush2.bf16.msra.mxu0 0
    %2292 = vmatprep.subr.bf16.mxu0 0
    %2293 = vmatpush2.bf16.msra.mxu0 0
    %2294 = vmatprep.subr.bf16.mxu0 0
    %2295 = vmatpush2.bf16.msra.mxu0 0
    %2296 = vmatprep.subr.bf16.mxu0 0
    %2297 = vmatpush2.bf16.msra.mxu0 0
    %2298 = vmatprep.mubr.bf16.mxu0 0
    %2299 = vmatmul.mubr.bf16.gmra.mxu0 %v2264
    %v2300 = vpop.f32.mrf.mxu0
    %v2301 = vadd.f32 0.0, %v2300
    %v2302 = vpop.f32.mrf.mxu0
    %v2303 = vpop.f32.mrf.mxu0
    %v2304 = vpop.f32.mrf.mxu0
    %2305 = vdwg.mxu0
    %v2306 = vadd.f32 %v2258, %v2301
    %v2307 = vxor.u32 %v2306, 2147483648
    %v2308 = vmul.f32 %v2307, 1.442695
    %v2309 = vpow.pop %v2308
    %v2310 = vadd.f32 %v2309, 1.0
    %v2311 = vrcp.pop %v2310
    %v2312 = vmul.f32 1.0, %v2311
    %v2313 = vtanh.pop %v2306
    %v2314 = vmul.f32 %v2312, %v2244
    %2316 = vrot.lane.b32.xlu0 %v2313, 32
    %v2317 = vpop.permute.xlu0 %2316
    %v2319 = vmul.f32 %v2312, %v2317
    %2321 = vrot.lane.b32.xlu0 %v2319, 32
    %v2322 = vpop.permute.xlu0 %2321
    %v2324 = vadd.f32 %v2314, %v2322
    %v2325 = vtanh.pop %v2324
    %2327 = vrot.lane.b32.xlu0 %v2325, 32
    %v2328 = vpop.permute.xlu0 %2327
    %v2330 = vmul.f32 %v2312, %v2328
    %2332 = vrot.lane.b32.xlu0 %v2330, 64
    %v2333 = vpop.permute.xlu0 %2332
    %s2335 = scalar_lea.vmem [#allocation5], 40
    %2336 = vst.msk [vmem:[%s2335] sm:$0xff] %vm314, %v2333
    %s2337 = scalar_lea.vmem [#allocation4], 48
    %v2338 = vld [vmem:[%s2337] sm:$0xff]
    %v2339 = vpack.c.bf16 %v2330, %v2330
    %2341 = vrot.lane.b32.xlu0 %v2339, 64
    %v2342 = vpop.permute.xlu0 %2341
    %v2344 = vsel %vm314, %v2342, 0
    %2346 = vmatprep.subr.bf16.mxu0 0
    %2347 = vmatpush1.bf16.msra.mxu0 0
    %2348 = vmatprep.subr.bf16.mxu0 0
    %2349 = vmatpush1.bf16.msra.mxu0 0
    %2350 = vmatprep.subr.bf16.mxu0 0
    %2351 = vmatpush1.bf16.msra.mxu0 0
    %2352 = vmatprep.subr.bf16.mxu0 0
    %2353 = vmatpush1.bf16.msra.mxu0 0
    %2354 = vmatprep.subr.bf16.mxu0 0
    %2355 = vmatpush1.bf16.msra.mxu0 0
    %2356 = vmatprep.subr.bf16.mxu0 0
    %2357 = vmatpush1.bf16.msra.mxu0 0
    %2358 = vmatprep.subr.bf16.mxu0 0
    %2359 = vmatpush1.bf16.msra.mxu0 %v1857
    %2360 = vmatprep.subr.bf16.mxu0 0
    %2361 = vmatpush1.bf16.msra.mxu0 %v1856
    %2362 = vmatprep.subr.bf16.mxu0 0
    %2363 = vmatpush2.bf16.msra.mxu0 0
    %2364 = vmatprep.subr.bf16.mxu0 0
    %2365 = vmatpush2.bf16.msra.mxu0 0
    %2366 = vmatprep.subr.bf16.mxu0 0
    %2367 = vmatpush2.bf16.msra.mxu0 0
    %2368 = vmatprep.subr.bf16.mxu0 0
    %2369 = vmatpush2.bf16.msra.mxu0 0
    %2370 = vmatprep.subr.bf16.mxu0 0
    %2371 = vmatpush2.bf16.msra.mxu0 0
    %2372 = vmatprep.subr.bf16.mxu0 0
    %2373 = vmatpush2.bf16.msra.mxu0 0
    %2374 = vmatprep.subr.bf16.mxu0 0
    %2375 = vmatpush2.bf16.msra.mxu0 0
    %2376 = vmatprep.subr.bf16.mxu0 0
    %2377 = vmatpush2.bf16.msra.mxu0 0
    %2378 = vmatprep.mubr.bf16.mxu0 0
    %2379 = vmatmul.mubr.bf16.gmra.mxu0 %v2344
    %v2380 = vpop.f32.mrf.mxu0
    %v2381 = vadd.f32 0.0, %v2380
    %v2382 = vpop.f32.mrf.mxu0
    %v2383 = vpop.f32.mrf.mxu0
    %v2384 = vpop.f32.mrf.mxu0
    %2385 = vdwg.mxu0
    %v2386 = vadd.f32 %v2338, %v2381
    %v2387 = vxor.u32 %v2386, 2147483648
    %v2388 = vmul.f32 %v2387, 1.442695
    %v2389 = vpow.pop %v2388
    %v2390 = vadd.f32 %v2389, 1.0
    %v2391 = vrcp.pop %v2390
    %v2392 = vmul.f32 1.0, %v2391
    %v2393 = vtanh.pop %v2386
    %v2394 = vmul.f32 %v2392, %v2324
    %2396 = vrot.lane.b32.xlu0 %v2393, 32
    %v2397 = vpop.permute.xlu0 %2396
    %v2399 = vmul.f32 %v2392, %v2397
    %2401 = vrot.lane.b32.xlu0 %v2399, 32
    %v2402 = vpop.permute.xlu0 %2401
    %v2404 = vadd.f32 %v2394, %v2402
    %v2405 = vtanh.pop %v2404
    %2407 = vrot.lane.b32.xlu0 %v2405, 32
    %v2408 = vpop.permute.xlu0 %2407
    %v2410 = vmul.f32 %v2392, %v2408
    %2412 = vrot.lane.b32.xlu0 %v2410, 64
    %v2413 = vpop.permute.xlu0 %2412
    %s2415 = scalar_lea.vmem [#allocation5], 48
    %2416 = vst.msk [vmem:[%s2415] sm:$0xff] %vm314, %v2413
    %s2417 = scalar_lea.vmem [#allocation4], 56
    %v2418 = vld [vmem:[%s2417] sm:$0xff]
    %v2419 = vpack.c.bf16 %v2410, %v2410
    %2421 = vrot.lane.b32.xlu0 %v2419, 64
    %v2422 = vpop.permute.xlu0 %2421
    %v2424 = vsel %vm314, %v2422, 0
    %2426 = vmatprep.subr.bf16.mxu0 0
    %2427 = vmatpush1.bf16.msra.mxu0 0
    %2428 = vmatprep.subr.bf16.mxu0 0
    %2429 = vmatpush1.bf16.msra.mxu0 0
    %2430 = vmatprep.subr.bf16.mxu0 0
    %2431 = vmatpush1.bf16.msra.mxu0 0
    %2432 = vmatprep.subr.bf16.mxu0 0
    %2433 = vmatpush1.bf16.msra.mxu0 0
    %2434 = vmatprep.subr.bf16.mxu0 0
    %2435 = vmatpush1.bf16.msra.mxu0 0
    %2436 = vmatprep.subr.bf16.mxu0 0
    %2437 = vmatpush1.bf16.msra.mxu0 0
    %2438 = vmatprep.subr.bf16.mxu0 0
    %2439 = vmatpush1.bf16.msra.mxu0 %v1857
    %2440 = vmatprep.subr.bf16.mxu0 0
    %2441 = vmatpush1.bf16.msra.mxu0 %v1856
    %2442 = vmatprep.subr.bf16.mxu0 0
    %2443 = vmatpush2.bf16.msra.mxu0 0
    %2444 = vmatprep.subr.bf16.mxu0 0
    %2445 = vmatpush2.bf16.msra.mxu0 0
    %2446 = vmatprep.subr.bf16.mxu0 0
    %2447 = vmatpush2.bf16.msra.mxu0 0
    %2448 = vmatprep.subr.bf16.mxu0 0
    %2449 = vmatpush2.bf16.msra.mxu0 0
    %2450 = vmatprep.subr.bf16.mxu0 0
    %2451 = vmatpush2.bf16.msra.mxu0 0
    %2452 = vmatprep.subr.bf16.mxu0 0
    %2453 = vmatpush2.bf16.msra.mxu0 0
    %2454 = vmatprep.subr.bf16.mxu0 0
    %2455 = vmatpush2.bf16.msra.mxu0 0
    %2456 = vmatprep.subr.bf16.mxu0 0
    %2457 = vmatpush2.bf16.msra.mxu0 0
    %2458 = vmatprep.mubr.bf16.mxu0 0
    %2459 = vmatmul.mubr.bf16.gmra.mxu0 %v2424
    %v2460 = vpop.f32.mrf.mxu0
    %v2461 = vadd.f32 0.0, %v2460
    %v2462 = vpop.f32.mrf.mxu0
    %v2463 = vpop.f32.mrf.mxu0
    %v2464 = vpop.f32.mrf.mxu0
    %2465 = vdwg.mxu0
    %v2466 = vadd.f32 %v2418, %v2461
    %v2467 = vxor.u32 %v2466, 2147483648
    %v2468 = vmul.f32 %v2467, 1.442695
    %v2469 = vpow.pop %v2468
    %v2470 = vadd.f32 %v2469, 1.0
    %v2471 = vrcp.pop %v2470
    %v2472 = vmul.f32 1.0, %v2471
    %v2473 = vtanh.pop %v2466
    %v2474 = vmul.f32 %v2472, %v2404
    %2476 = vrot.lane.b32.xlu0 %v2473, 32
    %v2477 = vpop.permute.xlu0 %2476
    %v2479 = vmul.f32 %v2472, %v2477
    %2481 = vrot.lane.b32.xlu0 %v2479, 32
    %v2482 = vpop.permute.xlu0 %2481
    %v2484 = vadd.f32 %v2474, %v2482
    %v2485 = vtanh.pop %v2484
    %2487 = vrot.lane.b32.xlu0 %v2485, 32
    %v2488 = vpop.permute.xlu0 %2487
    %v2490 = vmul.f32 %v2472, %v2488
    %2492 = vrot.lane.b32.xlu0 %v2490, 64
    %v2493 = vpop.permute.xlu0 %2492
    %s2495 = scalar_lea.vmem [#allocation5], 56
    %2496 = vst.msk [vmem:[%s2495] sm:$0xff] %vm314, %v2493
    %2497 = vst.msk [vmem:[#allocation2] sm:$0xff] %vm314, %v2493
    %2499 = vrot.lane.b32.xlu0 %v2484, 96
    %v2500 = vpop.permute.xlu0 %2499
    %2502 = vst.msk [vmem:[#allocation3] sm:$0xff] %vm314, %v2500
    %v2503 = vld [vmem:[#allocation6] sm:$0xff]
    %v2504 = vld [vmem:[#allocation6 + $0x8] sm:$0xff]
    %v2505 = vld [vmem:[#allocation6 + $0x10] sm:$0xff]
    %v2506 = vld [vmem:[#allocation6 + $0x18] sm:$0xff]
    %v2507 = vld [vmem:[#allocation6 + $0x20] sm:$0xff]
    %v2508 = vld [vmem:[#allocation6 + $0x28] sm:$0xff]
    %v2509 = vld [vmem:[#allocation6 + $0x30] sm:$0xff]
    %v2510 = vld [vmem:[#allocation6 + $0x38] sm:$0xff]
    %v2511 = vld [vmem:[#allocation5] sm:$0xff]
    %v2512 = vld [vmem:[#allocation5 + $0x8] sm:$0xff]
    %v2513 = vld [vmem:[#allocation5 + $0x10] sm:$0xff]
    %v2514 = vld [vmem:[#allocation5 + $0x18] sm:$0xff]
    %v2515 = vld [vmem:[#allocation5 + $0x20] sm:$0xff]
    %v2516 = vld [vmem:[#allocation5 + $0x28] sm:$0xff]
    %v2517 = vld [vmem:[#allocation5 + $0x30] sm:$0xff]
    %v2518 = vld [vmem:[#allocation5 + $0x38] sm:$0xff]
    %v2519 = vpack.c.bf16 %v2512, %v2511
    %v2520 = vpack.c.bf16 %v2514, %v2513
    %v2521 = vpack.c.bf16 %v2516, %v2515
    %v2522 = vpack.c.bf16 %v2518, %v2517
    %v2527 = vunpack.c.l.b16 %v138
    %v2528 = vunpack.c.l.b16 %v139
    %v2529 = vunpack.c.l.b16 %v140
    %v2530 = vunpack.c.l.b16 %v141
    %v2531 = vpack.c.b16 %v2528, %v2527
    %v2532 = vpack.c.b16 %v2530, %v2529
    %v2536 = vsel %vm314, %v2519, 0
    %v2539 = vsel %vm314, %v2520, 0
    %v2542 = vsel %vm314, %v2521, 0
    %v2545 = vsel %vm314, %v2522, 0
    %2547 = vmatprep.subr.bf16.mxu0 0
    %2548 = vmatpush1.bf16.msra.mxu0 0
    %2549 = vmatprep.subr.bf16.mxu0 0
    %2550 = vmatpush1.bf16.msra.mxu0 0
    %2551 = vmatprep.subr.bf16.mxu0 0
    %2552 = vmatpush1.bf16.msra.mxu0 0
    %2553 = vmatprep.subr.bf16.mxu0 0
    %2554 = vmatpush1.bf16.msra.mxu0 0
    %2555 = vmatprep.subr.bf16.mxu0 0
    %2556 = vmatpush1.bf16.msra.mxu0 0
    %2557 = vmatprep.subr.bf16.mxu0 0
    %2558 = vmatpush1.bf16.msra.mxu0 0
    %2559 = vmatprep.subr.bf16.mxu0 0
    %2560 = vmatpush1.bf16.msra.mxu0 %v2532
    %2561 = vmatprep.subr.bf16.mxu0 0
    %2562 = vmatpush1.bf16.msra.mxu0 %v2531
    %2563 = vmatprep.subr.bf16.mxu0 0
    %2564 = vmatpush2.bf16.msra.mxu0 0
    %2565 = vmatprep.subr.bf16.mxu0 0
    %2566 = vmatpush2.bf16.msra.mxu0 0
    %2567 = vmatprep.subr.bf16.mxu0 0
    %2568 = vmatpush2.bf16.msra.mxu0 0
    %2569 = vmatprep.subr.bf16.mxu0 0
    %2570 = vmatpush2.bf16.msra.mxu0 0
    %2571 = vmatprep.subr.bf16.mxu0 0
    %2572 = vmatpush2.bf16.msra.mxu0 0
    %2573 = vmatprep.subr.bf16.mxu0 0
    %2574 = vmatpush2.bf16.msra.mxu0 0
    %2575 = vmatprep.subr.bf16.mxu0 0
    %2576 = vmatpush2.bf16.msra.mxu0 0
    %2577 = vmatprep.subr.bf16.mxu0 0
    %2578 = vmatpush2.bf16.msra.mxu0 0
    %2579 = vmatprep.mubr.bf16.mxu0 0
    %2580 = vmatmul.mubr.bf16.gmra.mxu0 %v2536
    %v2581 = vpop.f32.mrf.mxu0
    %v2582 = vadd.f32 0.0, %v2581
    %v2583 = vpop.f32.mrf.mxu0
    %v2584 = vpop.f32.mrf.mxu0
    %v2585 = vadd.f32 0.0, %v2584
    %v2586 = vpop.f32.mrf.mxu0
    %2587 = vmatprep.mubr.bf16.mxu0 0
    %2588 = vmatmul.mubr.bf16.gmra.mxu0 %v2539
    %v2589 = vpop.f32.mrf.mxu0
    %v2590 = vadd.f32 0.0, %v2589
    %v2591 = vpop.f32.mrf.mxu0
    %v2592 = vpop.f32.mrf.mxu0
    %v2593 = vadd.f32 0.0, %v2592
    %v2594 = vpop.f32.mrf.mxu0
    %2595 = vmatprep.mubr.bf16.mxu0 0
    %2596 = vmatmul.mubr.bf16.gmra.mxu0 %v2542
    %v2597 = vpop.f32.mrf.mxu0
    %v2598 = vadd.f32 0.0, %v2597
    %v2599 = vpop.f32.mrf.mxu0
    %v2600 = vpop.f32.mrf.mxu0
    %v2601 = vadd.f32 0.0, %v2600
    %v2602 = vpop.f32.mrf.mxu0
    %2603 = vmatprep.mubr.bf16.mxu0 0
    %2604 = vmatmul.mubr.bf16.gmra.mxu0 %v2545
    %v2605 = vpop.f32.mrf.mxu0
    %v2606 = vadd.f32 0.0, %v2605
    %v2607 = vpop.f32.mrf.mxu0
    %v2608 = vpop.f32.mrf.mxu0
    %v2609 = vadd.f32 0.0, %v2608
    %v2610 = vpop.f32.mrf.mxu0
    %2611 = vdwg.mxu0
    %v2612 = vadd.f32 %v2503, %v2582
    %v2613 = vadd.f32 %v2504, %v2585
    %v2614 = vadd.f32 %v2505, %v2590
    %v2615 = vadd.f32 %v2506, %v2593
    %v2616 = vadd.f32 %v2507, %v2598
    %v2617 = vadd.f32 %v2508, %v2601
    %v2618 = vadd.f32 %v2509, %v2606
    %v2619 = vadd.f32 %v2510, %v2609
    %vm2620 = vcmp.gt.f32.partialorder %v2612, 0.0
    %vm2621 = vcmp.gt.f32.partialorder %v2613, 0.0
    %vm2622 = vcmp.gt.f32.partialorder %v2614, 0.0
    %vm2623 = vcmp.gt.f32.partialorder %v2615, 0.0
    %vm2624 = vcmp.gt.f32.partialorder %v2616, 0.0
    %vm2625 = vcmp.gt.f32.partialorder %v2617, 0.0
    %vm2626 = vcmp.gt.f32.partialorder %v2618, 0.0
    %vm2627 = vcmp.gt.f32.partialorder %v2619, 0.0
    %v2628 = vmul.f32 %v2612, 0.1
    %v2629 = vmul.f32 %v2613, 0.1
    %v2630 = vmul.f32 %v2614, 0.1
    %v2631 = vmul.f32 %v2615, 0.1
    %v2632 = vmul.f32 %v2616, 0.1
    %v2633 = vmul.f32 %v2617, 0.1
    %v2634 = vmul.f32 %v2618, 0.1
    %v2635 = vmul.f32 %v2619, 0.1
    %v2636 = vsel %vm2620, %v2612, %v2628
    %v2637 = vsel %vm2621, %v2613, %v2629
    %v2638 = vsel %vm2622, %v2614, %v2630
    %v2639 = vsel %vm2623, %v2615, %v2631
    %v2640 = vsel %vm2624, %v2616, %v2632
    %v2641 = vsel %vm2625, %v2617, %v2633
    %v2642 = vsel %vm2626, %v2618, %v2634
    %v2643 = vsel %vm2627, %v2619, %v2635
    %v2644 = vpack.c.bf16 %v2637, %v2636
    %v2645 = vpack.c.bf16 %v2639, %v2638
    %v2646 = vpack.c.bf16 %v2641, %v2640
    %v2647 = vpack.c.bf16 %v2643, %v2642
    %v2649 = vlaneseq
    %v2650 = vshrl.u32 %v2649, 7
    %v2651 = vsub.s32 0, %v2650
    %v2652 = vrot.slane %v127, %v2651
    %v2658 = vunpack.c.l.b16 %v142
    %v2659 = vunpack.c.l.b16 %v143
    %v2660 = vunpack.c.l.b16 %v144
    %v2661 = vunpack.c.l.b16 %v145
    %v2662 = vpack.c.b16 %v2659, %v2658
    %v2663 = vpack.c.b16 %v2661, %v2660
    %v2667 = vsel %vm314, %v2644, 0
    %v2670 = vsel %vm314, %v2645, 0
    %v2673 = vsel %vm314, %v2646, 0
    %v2676 = vsel %vm314, %v2647, 0
    %2678 = vmatprep.subr.bf16.mxu0 0
    %2679 = vmatpush1.bf16.msra.mxu0 0
    %2680 = vmatprep.subr.bf16.mxu0 0
    %2681 = vmatpush1.bf16.msra.mxu0 0
    %2682 = vmatprep.subr.bf16.mxu0 0
    %2683 = vmatpush1.bf16.msra.mxu0 0
    %2684 = vmatprep.subr.bf16.mxu0 0
    %2685 = vmatpush1.bf16.msra.mxu0 0
    %2686 = vmatprep.subr.bf16.mxu0 0
    %2687 = vmatpush1.bf16.msra.mxu0 0
    %2688 = vmatprep.subr.bf16.mxu0 0
    %2689 = vmatpush1.bf16.msra.mxu0 0
    %2690 = vmatprep.subr.bf16.mxu0 0
    %2691 = vmatpush1.bf16.msra.mxu0 %v2663
    %2692 = vmatprep.subr.bf16.mxu0 0
    %2693 = vmatpush1.bf16.msra.mxu0 %v2662
    %2694 = vmatprep.subr.bf16.mxu0 0
    %2695 = vmatpush2.bf16.msra.mxu0 0
    %2696 = vmatprep.subr.bf16.mxu0 0
    %2697 = vmatpush2.bf16.msra.mxu0 0
    %2698 = vmatprep.subr.bf16.mxu0 0
    %2699 = vmatpush2.bf16.msra.mxu0 0
    %2700 = vmatprep.subr.bf16.mxu0 0
    %2701 = vmatpush2.bf16.msra.mxu0 0
    %2702 = vmatprep.subr.bf16.mxu0 0
    %2703 = vmatpush2.bf16.msra.mxu0 0
    %2704 = vmatprep.subr.bf16.mxu0 0
    %2705 = vmatpush2.bf16.msra.mxu0 0
    %2706 = vmatprep.subr.bf16.mxu0 0
    %2707 = vmatpush2.bf16.msra.mxu0 0
    %2708 = vmatprep.subr.bf16.mxu0 0
    %2709 = vmatpush2.bf16.msra.mxu0 0
    %2710 = vmatprep.mubr.bf16.mxu0 0
    %2711 = vmatmul.mubr.bf16.gmra.mxu0 %v2667
    %v2712 = vpop.f32.mrf.mxu0
    %v2713 = vadd.f32 %v2652, %v2712
    %v2714 = vpop.f32.mrf.mxu0
    %v2715 = vpop.f32.mrf.mxu0
    %v2716 = vadd.f32 %v2652, %v2715
    %v2717 = vpop.f32.mrf.mxu0
    %2718 = vmatprep.mubr.bf16.mxu0 0
    %2719 = vmatmul.mubr.bf16.gmra.mxu0 %v2670
    %v2720 = vpop.f32.mrf.mxu0
    %v2721 = vadd.f32 %v2652, %v2720
    %v2722 = vpop.f32.mrf.mxu0
    %v2723 = vpop.f32.mrf.mxu0
    %v2724 = vadd.f32 %v2652, %v2723
    %v2725 = vpop.f32.mrf.mxu0
    %2726 = vmatprep.mubr.bf16.mxu0 0
    %2727 = vmatmul.mubr.bf16.gmra.mxu0 %v2673
    %v2728 = vpop.f32.mrf.mxu0
    %v2729 = vadd.f32 %v2652, %v2728
    %v2730 = vpop.f32.mrf.mxu0
    %v2731 = vpop.f32.mrf.mxu0
    %v2732 = vadd.f32 %v2652, %v2731
    %v2733 = vpop.f32.mrf.mxu0
    %2734 = vmatprep.mubr.bf16.mxu0 0
    %2735 = vmatmul.mubr.bf16.gmra.mxu0 %v2676
    %v2736 = vpop.f32.mrf.mxu0
    %v2737 = vadd.f32 %v2652, %v2736
    %v2738 = vpop.f32.mrf.mxu0
    %v2739 = vpop.f32.mrf.mxu0
    %v2740 = vadd.f32 %v2652, %v2739
    %v2741 = vpop.f32.mrf.mxu0
    %2742 = vdwg.mxu0
    %v2743 = vtanh.pop %v2713
    %v2744 = vtanh.pop %v2716
    %v2745 = vtanh.pop %v2721
    %v2746 = vtanh.pop %v2724
    %v2747 = vtanh.pop %v2729
    %v2748 = vtanh.pop %v2732
    %v2749 = vtanh.pop %v2737
    %v2750 = vtanh.pop %v2740
    %v2751 = vadd.f32 %v2743, 1.0
    %v2752 = vadd.f32 %v2744, 1.0
    %v2753 = vadd.f32 %v2745, 1.0
    %v2754 = vadd.f32 %v2746, 1.0
    %v2755 = vadd.f32 %v2747, 1.0
    %v2756 = vadd.f32 %v2748, 1.0
    %v2757 = vadd.f32 %v2749, 1.0
    %v2758 = vadd.f32 %v2750, 1.0
    %v2759 = vmul.f32 %v2751, 0.2495
    %v2760 = vmul.f32 %v2752, 0.2495
    %v2761 = vmul.f32 %v2753, 0.2495
    %v2762 = vmul.f32 %v2754, 0.2495
    %v2763 = vmul.f32 %v2755, 0.2495
    %v2764 = vmul.f32 %v2756, 0.2495
    %v2765 = vmul.f32 %v2757, 0.2495
    %v2766 = vmul.f32 %v2758, 0.2495
    %v2767 = vadd.f32 %v2759, 0.001
    %v2768 = vadd.f32 %v2760, 0.001
    %v2769 = vadd.f32 %v2761, 0.001
    %v2770 = vadd.f32 %v2762, 0.001
    %v2771 = vadd.f32 %v2763, 0.001
    %v2772 = vadd.f32 %v2764, 0.001
    %v2773 = vadd.f32 %v2765, 0.001
    %v2774 = vadd.f32 %v2766, 0.001
    %v2775 = vlaneseq
    %v2776 = vand.u32 %v2775, 127
    %vm2777 = vcmp.lt.s32.totalorder %v2776, 8
    %v2778 = vsel %vm2777, %v2743, %v2767
    %v2779 = vsel %vm2777, %v2744, %v2768
    %v2780 = vsel %vm2777, %v2745, %v2769
    %v2781 = vsel %vm2777, %v2746, %v2770
    %v2782 = vsel %vm2777, %v2747, %v2771
    %v2783 = vsel %vm2777, %v2748, %v2772
    %v2784 = vsel %vm2777, %v2749, %v2773
    %v2785 = vsel %vm2777, %v2750, %v2774
    %2786 = vst.msk [vmem:[#allocation7] sm:$0xff] %vm228, %v2778
    %2787 = vst.msk [vmem:[#allocation7 + $0x8] sm:$0xff] %vm228, %v2779
    %2788 = vst.msk [vmem:[#allocation7 + $0x10] sm:$0xff] %vm228, %v2780
    %2789 = vst.msk [vmem:[#allocation7 + $0x18] sm:$0xff] %vm228, %v2781
    %2790 = vst.msk [vmem:[#allocation7 + $0x20] sm:$0xff] %vm228, %v2782
    %2791 = vst.msk [vmem:[#allocation7 + $0x28] sm:$0xff] %vm228, %v2783
    %2792 = vst.msk [vmem:[#allocation7 + $0x30] sm:$0xff] %vm228, %v2784
    %2793 = vst.msk [vmem:[#allocation7 + $0x38] sm:$0xff] %vm228, %v2785
    %v2794 = vld [vmem:[#allocation7] sm:$0x1]
    %v2795 = vld [vmem:[#allocation7 + $0x8] sm:$0x1]
    %v2796 = vld [vmem:[#allocation7 + $0x10] sm:$0x1]
    %v2797 = vld [vmem:[#allocation7 + $0x18] sm:$0x1]
    %v2798 = vld [vmem:[#allocation7 + $0x20] sm:$0x1]
    %v2799 = vld [vmem:[#allocation7 + $0x28] sm:$0x1]
    %v2800 = vld [vmem:[#allocation7 + $0x30] sm:$0x1]
    %v2801 = vld [vmem:[#allocation7 + $0x38] sm:$0x1]
    %v2810 = vrot.slane %v2795, 7
    %vm2811 = vcmask 1041409
    %v2812 = vsel %vm2811, %v2810, %v2794
    %v2813 = vrot.slane %v2796, 6
    %vm2814 = vcmask 1042434
    %v2815 = vsel %vm2814, %v2813, %v2812
    %v2816 = vrot.slane %v2797, 5
    %vm2817 = vcmask 1043459
    %v2818 = vsel %vm2817, %v2816, %v2815
    %v2819 = vrot.slane %v2798, 4
    %vm2820 = vcmask 1044484
    %v2821 = vsel %vm2820, %v2819, %v2818
    %v2822 = vrot.slane %v2799, 3
    %vm2823 = vcmask 1045509
    %v2824 = vsel %vm2823, %v2822, %v2821
    %v2825 = vrot.slane %v2800, 2
    %vm2826 = vcmask 1046534
    %v2827 = vsel %vm2826, %v2825, %v2824
    %v2828 = vrot.slane %v2801, 1
    %vm2829 = vcmask 1047559
    %v2830 = vsel %vm2829, %v2828, %v2827
    %2832 = vst.msk [vmem:[#allocation19] sm:$0xff] %vm228, %v2830
    %v2833 = vld [vmem:[#allocation7 + $0x1] sm:$0x1]
    %v2834 = vld [vmem:[#allocation7 + $0x9] sm:$0x1]
    %v2835 = vld [vmem:[#allocation7 + $0x11] sm:$0x1]
    %v2836 = vld [vmem:[#allocation7 + $0x19] sm:$0x1]
    %v2837 = vld [vmem:[#allocation7 + $0x21] sm:$0x1]
    %v2838 = vld [vmem:[#allocation7 + $0x29] sm:$0x1]
    %v2839 = vld [vmem:[#allocation7 + $0x31] sm:$0x1]
    %v2840 = vld [vmem:[#allocation7 + $0x39] sm:$0x1]
    %v2849 = vrot.slane %v2834, 7
    %v2850 = vsel %vm2811, %v2849, %v2833
    %v2851 = vrot.slane %v2835, 6
    %v2852 = vsel %vm2814, %v2851, %v2850
    %v2853 = vrot.slane %v2836, 5
    %v2854 = vsel %vm2817, %v2853, %v2852
    %v2855 = vrot.slane %v2837, 4
    %v2856 = vsel %vm2820, %v2855, %v2854
    %v2857 = vrot.slane %v2838, 3
    %v2858 = vsel %vm2823, %v2857, %v2856
    %v2859 = vrot.slane %v2839, 2
    %v2860 = vsel %vm2826, %v2859, %v2858
    %v2861 = vrot.slane %v2840, 1
    %v2862 = vsel %vm2829, %v2861, %v2860
    %2863 = vrot.lane.b32.xlu0 %v2862, 16
    %v2864 = vpop.permute.xlu0 %2863
    %vm2866 = vcmask 261248
    %2867 = vst.msk [vmem:[#allocation19] sm:$0xff] %vm2866, %v2864
    %v2868 = vld [vmem:[#allocation7 + $0x2] sm:$0x1]
    %v2869 = vld [vmem:[#allocation7 + $0xa] sm:$0x1]
    %v2870 = vld [vmem:[#allocation7 + $0x12] sm:$0x1]
    %v2871 = vld [vmem:[#allocation7 + $0x1a] sm:$0x1]
    %v2872 = vld [vmem:[#allocation7 + $0x22] sm:$0x1]
    %v2873 = vld [vmem:[#allocation7 + $0x2a] sm:$0x1]
    %v2874 = vld [vmem:[#allocation7 + $0x32] sm:$0x1]
    %v2875 = vld [vmem:[#allocation7 + $0x3a] sm:$0x1]
    %v2884 = vrot.slane %v2869, 7
    %v2885 = vsel %vm2811, %v2884, %v2868
    %v2886 = vrot.slane %v2870, 6
    %v2887 = vsel %vm2814, %v2886, %v2885
    %v2888 = vrot.slane %v2871, 5
    %v2889 = vsel %vm2817, %v2888, %v2887
    %v2890 = vrot.slane %v2872, 4
    %v2891 = vsel %vm2820, %v2890, %v2889
    %v2892 = vrot.slane %v2873, 3
    %v2893 = vsel %vm2823, %v2892, %v2891
    %v2894 = vrot.slane %v2874, 2
    %v2895 = vsel %vm2826, %v2894, %v2893
    %v2896 = vrot.slane %v2875, 1
    %v2897 = vsel %vm2829, %v2896, %v2895
    %2898 = vrot.lane.b32.xlu0 %v2897, 32
    %v2899 = vpop.permute.xlu0 %2898
    %vm2901 = vcmask 392448
    %2902 = vst.msk [vmem:[#allocation19] sm:$0xff] %vm2901, %v2899
    %v2903 = vld [vmem:[#allocation7 + $0x3] sm:$0x1]
    %v2904 = vld [vmem:[#allocation7 + $0xb] sm:$0x1]
    %v2905 = vld [vmem:[#allocation7 + $0x13] sm:$0x1]
    %v2906 = vld [vmem:[#allocation7 + $0x1b] sm:$0x1]
    %v2907 = vld [vmem:[#allocation7 + $0x23] sm:$0x1]
    %v2908 = vld [vmem:[#allocation7 + $0x2b] sm:$0x1]
    %v2909 = vld [vmem:[#allocation7 + $0x33] sm:$0x1]
    %v2910 = vld [vmem:[#allocation7 + $0x3b] sm:$0x1]
    %v2919 = vrot.slane %v2904, 7
    %v2920 = vsel %vm2811, %v2919, %v2903
    %v2921 = vrot.slane %v2905, 6
    %v2922 = vsel %vm2814, %v2921, %v2920
    %v2923 = vrot.slane %v2906, 5
    %v2924 = vsel %vm2817, %v2923, %v2922
    %v2925 = vrot.slane %v2907, 4
    %v2926 = vsel %vm2820, %v2925, %v2924
    %v2927 = vrot.slane %v2908, 3
    %v2928 = vsel %vm2823, %v2927, %v2926
    %v2929 = vrot.slane %v2909, 2
    %v2930 = vsel %vm2826, %v2929, %v2928
    %v2931 = vrot.slane %v2910, 1
    %v2932 = vsel %vm2829, %v2931, %v2930
    %2933 = vrot.lane.b32.xlu0 %v2932, 48
    %v2934 = vpop.permute.xlu0 %2933
    %vm2936 = vcmask 523648
    %2937 = vst.msk [vmem:[#allocation19] sm:$0xff] %vm2936, %v2934
    %v2938 = vld [vmem:[#allocation7 + $0x4] sm:$0x1]
    %v2939 = vld [vmem:[#allocation7 + $0xc] sm:$0x1]
    %v2940 = vld [vmem:[#allocation7 + $0x14] sm:$0x1]
    %v2941 = vld [vmem:[#allocation7 + $0x1c] sm:$0x1]
    %v2942 = vld [vmem:[#allocation7 + $0x24] sm:$0x1]
    %v2943 = vld [vmem:[#allocation7 + $0x2c] sm:$0x1]
    %v2944 = vld [vmem:[#allocation7 + $0x34] sm:$0x1]
    %v2945 = vld [vmem:[#allocation7 + $0x3c] sm:$0x1]
    %v2954 = vrot.slane %v2939, 7
    %v2955 = vsel %vm2811, %v2954, %v2938
    %v2956 = vrot.slane %v2940, 6
    %v2957 = vsel %vm2814, %v2956, %v2955
    %v2958 = vrot.slane %v2941, 5
    %v2959 = vsel %vm2817, %v2958, %v2957
    %v2960 = vrot.slane %v2942, 4
    %v2961 = vsel %vm2820, %v2960, %v2959
    %v2962 = vrot.slane %v2943, 3
    %v2963 = vsel %vm2823, %v2962, %v2961
    %v2964 = vrot.slane %v2944, 2
    %v2965 = vsel %vm2826, %v2964, %v2963
    %v2966 = vrot.slane %v2945, 1
    %v2967 = vsel %vm2829, %v2966, %v2965
    %2968 = vrot.lane.b32.xlu0 %v2967, 64
    %v2969 = vpop.permute.xlu0 %2968
    %vm2971 = vcmask 654848
    %2972 = vst.msk [vmem:[#allocation19] sm:$0xff] %vm2971, %v2969
    %v2973 = vld [vmem:[#allocation7 + $0x5] sm:$0x1]
    %v2974 = vld [vmem:[#allocation7 + $0xd] sm:$0x1]
    %v2975 = vld [vmem:[#allocation7 + $0x15] sm:$0x1]
    %v2976 = vld [vmem:[#allocation7 + $0x1d] sm:$0x1]
    %v2977 = vld [vmem:[#allocation7 + $0x25] sm:$0x1]
    %v2978 = vld [vmem:[#allocation7 + $0x2d] sm:$0x1]
    %v2979 = vld [vmem:[#allocation7 + $0x35] sm:$0x1]
    %v2980 = vld [vmem:[#allocation7 + $0x3d] sm:$0x1]
    %v2989 = vrot.slane %v2974, 7
    %v2990 = vsel %vm2811, %v2989, %v2973
    %v2991 = vrot.slane %v2975, 6
    %v2992 = vsel %vm2814, %v2991, %v2990
    %v2993 = vrot.slane %v2976, 5
    %v2994 = vsel %vm2817, %v2993, %v2992
    %v2995 = vrot.slane %v2977, 4
    %v2996 = vsel %vm2820, %v2995, %v2994
    %v2997 = vrot.slane %v2978, 3
    %v2998 = vsel %vm2823, %v2997, %v2996
    %v2999 = vrot.slane %v2979, 2
    %v3000 = vsel %vm2826, %v2999, %v2998
    %v3001 = vrot.slane %v2980, 1
    %v3002 = vsel %vm2829, %v3001, %v3000
    %3003 = vrot.lane.b32.xlu0 %v3002, 80
    %v3004 = vpop.permute.xlu0 %3003
    %vm3006 = vcmask 786048
    %3007 = vst.msk [vmem:[#allocation19] sm:$0xff] %vm3006, %v3004
    %v3008 = vld [vmem:[#allocation7 + $0x6] sm:$0x1]
    %v3009 = vld [vmem:[#allocation7 + $0xe] sm:$0x1]
    %v3010 = vld [vmem:[#allocation7 + $0x16] sm:$0x1]
    %v3011 = vld [vmem:[#allocation7 + $0x1e] sm:$0x1]
    %v3012 = vld [vmem:[#allocation7 + $0x26] sm:$0x1]
    %v3013 = vld [vmem:[#allocation7 + $0x2e] sm:$0x1]
    %v3014 = vld [vmem:[#allocation7 + $0x36] sm:$0x1]
    %v3015 = vld [vmem:[#allocation7 + $0x3e] sm:$0x1]
    %v3024 = vrot.slane %v3009, 7
    %v3025 = vsel %vm2811, %v3024, %v3008
    %v3026 = vrot.slane %v3010, 6
    %v3027 = vsel %vm2814, %v3026, %v3025
    %v3028 = vrot.slane %v3011, 5
    %v3029 = vsel %vm2817, %v3028, %v3027
    %v3030 = vrot.slane %v3012, 4
    %v3031 = vsel %vm2820, %v3030, %v3029
    %v3032 = vrot.slane %v3013, 3
    %v3033 = vsel %vm2823, %v3032, %v3031
    %v3034 = vrot.slane %v3014, 2
    %v3035 = vsel %vm2826, %v3034, %v3033
    %v3036 = vrot.slane %v3015, 1
    %v3037 = vsel %vm2829, %v3036, %v3035
    %3038 = vrot.lane.b32.xlu0 %v3037, 96
    %v3039 = vpop.permute.xlu0 %3038
    %vm3041 = vcmask 917248
    %3042 = vst.msk [vmem:[#allocation19] sm:$0xff] %vm3041, %v3039
    %v3043 = vld [vmem:[#allocation7 + $0x7] sm:$0x1]
    %v3044 = vld [vmem:[#allocation7 + $0xf] sm:$0x1]
    %v3045 = vld [vmem:[#allocation7 + $0x17] sm:$0x1]
    %v3046 = vld [vmem:[#allocation7 + $0x1f] sm:$0x1]
    %v3047 = vld [vmem:[#allocation7 + $0x27] sm:$0x1]
    %v3048 = vld [vmem:[#allocation7 + $0x2f] sm:$0x1]
    %v3049 = vld [vmem:[#allocation7 + $0x37] sm:$0x1]
    %v3050 = vld [vmem:[#allocation7 + $0x3f] sm:$0x1]
    %v3059 = vrot.slane %v3044, 7
    %v3060 = vsel %vm2811, %v3059, %v3043
    %v3061 = vrot.slane %v3045, 6
    %v3062 = vsel %vm2814, %v3061, %v3060
    %v3063 = vrot.slane %v3046, 5
    %v3064 = vsel %vm2817, %v3063, %v3062
    %v3065 = vrot.slane %v3047, 4
    %v3066 = vsel %vm2820, %v3065, %v3064
    %v3067 = vrot.slane %v3048, 3
    %v3068 = vsel %vm2823, %v3067, %v3066
    %v3069 = vrot.slane %v3049, 2
    %v3070 = vsel %vm2826, %v3069, %v3068
    %v3071 = vrot.slane %v3050, 1
    %v3072 = vsel %vm2829, %v3071, %v3070
    %3073 = vrot.lane.b32.xlu0 %v3072, 112
    %v3074 = vpop.permute.xlu0 %3073
    %vm3076 = vcmask 1048448
    %3077 = vst.msk [vmem:[#allocation19] sm:$0xff] %vm3076, %v3074
    // Predicated region
    $region70: #{tpu_custom_call.1} parent=1 // pred_check
      _
    $region71: #{tpu_custom_call.1} parent=1 // pred_check_branch
      %3079 = sbr.rel (0) target = $region73
    $region72: #{tpu_custom_call.1} parent=1 // pred_region
      %s3081 = ssub.s32 128, 128
      %3082 = vsyncadd [#allocation10], %s3081
      %s3084 = sshll.u32 [#allocation19], 4
      %s3085 = int_to_ptr.vmem [resolvable:$true] %s3084
      %3087 = dma.vmem_to_hbm [thread:$0]  %s3085, 128, %s10, [#allocation10]
    $region73: #{tpu_custom_call.1} parent=1 // pred_fallthru
      _
    // Predicated region
    $region74: #{tpu_custom_call.1} parent=1 // pred_check
      _
    $region75: #{tpu_custom_call.1} parent=1 // pred_check_branch
      %3089 = sbr.rel (0) target = $region77
    $region76: #{tpu_custom_call.1} parent=1 // pred_region
      %3090 = dma.done [#allocation10], 128
    $region77: #{tpu_custom_call.1} parent=1 // pred_fallthru
      _
    %3091 = vsyncpa [#allocation9], 1
    %3092 = vsyncpa [#allocation12], 1
    %3093 = vsyncpa [#allocation15], 1
    %3094 = vsyncpa [#allocation18], 1
    %3095 = vsyncpa [#allocation10], 1

</llo_original>
